<compile_context>
chip_gen: v7x
topology: tpu7x:2x2x1
jax: 0.10.0
libtpu: 0.0.40
codegen_flags: <defaults>
</compile_context>

<pallas_src>
import math

import jax
import jax.numpy as jnp
from jax import lax
from jax.experimental import pallas as pl
from jax.experimental.pallas import tpu as pltpu

# ----------------------------- hyperparameters ------------------------------
ACTION_DIM = 4
D_MODEL = 32
NHEAD = 4
NUM_LAYERS = 2
DIM_FF = 64
DROPOUT = 0.1
BATCH = 2
SEQ = 8

IN_DIM = ACTION_DIM + 1
T = SEQ + 1                         # tokens per sequence incl. CLS
BT = BATCH * T                      # 18 real rows stacked on the sublane axis
BTP = 24                            # padded to a multiple of 8 (clean sublane stacking)
PAD = BTP - BT                      # 6 masked-out pad rows (never read back)
HEAD_DIM = D_MODEL // NHEAD
LN_EPS = 1e-5
PREC = lax.Precision.DEFAULT        # single-pass MXU (perf review); ref stays HIGHEST
REF_PREC = lax.Precision.HIGHEST
NEG_INF = -1e30

# ---------------- packed weight/mask blob layout (static offsets) -----------------
LW = 128                                            # one lane tile wide
ROW_WP = 0                                          # (IN_DIM, D) input projection
ROW_VEC = 8                                         # 1-row vectors: bp, cls, then 8/layer
ROW_MAT = ROW_VEC + 24                              # per-layer matrices, 8-aligned
PER_LAYER_MAT = D_MODEL + D_MODEL + D_MODEL + DIM_FF        # Wqkv|Wo|W1|W2 rows = 160
ROW_MASK = ROW_MAT + NUM_LAYERS * PER_LAYER_MAT             # head-tiled additive mask
BLOB_ROWS = ROW_MASK + NHEAD * BTP                          # 448


# ------------------------------- shared math ---------------------------------
def _layernorm(x, w, b):
    mu = jnp.mean(x, axis=-1, keepdims=True)
    var = jnp.mean((x - mu) ** 2, axis=-1, keepdims=True)
    return (x - mu) * lax.rsqrt(var + LN_EPS) * w + b


def _gelu(x):
    # exact (erf) GELU == torch.nn.functional.gelu default
    return 0.5 * x * (1.0 + lax.erf(x / math.sqrt(2.0)))


# --------------------------------- kernel ------------------------------------
def transformer_kernel(x_ref, blob_ref, out_ref):
    f32 = jnp.float32
    D, H, HD, FF = D_MODEL, NHEAD, HEAD_DIM, DIM_FF

    wp = blob_ref[ROW_WP:ROW_WP + IN_DIM, 0:D]
    bp = blob_ref[ROW_VEC:ROW_VEC + 1, 0:D]
    cls = blob_ref[ROW_VEC + 1:ROW_VEC + 2, 0:D]
    mask = blob_ref[ROW_MASK:ROW_MASK + H * BTP, 0:BTP]          # head-tiled additive mask

    # ---- input projection; CLS rows inserted by a row-select (no concatenate) ----
    proj = jnp.dot(x_ref[...], wp, precision=PREC, preferred_element_type=f32) + bp
    rows = lax.broadcasted_iota(jnp.int32, (BTP, 1), 0)
    s = jnp.where(rows < BATCH, cls, proj)                       # (BTP, D)

    for l in range(NUM_LAYERS):
        vb = ROW_VEC + 2 + l * 8
        mb = ROW_MAT + l * PER_LAYER_MAT
        wqkv = blob_ref[mb:mb + D, 0:3 * D]                      # (32, 96), scale folded in Q
        wo = blob_ref[mb + D:mb + 2 * D, 0:D]
        w1 = blob_ref[mb + 2 * D:mb + 3 * D, 0:FF]
        w2 = blob_ref[mb + 3 * D:mb + 3 * D + FF, 0:D]
        bqkv = blob_ref[vb:vb + 1, 0:3 * D]
        bo = blob_ref[vb + 1:vb + 2, 0:D]
        b1 = blob_ref[vb + 2:vb + 3, 0:FF]
        b2 = blob_ref[vb + 3:vb + 4, 0:D]
        ln1w = blob_ref[vb + 4:vb + 5, 0:D]
        ln1b = blob_ref[vb + 5:vb + 6, 0:D]
        ln2w = blob_ref[vb + 6:vb + 7, 0:D]
        ln2b = blob_ref[vb + 7:vb + 8, 0:D]

        # ---- fused QKV projection: one (BTP,32)x(32,96) matmul ----
        qkv = jnp.dot(s, wqkv, precision=PREC, preferred_element_type=f32) + bqkv
        q = qkv[:, 0:D]
        k = qkv[:, D:2 * D]
        v = qkv[:, 2 * D:3 * D]

        # ---- per-head scores, stacked on sublanes -> ONE softmax pass for all heads ----
        scs = [lax.dot_general(q[:, h * HD:(h + 1) * HD], k[:, h * HD:(h + 1) * HD],
                               (((1,), (1,)), ((), ())),
                               precision=PREC, preferred_element_type=f32)
               for h in range(H)]
        sc = jnp.concatenate(scs, axis=0) + mask                 # (H*BTP, BTP)
        sc = sc - jnp.max(sc, axis=-1, keepdims=True)
        probs = jnp.exp(sc)
        probs = probs / jnp.sum(probs, axis=-1, keepdims=True)   # exact reciprocal

        # ---- P.V per head, lane-concat heads, single output projection ----
        heads = [jnp.dot(probs[h * BTP:(h + 1) * BTP, :], v[:, h * HD:(h + 1) * HD],
                         precision=PREC, preferred_element_type=f32)
                 for h in range(H)]
        attn = jnp.dot(jnp.concatenate(heads, axis=-1), wo,
                       precision=PREC, preferred_element_type=f32) + bo
        s = _layernorm(s + attn, ln1w, ln1b)

        # ---- feed-forward ----
        h1 = _gelu(jnp.dot(s, w1, precision=PREC, preferred_element_type=f32) + b1)
        ff = jnp.dot(h1, w2, precision=PREC, preferred_element_type=f32) + b2
        s = _layernorm(s + ff, ln2w, ln2b)

    out_ref[...] = s[0:BATCH, :]                                 # CLS rows, (B, D)


# ------------------------------ operand packing --------------------------------
def pack_operands(x, p):
    """Pack activations into one slab and every weight/bias + mask into one blob."""
    D, H, HD, L, FF = D_MODEL, NHEAD, HEAD_DIM, NUM_LAYERS, DIM_FF

    # rows: [CLS placeholders | batch-major tokens | pad rows]
    x_pad = jnp.concatenate(
        [jnp.zeros((BATCH, IN_DIM), jnp.float32),
         x.reshape(BATCH * SEQ, IN_DIM).astype(jnp.float32),
         jnp.zeros((PAD, IN_DIM), jnp.float32)], axis=0)         # (BTP, IN_DIM)

    # block-diagonal additive mask; pad rows get their own group (never attended by real rows)
    row_batch = jnp.concatenate(
        [jnp.arange(BATCH, dtype=jnp.int32),
         jnp.repeat(jnp.arange(BATCH, dtype=jnp.int32), SEQ),
         jnp.full((PAD,), BATCH, jnp.int32)])
    mask = jnp.where(row_batch[:, None] == row_batch[None, :], 0.0, NEG_INF).astype(jnp.float32)
    mask_tiled = jnp.tile(mask, (H, 1))                          # (H*BTP, BTP)

    blob = jnp.zeros((BLOB_ROWS, LW), jnp.float32)
    blob = blob.at[ROW_WP:ROW_WP + IN_DIM, 0:D].set(p["wp"].T)
    blob = blob.at[ROW_VEC, 0:D].set(p["bp"].reshape(D))
    blob = blob.at[ROW_VEC + 1, 0:D].set(p["cls"].reshape(D))

    # fold 1/sqrt(HEAD_DIM) into the Q columns + Q bias of the fused QKV projection
    qscale = jnp.concatenate(
        [jnp.full((D,), 1.0 / math.sqrt(HD), jnp.float32),
         jnp.ones((2 * D,), jnp.float32)])
    for l in range(L):
        vb = ROW_VEC + 2 + l * 8
        mb = ROW_MAT + l * PER_LAYER_MAT
        blob = blob.at[mb:mb + D, 0:3 * D].set(p["wqkv"][l].T * qscale[None, :])
        blob = blob.at[mb + D:mb + 2 * D, 0:D].set(p["wo"][l].T)
        blob = blob.at[mb + 2 * D:mb + 3 * D, 0:FF].set(p["w1"][l].T)
        blob = blob.at[mb + 3 * D:mb + 3 * D + FF, 0:D].set(p["w2"][l].T)
        blob = blob.at[vb, 0:3 * D].set(p["bqkv"][l] * qscale)
        blob = blob.at[vb + 1, 0:D].set(p["bo"][l])
        blob = blob.at[vb + 2, 0:FF].set(p["b1"][l])
        blob = blob.at[vb + 3, 0:D].set(p["b2"][l])
        blob = blob.at[vb + 4, 0:D].set(p["ln1w"][l])
        blob = blob.at[vb + 5, 0:D].set(p["ln1b"][l])
        blob = blob.at[vb + 6, 0:D].set(p["ln2w"][l])
        blob = blob.at[vb + 7, 0:D].set(p["ln2b"][l])
    blob = blob.at[ROW_MASK:ROW_MASK + H * BTP, 0:BTP].set(mask_tiled)
    return x_pad, blob


# -------------------------------- wrapper -------------------------------------
def constraint_embedding_forward(x, params):
    x_pad, blob = pack_operands(x, params)
    return pl.pallas_call(
        transformer_kernel,
        out_shape=jax.ShapeDtypeStruct((BATCH, D_MODEL), jnp.float32),
        in_specs=[pl.BlockSpec(memory_space=pltpu.MemorySpace.VMEM),
                  pl.BlockSpec(memory_space=pltpu.MemorySpace.VMEM)],
        out_specs=pl.BlockSpec(memory_space=pltpu.MemorySpace.VMEM),
    )(x_pad, blob)


# --------------------------- deterministic params -----------------------------
def init_params(key):
    ks = jax.random.split(key, 11)
    n01 = lambda k, shape: jax.random.normal(k, shape, jnp.float32) * 0.1
    return {
        "cls": jax.random.normal(ks[0], (1, D_MODEL), jnp.float32),     # nn.Parameter(randn(1,1,d))
        "wp": n01(ks[1], (D_MODEL, IN_DIM)),                            # Linear(in=IN_DIM, out=D)
        "bp": n01(ks[2], (1, D_MODEL)),
        "wqkv": n01(ks[3], (NUM_LAYERS, 3 * D_MODEL, D_MODEL)),         # MHA in_proj
        "bqkv": n01(ks[4], (NUM_LAYERS, 3 * D_MODEL)),
        "wo": n01(ks[5], (NUM_LAYERS, D_MODEL, D_MODEL)),               # MHA out_proj
        "bo": n01(ks[6], (NUM_LAYERS, D_MODEL)),
        "w1": n01(ks[7], (NUM_LAYERS, DIM_FF, D_MODEL)),                # FFN linear1
        "b1": n01(ks[8], (NUM_LAYERS, DIM_FF)),
        "w2": n01(ks[9], (NUM_LAYERS, D_MODEL, DIM_FF)),                # FFN linear2
        "b2": n01(ks[10], (NUM_LAYERS, D_MODEL)),
        "ln1w": jnp.ones((NUM_LAYERS, D_MODEL), jnp.float32),
        "ln1b": jnp.zeros((NUM_LAYERS, D_MODEL), jnp.float32),
        "ln2w": jnp.ones((NUM_LAYERS, D_MODEL), jnp.float32),
        "ln2b": jnp.zeros((NUM_LAYERS, D_MODEL), jnp.float32),
    }


# ------------------------------ pure-JAX reference ----------------------------
def reference_forward(x, p):
    B = x.shape[0]
    proj = jnp.einsum("bnd,md->bnm", x, p["wp"], precision=REF_PREC) + p["bp"][0]
    cls = jnp.broadcast_to(p["cls"][None, :, :], (B, 1, D_MODEL))
    s = jnp.concatenate([cls, proj], axis=1)
    scale = 1.0 / math.sqrt(HEAD_DIM)
    for l in range(NUM_LAYERS):
        qkv = jnp.einsum("btd,ed->bte", s, p["wqkv"][l], precision=REF_PREC) + p["bqkv"][l]
        q, k, v = jnp.split(qkv, 3, axis=-1)
        q = q.reshape(B, T, NHEAD, HEAD_DIM)
        k = k.reshape(B, T, NHEAD, HEAD_DIM)
        v = v.reshape(B, T, NHEAD, HEAD_DIM)
        sc = jnp.einsum("bthd,bshd->bhts", q, k, precision=REF_PREC) * scale
        pa = jax.nn.softmax(sc, axis=-1)
        at = jnp.einsum("bhts,bshd->bthd", pa, v, precision=REF_PREC).reshape(B, T, D_MODEL)
        at = jnp.einsum("btd,ed->bte", at, p["wo"][l], precision=REF_PREC) + p["bo"][l]
        s = _layernorm(s + at, p["ln1w"][l], p["ln1b"][l])
        h1 = _gelu(jnp.einsum("btd,fd->btf", s, p["w1"][l], precision=REF_PREC) + p["b1"][l])
        ff = jnp.einsum("btf,df->btd", h1, p["w2"][l], precision=REF_PREC) + p["b2"][l]
        s = _layernorm(s + ff, p["ln2w"][l], p["ln2b"][l])
    return s[:, 0, :]


# ----------------------------------- main --------------------------------------
if __name__ == "__main__":
    key = jax.random.PRNGKey(0)
    kx, kp = jax.random.split(key)
    params = init_params(kp)
    x = jax.random.normal(kx, (BATCH, SEQ, IN_DIM), jnp.float32)

    fwd = jax.jit(constraint_embedding_forward)
    out = jax.block_until_ready(fwd(x, params))
    ref = jax.block_until_ready(reference_forward(x, params))

    assert out.shape == (BATCH, D_MODEL), out.shape
    max_diff = float(jnp.max(jnp.abs(out - ref)))
    # Kernel matmuls run at DEFAULT MXU precision (single bf16 pass, per perf review)
    # while the reference is full-f32 HIGHEST; 5e-3 on O(1) post-LayerNorm outputs still
    # cleanly separates MXU rounding noise from any semantic error (those are O(0.1+)).
    if max_diff > 5e-3:
        raise AssertionError(f"kernel mismatch vs reference: max abs diff = {max_diff}")
    print("KERNEL_OK")
</pallas_src>

<mosaic_0001>
module attributes {stable_mosaic.version = 11 : i64} {
  func.func @transformer_kernel(%arg0: memref<24x5xf32, #tpu.memory_space<vmem>>, %arg1: memref<448x128xf32, #tpu.memory_space<vmem>>, %arg2: memref<2x32xf32, #tpu.memory_space<vmem>>) attributes {dimension_semantics = [], scalar_prefetch = 0 : i64, scratch_operands = 0 : i64, tpu.core_type = #tpu.core_type<tc>} {
    %c0 = arith.constant 0 : index
    %c0_0 = arith.constant 0 : index
    %0 = vector.load %arg1[%c0, %c0_0] : memref<448x128xf32, #tpu.memory_space<vmem>>, vector<5x32xf32>
    %c8 = arith.constant 8 : index
    %c0_1 = arith.constant 0 : index
    %1 = vector.load %arg1[%c8, %c0_1] : memref<448x128xf32, #tpu.memory_space<vmem>>, vector<1x32xf32>
    %c9 = arith.constant 9 : index
    %c0_2 = arith.constant 0 : index
    %2 = vector.load %arg1[%c9, %c0_2] : memref<448x128xf32, #tpu.memory_space<vmem>>, vector<1x32xf32>
    %c352 = arith.constant 352 : index
    %c0_3 = arith.constant 0 : index
    %3 = vector.load %arg1[%c352, %c0_3] : memref<448x128xf32, #tpu.memory_space<vmem>>, vector<96x24xf32>
    %c0_4 = arith.constant 0 : index
    %c0_5 = arith.constant 0 : index
    %4 = vector.load %arg0[%c0_4, %c0_5] : memref<24x5xf32, #tpu.memory_space<vmem>>, vector<24x5xf32>
    %cst = arith.constant dense<0.000000e+00> : vector<24x32xf32>
    %5 = tpu.matmul %4, %0, %cst {dimension_numbers = #tpu.dot_dimension_numbers<[1], [0], [0], [1], [0, 0, 1, 1], [], []>} : vector<24x5xf32>, vector<5x32xf32>, vector<24x32xf32> -> vector<24x32xf32>
    %6 = vector.broadcast %1 : vector<1x32xf32> to vector<24x32xf32>
    %7 = arith.addf %5, %6 : vector<24x32xf32>
    %8 = tpu.iota {dimensions = array<i32: 0>} : vector<24x1xi32>
    %c2_i32 = arith.constant 2 : i32
    %9 = vector.broadcast %c2_i32 : i32 to vector<24x1xi32>
    %10 = arith.cmpi slt, %8, %9 : vector<24x1xi32>
    %11 = vector.shape_cast %10 : vector<24x1xi1> to vector<24x1xi1>
    %12 = vector.broadcast %11 : vector<24x1xi1> to vector<24x32xi1>
    %13 = vector.shape_cast %2 : vector<1x32xf32> to vector<1x32xf32>
    %14 = vector.broadcast %13 : vector<1x32xf32> to vector<24x32xf32>
    %15 = arith.select %12, %14, %7 : vector<24x32xi1>, vector<24x32xf32>
    %c32 = arith.constant 32 : index
    %c0_6 = arith.constant 0 : index
    %16 = vector.load %arg1[%c32, %c0_6] : memref<448x128xf32, #tpu.memory_space<vmem>>, vector<32x96xf32>
    %c64 = arith.constant 64 : index
    %c0_7 = arith.constant 0 : index
    %17 = vector.load %arg1[%c64, %c0_7] : memref<448x128xf32, #tpu.memory_space<vmem>>, vector<32x32xf32>
    %c96 = arith.constant 96 : index
    %c0_8 = arith.constant 0 : index
    %18 = vector.load %arg1[%c96, %c0_8] : memref<448x128xf32, #tpu.memory_space<vmem>>, vector<32x64xf32>
    %c128 = arith.constant 128 : index
    %c0_9 = arith.constant 0 : index
    %19 = vector.load %arg1[%c128, %c0_9] : memref<448x128xf32, #tpu.memory_space<vmem>>, vector<64x32xf32>
    %c10 = arith.constant 10 : index
    %c0_10 = arith.constant 0 : index
    %20 = vector.load %arg1[%c10, %c0_10] : memref<448x128xf32, #tpu.memory_space<vmem>>, vector<1x96xf32>
    %c11 = arith.constant 11 : index
    %c0_11 = arith.constant 0 : index
    %21 = vector.load %arg1[%c11, %c0_11] : memref<448x128xf32, #tpu.memory_space<vmem>>, vector<1x32xf32>
    %c12 = arith.constant 12 : index
    %c0_12 = arith.constant 0 : index
    %22 = vector.load %arg1[%c12, %c0_12] : memref<448x128xf32, #tpu.memory_space<vmem>>, vector<1x64xf32>
    %c13 = arith.constant 13 : index
    %c0_13 = arith.constant 0 : index
    %23 = vector.load %arg1[%c13, %c0_13] : memref<448x128xf32, #tpu.memory_space<vmem>>, vector<1x32xf32>
    %c14 = arith.constant 14 : index
    %c0_14 = arith.constant 0 : index
    %24 = vector.load %arg1[%c14, %c0_14] : memref<448x128xf32, #tpu.memory_space<vmem>>, vector<1x32xf32>
    %c15 = arith.constant 15 : index
    %c0_15 = arith.constant 0 : index
    %25 = vector.load %arg1[%c15, %c0_15] : memref<448x128xf32, #tpu.memory_space<vmem>>, vector<1x32xf32>
    %c16 = arith.constant 16 : index
    %c0_16 = arith.constant 0 : index
    %26 = vector.load %arg1[%c16, %c0_16] : memref<448x128xf32, #tpu.memory_space<vmem>>, vector<1x32xf32>
    %c17 = arith.constant 17 : index
    %c0_17 = arith.constant 0 : index
    %27 = vector.load %arg1[%c17, %c0_17] : memref<448x128xf32, #tpu.memory_space<vmem>>, vector<1x32xf32>
    %cst_18 = arith.constant dense<0.000000e+00> : vector<24x96xf32>
    %28 = tpu.matmul %15, %16, %cst_18 {dimension_numbers = #tpu.dot_dimension_numbers<[1], [0], [0], [1], [0, 0, 1, 1], [], []>} : vector<24x32xf32>, vector<32x96xf32>, vector<24x96xf32> -> vector<24x96xf32>
    %29 = vector.broadcast %20 : vector<1x96xf32> to vector<24x96xf32>
    %30 = arith.addf %28, %29 : vector<24x96xf32>
    %31 = vector.extract_strided_slice %30 {offsets = [0, 0], sizes = [24, 32], strides = [1, 1]} : vector<24x96xf32> to vector<24x32xf32>
    %32 = vector.extract_strided_slice %30 {offsets = [0, 32], sizes = [24, 32], strides = [1, 1]} : vector<24x96xf32> to vector<24x32xf32>
    %33 = vector.extract_strided_slice %30 {offsets = [0, 64], sizes = [24, 32], strides = [1, 1]} : vector<24x96xf32> to vector<24x32xf32>
    %34 = vector.extract_strided_slice %31 {offsets = [0, 0], sizes = [24, 8], strides = [1, 1]} : vector<24x32xf32> to vector<24x8xf32>
    %35 = vector.extract_strided_slice %32 {offsets = [0, 0], sizes = [24, 8], strides = [1, 1]} : vector<24x32xf32> to vector<24x8xf32>
    %cst_19 = arith.constant dense<0.000000e+00> : vector<24x24xf32>
    %36 = tpu.matmul %34, %35, %cst_19 {dimension_numbers = #tpu.dot_dimension_numbers<[1], [1], [0], [0], [0, 0, 1, 0], [], []>} : vector<24x8xf32>, vector<24x8xf32>, vector<24x24xf32> -> vector<24x24xf32>
    %37 = vector.extract_strided_slice %31 {offsets = [0, 8], sizes = [24, 8], strides = [1, 1]} : vector<24x32xf32> to vector<24x8xf32>
    %38 = vector.extract_strided_slice %32 {offsets = [0, 8], sizes = [24, 8], strides = [1, 1]} : vector<24x32xf32> to vector<24x8xf32>
    %cst_20 = arith.constant dense<0.000000e+00> : vector<24x24xf32>
    %39 = tpu.matmul %37, %38, %cst_20 {dimension_numbers = #tpu.dot_dimension_numbers<[1], [1], [0], [0], [0, 0, 1, 0], [], []>} : vector<24x8xf32>, vector<24x8xf32>, vector<24x24xf32> -> vector<24x24xf32>
    %40 = vector.extract_strided_slice %31 {offsets = [0, 16], sizes = [24, 8], strides = [1, 1]} : vector<24x32xf32> to vector<24x8xf32>
    %41 = vector.extract_strided_slice %32 {offsets = [0, 16], sizes = [24, 8], strides = [1, 1]} : vector<24x32xf32> to vector<24x8xf32>
    %cst_21 = arith.constant dense<0.000000e+00> : vector<24x24xf32>
    %42 = tpu.matmul %40, %41, %cst_21 {dimension_numbers = #tpu.dot_dimension_numbers<[1], [1], [0], [0], [0, 0, 1, 0], [], []>} : vector<24x8xf32>, vector<24x8xf32>, vector<24x24xf32> -> vector<24x24xf32>
    %43 = vector.extract_strided_slice %31 {offsets = [0, 24], sizes = [24, 8], strides = [1, 1]} : vector<24x32xf32> to vector<24x8xf32>
    %44 = vector.extract_strided_slice %32 {offsets = [0, 24], sizes = [24, 8], strides = [1, 1]} : vector<24x32xf32> to vector<24x8xf32>
    %cst_22 = arith.constant dense<0.000000e+00> : vector<24x24xf32>
    %45 = tpu.matmul %43, %44, %cst_22 {dimension_numbers = #tpu.dot_dimension_numbers<[1], [1], [0], [0], [0, 0, 1, 0], [], []>} : vector<24x8xf32>, vector<24x8xf32>, vector<24x24xf32> -> vector<24x24xf32>
    %46 = tpu.concatenate %36, %39, %42, %45 in 0 : vector<24x24xf32>, vector<24x24xf32>, vector<24x24xf32>, vector<24x24xf32> -> vector<96x24xf32>
    %47 = arith.addf %46, %3 : vector<96x24xf32>
    %cst_23 = arith.constant dense<0xFF800000> : vector<96xf32>
    %48 = vector.multi_reduction <maximumf>, %47, %cst_23 [1] : vector<96x24xf32> to vector<96xf32>
    %49 = vector.shape_cast %48 : vector<96xf32> to vector<96x1xf32>
    %50 = vector.broadcast %49 : vector<96x1xf32> to vector<96x24xf32>
    %51 = arith.subf %47, %50 : vector<96x24xf32>
    %52 = math.exp %51 : vector<96x24xf32>
    %cst_24 = arith.constant dense<0.000000e+00> : vector<96xf32>
    %53 = vector.multi_reduction <add>, %52, %cst_24 [1] : vector<96x24xf32> to vector<96xf32>
    %54 = vector.shape_cast %53 : vector<96xf32> to vector<96x1xf32>
    %55 = vector.broadcast %54 : vector<96x1xf32> to vector<96x24xf32>
    %56 = arith.divf %52, %55 : vector<96x24xf32>
    %57 = vector.extract_strided_slice %56 {offsets = [0, 0], sizes = [24, 24], strides = [1, 1]} : vector<96x24xf32> to vector<24x24xf32>
    %58 = vector.extract_strided_slice %33 {offsets = [0, 0], sizes = [24, 8], strides = [1, 1]} : vector<24x32xf32> to vector<24x8xf32>
    %cst_25 = arith.constant dense<0.000000e+00> : vector<24x8xf32>
    %59 = tpu.matmul %57, %58, %cst_25 {dimension_numbers = #tpu.dot_dimension_numbers<[1], [0], [0], [1], [0, 0, 1, 1], [], []>} : vector<24x24xf32>, vector<24x8xf32>, vector<24x8xf32> -> vector<24x8xf32>
    %60 = vector.extract_strided_slice %56 {offsets = [24, 0], sizes = [24, 24], strides = [1, 1]} : vector<96x24xf32> to vector<24x24xf32>
    %61 = vector.extract_strided_slice %33 {offsets = [0, 8], sizes = [24, 8], strides = [1, 1]} : vector<24x32xf32> to vector<24x8xf32>
    %cst_26 = arith.constant dense<0.000000e+00> : vector<24x8xf32>
    %62 = tpu.matmul %60, %61, %cst_26 {dimension_numbers = #tpu.dot_dimension_numbers<[1], [0], [0], [1], [0, 0, 1, 1], [], []>} : vector<24x24xf32>, vector<24x8xf32>, vector<24x8xf32> -> vector<24x8xf32>
    %63 = vector.extract_strided_slice %56 {offsets = [48, 0], sizes = [24, 24], strides = [1, 1]} : vector<96x24xf32> to vector<24x24xf32>
    %64 = vector.extract_strided_slice %33 {offsets = [0, 16], sizes = [24, 8], strides = [1, 1]} : vector<24x32xf32> to vector<24x8xf32>
    %cst_27 = arith.constant dense<0.000000e+00> : vector<24x8xf32>
    %65 = tpu.matmul %63, %64, %cst_27 {dimension_numbers = #tpu.dot_dimension_numbers<[1], [0], [0], [1], [0, 0, 1, 1], [], []>} : vector<24x24xf32>, vector<24x8xf32>, vector<24x8xf32> -> vector<24x8xf32>
    %66 = vector.extract_strided_slice %56 {offsets = [72, 0], sizes = [24, 24], strides = [1, 1]} : vector<96x24xf32> to vector<24x24xf32>
    %67 = vector.extract_strided_slice %33 {offsets = [0, 24], sizes = [24, 8], strides = [1, 1]} : vector<24x32xf32> to vector<24x8xf32>
    %cst_28 = arith.constant dense<0.000000e+00> : vector<24x8xf32>
    %68 = tpu.matmul %66, %67, %cst_28 {dimension_numbers = #tpu.dot_dimension_numbers<[1], [0], [0], [1], [0, 0, 1, 1], [], []>} : vector<24x24xf32>, vector<24x8xf32>, vector<24x8xf32> -> vector<24x8xf32>
    %69 = tpu.concatenate %59, %62, %65, %68 in 1 : vector<24x8xf32>, vector<24x8xf32>, vector<24x8xf32>, vector<24x8xf32> -> vector<24x32xf32>
    %cst_29 = arith.constant dense<0.000000e+00> : vector<24x32xf32>
    %70 = tpu.matmul %69, %17, %cst_29 {dimension_numbers = #tpu.dot_dimension_numbers<[1], [0], [0], [1], [0, 0, 1, 1], [], []>} : vector<24x32xf32>, vector<32x32xf32>, vector<24x32xf32> -> vector<24x32xf32>
    %71 = vector.broadcast %21 : vector<1x32xf32> to vector<24x32xf32>
    %72 = arith.addf %70, %71 : vector<24x32xf32>
    %73 = arith.addf %15, %72 : vector<24x32xf32>
    %cst_30 = arith.constant dense<0.000000e+00> : vector<24xf32>
    %74 = vector.multi_reduction <add>, %73, %cst_30 [1] : vector<24x32xf32> to vector<24xf32>
    %75 = vector.shape_cast %74 : vector<24xf32> to vector<24x1xf32>
    %cst_31 = arith.constant 3.200000e+01 : f32
    %76 = vector.broadcast %cst_31 : f32 to vector<24x1xf32>
    %77 = arith.divf %75, %76 : vector<24x1xf32>
    %78 = vector.broadcast %77 : vector<24x1xf32> to vector<24x32xf32>
    %79 = arith.subf %73, %78 : vector<24x32xf32>
    %80 = arith.mulf %79, %79 : vector<24x32xf32>
    %cst_32 = arith.constant dense<0.000000e+00> : vector<24xf32>
    %81 = vector.multi_reduction <add>, %80, %cst_32 [1] : vector<24x32xf32> to vector<24xf32>
    %82 = vector.shape_cast %81 : vector<24xf32> to vector<24x1xf32>
    %cst_33 = arith.constant 3.200000e+01 : f32
    %83 = vector.broadcast %cst_33 : f32 to vector<24x1xf32>
    %84 = arith.divf %82, %83 : vector<24x1xf32>
    %85 = vector.broadcast %77 : vector<24x1xf32> to vector<24x32xf32>
    %86 = arith.subf %73, %85 : vector<24x32xf32>
    %cst_34 = arith.constant 9.99999974E-6 : f32
    %87 = vector.broadcast %cst_34 : f32 to vector<24x1xf32>
    %88 = arith.addf %84, %87 : vector<24x1xf32>
    %89 = math.rsqrt %88 : vector<24x1xf32>
    %90 = vector.broadcast %89 : vector<24x1xf32> to vector<24x32xf32>
    %91 = arith.mulf %86, %90 : vector<24x32xf32>
    %92 = vector.broadcast %24 : vector<1x32xf32> to vector<24x32xf32>
    %93 = arith.mulf %91, %92 : vector<24x32xf32>
    %94 = vector.broadcast %25 : vector<1x32xf32> to vector<24x32xf32>
    %95 = arith.addf %93, %94 : vector<24x32xf32>
    %cst_35 = arith.constant dense<0.000000e+00> : vector<24x64xf32>
    %96 = tpu.matmul %95, %18, %cst_35 {dimension_numbers = #tpu.dot_dimension_numbers<[1], [0], [0], [1], [0, 0, 1, 1], [], []>} : vector<24x32xf32>, vector<32x64xf32>, vector<24x64xf32> -> vector<24x64xf32>
    %97 = vector.broadcast %22 : vector<1x64xf32> to vector<24x64xf32>
    %98 = arith.addf %96, %97 : vector<24x64xf32>
    %cst_36 = arith.constant 5.000000e-01 : f32
    %99 = vector.broadcast %cst_36 : f32 to vector<24x64xf32>
    %100 = arith.mulf %99, %98 : vector<24x64xf32>
    %cst_37 = arith.constant 1.41421354 : f32
    %101 = vector.broadcast %cst_37 : f32 to vector<24x64xf32>
    %102 = arith.divf %98, %101 : vector<24x64xf32>
    %103 = math.erf %102 : vector<24x64xf32>
    %cst_38 = arith.constant 1.000000e+00 : f32
    %104 = vector.broadcast %cst_38 : f32 to vector<24x64xf32>
    %105 = arith.addf %104, %103 : vector<24x64xf32>
    %106 = arith.mulf %100, %105 : vector<24x64xf32>
    %cst_39 = arith.constant dense<0.000000e+00> : vector<24x32xf32>
    %107 = tpu.matmul %106, %19, %cst_39 {dimension_numbers = #tpu.dot_dimension_numbers<[1], [0], [0], [1], [0, 0, 1, 1], [], []>} : vector<24x64xf32>, vector<64x32xf32>, vector<24x32xf32> -> vector<24x32xf32>
    %108 = vector.broadcast %23 : vector<1x32xf32> to vector<24x32xf32>
    %109 = arith.addf %107, %108 : vector<24x32xf32>
    %110 = arith.addf %95, %109 : vector<24x32xf32>
    %cst_40 = arith.constant dense<0.000000e+00> : vector<24xf32>
    %111 = vector.multi_reduction <add>, %110, %cst_40 [1] : vector<24x32xf32> to vector<24xf32>
    %112 = vector.shape_cast %111 : vector<24xf32> to vector<24x1xf32>
    %cst_41 = arith.constant 3.200000e+01 : f32
    %113 = vector.broadcast %cst_41 : f32 to vector<24x1xf32>
    %114 = arith.divf %112, %113 : vector<24x1xf32>
    %115 = vector.broadcast %114 : vector<24x1xf32> to vector<24x32xf32>
    %116 = arith.subf %110, %115 : vector<24x32xf32>
    %117 = arith.mulf %116, %116 : vector<24x32xf32>
    %cst_42 = arith.constant dense<0.000000e+00> : vector<24xf32>
    %118 = vector.multi_reduction <add>, %117, %cst_42 [1] : vector<24x32xf32> to vector<24xf32>
    %119 = vector.shape_cast %118 : vector<24xf32> to vector<24x1xf32>
    %cst_43 = arith.constant 3.200000e+01 : f32
    %120 = vector.broadcast %cst_43 : f32 to vector<24x1xf32>
    %121 = arith.divf %119, %120 : vector<24x1xf32>
    %122 = vector.broadcast %114 : vector<24x1xf32> to vector<24x32xf32>
    %123 = arith.subf %110, %122 : vector<24x32xf32>
    %cst_44 = arith.constant 9.99999974E-6 : f32
    %124 = vector.broadcast %cst_44 : f32 to vector<24x1xf32>
    %125 = arith.addf %121, %124 : vector<24x1xf32>
    %126 = math.rsqrt %125 : vector<24x1xf32>
    %127 = vector.broadcast %126 : vector<24x1xf32> to vector<24x32xf32>
    %128 = arith.mulf %123, %127 : vector<24x32xf32>
    %129 = vector.broadcast %26 : vector<1x32xf32> to vector<24x32xf32>
    %130 = arith.mulf %128, %129 : vector<24x32xf32>
    %131 = vector.broadcast %27 : vector<1x32xf32> to vector<24x32xf32>
    %132 = arith.addf %130, %131 : vector<24x32xf32>
    %c192 = arith.constant 192 : index
    %c0_45 = arith.constant 0 : index
    %133 = vector.load %arg1[%c192, %c0_45] : memref<448x128xf32, #tpu.memory_space<vmem>>, vector<32x96xf32>
    %c224 = arith.constant 224 : index
    %c0_46 = arith.constant 0 : index
    %134 = vector.load %arg1[%c224, %c0_46] : memref<448x128xf32, #tpu.memory_space<vmem>>, vector<32x32xf32>
    %c256 = arith.constant 256 : index
    %c0_47 = arith.constant 0 : index
    %135 = vector.load %arg1[%c256, %c0_47] : memref<448x128xf32, #tpu.memory_space<vmem>>, vector<32x64xf32>
    %c288 = arith.constant 288 : index
    %c0_48 = arith.constant 0 : index
    %136 = vector.load %arg1[%c288, %c0_48] : memref<448x128xf32, #tpu.memory_space<vmem>>, vector<64x32xf32>
    %c18 = arith.constant 18 : index
    %c0_49 = arith.constant 0 : index
    %137 = vector.load %arg1[%c18, %c0_49] : memref<448x128xf32, #tpu.memory_space<vmem>>, vector<1x96xf32>
    %c19 = arith.constant 19 : index
    %c0_50 = arith.constant 0 : index
    %138 = vector.load %arg1[%c19, %c0_50] : memref<448x128xf32, #tpu.memory_space<vmem>>, vector<1x32xf32>
    %c20 = arith.constant 20 : index
    %c0_51 = arith.constant 0 : index
    %139 = vector.load %arg1[%c20, %c0_51] : memref<448x128xf32, #tpu.memory_space<vmem>>, vector<1x64xf32>
    %c21 = arith.constant 21 : index
    %c0_52 = arith.constant 0 : index
    %140 = vector.load %arg1[%c21, %c0_52] : memref<448x128xf32, #tpu.memory_space<vmem>>, vector<1x32xf32>
    %c22 = arith.constant 22 : index
    %c0_53 = arith.constant 0 : index
    %141 = vector.load %arg1[%c22, %c0_53] : memref<448x128xf32, #tpu.memory_space<vmem>>, vector<1x32xf32>
    %c23 = arith.constant 23 : index
    %c0_54 = arith.constant 0 : index
    %142 = vector.load %arg1[%c23, %c0_54] : memref<448x128xf32, #tpu.memory_space<vmem>>, vector<1x32xf32>
    %c24 = arith.constant 24 : index
    %c0_55 = arith.constant 0 : index
    %143 = vector.load %arg1[%c24, %c0_55] : memref<448x128xf32, #tpu.memory_space<vmem>>, vector<1x32xf32>
    %c25 = arith.constant 25 : index
    %c0_56 = arith.constant 0 : index
    %144 = vector.load %arg1[%c25, %c0_56] : memref<448x128xf32, #tpu.memory_space<vmem>>, vector<1x32xf32>
    %cst_57 = arith.constant dense<0.000000e+00> : vector<24x96xf32>
    %145 = tpu.matmul %132, %133, %cst_57 {dimension_numbers = #tpu.dot_dimension_numbers<[1], [0], [0], [1], [0, 0, 1, 1], [], []>} : vector<24x32xf32>, vector<32x96xf32>, vector<24x96xf32> -> vector<24x96xf32>
    %146 = vector.broadcast %137 : vector<1x96xf32> to vector<24x96xf32>
    %147 = arith.addf %145, %146 : vector<24x96xf32>
    %148 = vector.extract_strided_slice %147 {offsets = [0, 0], sizes = [24, 32], strides = [1, 1]} : vector<24x96xf32> to vector<24x32xf32>
    %149 = vector.extract_strided_slice %147 {offsets = [0, 32], sizes = [24, 32], strides = [1, 1]} : vector<24x96xf32> to vector<24x32xf32>
    %150 = vector.extract_strided_slice %147 {offsets = [0, 64], sizes = [24, 32], strides = [1, 1]} : vector<24x96xf32> to vector<24x32xf32>
    %151 = vector.extract_strided_slice %148 {offsets = [0, 0], sizes = [24, 8], strides = [1, 1]} : vector<24x32xf32> to vector<24x8xf32>
    %152 = vector.extract_strided_slice %149 {offsets = [0, 0], sizes = [24, 8], strides = [1, 1]} : vector<24x32xf32> to vector<24x8xf32>
    %cst_58 = arith.constant dense<0.000000e+00> : vector<24x24xf32>
    %153 = tpu.matmul %151, %152, %cst_58 {dimension_numbers = #tpu.dot_dimension_numbers<[1], [1], [0], [0], [0, 0, 1, 0], [], []>} : vector<24x8xf32>, vector<24x8xf32>, vector<24x24xf32> -> vector<24x24xf32>
    %154 = vector.extract_strided_slice %148 {offsets = [0, 8], sizes = [24, 8], strides = [1, 1]} : vector<24x32xf32> to vector<24x8xf32>
    %155 = vector.extract_strided_slice %149 {offsets = [0, 8], sizes = [24, 8], strides = [1, 1]} : vector<24x32xf32> to vector<24x8xf32>
    %cst_59 = arith.constant dense<0.000000e+00> : vector<24x24xf32>
    %156 = tpu.matmul %154, %155, %cst_59 {dimension_numbers = #tpu.dot_dimension_numbers<[1], [1], [0], [0], [0, 0, 1, 0], [], []>} : vector<24x8xf32>, vector<24x8xf32>, vector<24x24xf32> -> vector<24x24xf32>
    %157 = vector.extract_strided_slice %148 {offsets = [0, 16], sizes = [24, 8], strides = [1, 1]} : vector<24x32xf32> to vector<24x8xf32>
    %158 = vector.extract_strided_slice %149 {offsets = [0, 16], sizes = [24, 8], strides = [1, 1]} : vector<24x32xf32> to vector<24x8xf32>
    %cst_60 = arith.constant dense<0.000000e+00> : vector<24x24xf32>
    %159 = tpu.matmul %157, %158, %cst_60 {dimension_numbers = #tpu.dot_dimension_numbers<[1], [1], [0], [0], [0, 0, 1, 0], [], []>} : vector<24x8xf32>, vector<24x8xf32>, vector<24x24xf32> -> vector<24x24xf32>
    %160 = vector.extract_strided_slice %148 {offsets = [0, 24], sizes = [24, 8], strides = [1, 1]} : vector<24x32xf32> to vector<24x8xf32>
    %161 = vector.extract_strided_slice %149 {offsets = [0, 24], sizes = [24, 8], strides = [1, 1]} : vector<24x32xf32> to vector<24x8xf32>
    %cst_61 = arith.constant dense<0.000000e+00> : vector<24x24xf32>
    %162 = tpu.matmul %160, %161, %cst_61 {dimension_numbers = #tpu.dot_dimension_numbers<[1], [1], [0], [0], [0, 0, 1, 0], [], []>} : vector<24x8xf32>, vector<24x8xf32>, vector<24x24xf32> -> vector<24x24xf32>
    %163 = tpu.concatenate %153, %156, %159, %162 in 0 : vector<24x24xf32>, vector<24x24xf32>, vector<24x24xf32>, vector<24x24xf32> -> vector<96x24xf32>
    %164 = arith.addf %163, %3 : vector<96x24xf32>
    %cst_62 = arith.constant dense<0xFF800000> : vector<96xf32>
    %165 = vector.multi_reduction <maximumf>, %164, %cst_62 [1] : vector<96x24xf32> to vector<96xf32>
    %166 = vector.shape_cast %165 : vector<96xf32> to vector<96x1xf32>
    %167 = vector.broadcast %166 : vector<96x1xf32> to vector<96x24xf32>
    %168 = arith.subf %164, %167 : vector<96x24xf32>
    %169 = math.exp %168 : vector<96x24xf32>
    %cst_63 = arith.constant dense<0.000000e+00> : vector<96xf32>
    %170 = vector.multi_reduction <add>, %169, %cst_63 [1] : vector<96x24xf32> to vector<96xf32>
    %171 = vector.shape_cast %170 : vector<96xf32> to vector<96x1xf32>
    %172 = vector.broadcast %171 : vector<96x1xf32> to vector<96x24xf32>
    %173 = arith.divf %169, %172 : vector<96x24xf32>
    %174 = vector.extract_strided_slice %173 {offsets = [0, 0], sizes = [24, 24], strides = [1, 1]} : vector<96x24xf32> to vector<24x24xf32>
    %175 = vector.extract_strided_slice %150 {offsets = [0, 0], sizes = [24, 8], strides = [1, 1]} : vector<24x32xf32> to vector<24x8xf32>
    %cst_64 = arith.constant dense<0.000000e+00> : vector<24x8xf32>
    %176 = tpu.matmul %174, %175, %cst_64 {dimension_numbers = #tpu.dot_dimension_numbers<[1], [0], [0], [1], [0, 0, 1, 1], [], []>} : vector<24x24xf32>, vector<24x8xf32>, vector<24x8xf32> -> vector<24x8xf32>
    %177 = vector.extract_strided_slice %173 {offsets = [24, 0], sizes = [24, 24], strides = [1, 1]} : vector<96x24xf32> to vector<24x24xf32>
    %178 = vector.extract_strided_slice %150 {offsets = [0, 8], sizes = [24, 8], strides = [1, 1]} : vector<24x32xf32> to vector<24x8xf32>
    %cst_65 = arith.constant dense<0.000000e+00> : vector<24x8xf32>
    %179 = tpu.matmul %177, %178, %cst_65 {dimension_numbers = #tpu.dot_dimension_numbers<[1], [0], [0], [1], [0, 0, 1, 1], [], []>} : vector<24x24xf32>, vector<24x8xf32>, vector<24x8xf32> -> vector<24x8xf32>
    %180 = vector.extract_strided_slice %173 {offsets = [48, 0], sizes = [24, 24], strides = [1, 1]} : vector<96x24xf32> to vector<24x24xf32>
    %181 = vector.extract_strided_slice %150 {offsets = [0, 16], sizes = [24, 8], strides = [1, 1]} : vector<24x32xf32> to vector<24x8xf32>
    %cst_66 = arith.constant dense<0.000000e+00> : vector<24x8xf32>
    %182 = tpu.matmul %180, %181, %cst_66 {dimension_numbers = #tpu.dot_dimension_numbers<[1], [0], [0], [1], [0, 0, 1, 1], [], []>} : vector<24x24xf32>, vector<24x8xf32>, vector<24x8xf32> -> vector<24x8xf32>
    %183 = vector.extract_strided_slice %173 {offsets = [72, 0], sizes = [24, 24], strides = [1, 1]} : vector<96x24xf32> to vector<24x24xf32>
    %184 = vector.extract_strided_slice %150 {offsets = [0, 24], sizes = [24, 8], strides = [1, 1]} : vector<24x32xf32> to vector<24x8xf32>
    %cst_67 = arith.constant dense<0.000000e+00> : vector<24x8xf32>
    %185 = tpu.matmul %183, %184, %cst_67 {dimension_numbers = #tpu.dot_dimension_numbers<[1], [0], [0], [1], [0, 0, 1, 1], [], []>} : vector<24x24xf32>, vector<24x8xf32>, vector<24x8xf32> -> vector<24x8xf32>
    %186 = tpu.concatenate %176, %179, %182, %185 in 1 : vector<24x8xf32>, vector<24x8xf32>, vector<24x8xf32>, vector<24x8xf32> -> vector<24x32xf32>
    %cst_68 = arith.constant dense<0.000000e+00> : vector<24x32xf32>
    %187 = tpu.matmul %186, %134, %cst_68 {dimension_numbers = #tpu.dot_dimension_numbers<[1], [0], [0], [1], [0, 0, 1, 1], [], []>} : vector<24x32xf32>, vector<32x32xf32>, vector<24x32xf32> -> vector<24x32xf32>
    %188 = vector.broadcast %138 : vector<1x32xf32> to vector<24x32xf32>
    %189 = arith.addf %187, %188 : vector<24x32xf32>
    %190 = arith.addf %132, %189 : vector<24x32xf32>
    %cst_69 = arith.constant dense<0.000000e+00> : vector<24xf32>
    %191 = vector.multi_reduction <add>, %190, %cst_69 [1] : vector<24x32xf32> to vector<24xf32>
    %192 = vector.shape_cast %191 : vector<24xf32> to vector<24x1xf32>
    %cst_70 = arith.constant 3.200000e+01 : f32
    %193 = vector.broadcast %cst_70 : f32 to vector<24x1xf32>
    %194 = arith.divf %192, %193 : vector<24x1xf32>
    %195 = vector.broadcast %194 : vector<24x1xf32> to vector<24x32xf32>
    %196 = arith.subf %190, %195 : vector<24x32xf32>
    %197 = arith.mulf %196, %196 : vector<24x32xf32>
    %cst_71 = arith.constant dense<0.000000e+00> : vector<24xf32>
    %198 = vector.multi_reduction <add>, %197, %cst_71 [1] : vector<24x32xf32> to vector<24xf32>
    %199 = vector.shape_cast %198 : vector<24xf32> to vector<24x1xf32>
    %cst_72 = arith.constant 3.200000e+01 : f32
    %200 = vector.broadcast %cst_72 : f32 to vector<24x1xf32>
    %201 = arith.divf %199, %200 : vector<24x1xf32>
    %202 = vector.broadcast %194 : vector<24x1xf32> to vector<24x32xf32>
    %203 = arith.subf %190, %202 : vector<24x32xf32>
    %cst_73 = arith.constant 9.99999974E-6 : f32
    %204 = vector.broadcast %cst_73 : f32 to vector<24x1xf32>
    %205 = arith.addf %201, %204 : vector<24x1xf32>
    %206 = math.rsqrt %205 : vector<24x1xf32>
    %207 = vector.broadcast %206 : vector<24x1xf32> to vector<24x32xf32>
    %208 = arith.mulf %203, %207 : vector<24x32xf32>
    %209 = vector.broadcast %141 : vector<1x32xf32> to vector<24x32xf32>
    %210 = arith.mulf %208, %209 : vector<24x32xf32>
    %211 = vector.broadcast %142 : vector<1x32xf32> to vector<24x32xf32>
    %212 = arith.addf %210, %211 : vector<24x32xf32>
    %cst_74 = arith.constant dense<0.000000e+00> : vector<24x64xf32>
    %213 = tpu.matmul %212, %135, %cst_74 {dimension_numbers = #tpu.dot_dimension_numbers<[1], [0], [0], [1], [0, 0, 1, 1], [], []>} : vector<24x32xf32>, vector<32x64xf32>, vector<24x64xf32> -> vector<24x64xf32>
    %214 = vector.broadcast %139 : vector<1x64xf32> to vector<24x64xf32>
    %215 = arith.addf %213, %214 : vector<24x64xf32>
    %cst_75 = arith.constant 5.000000e-01 : f32
    %216 = vector.broadcast %cst_75 : f32 to vector<24x64xf32>
    %217 = arith.mulf %216, %215 : vector<24x64xf32>
    %cst_76 = arith.constant 1.41421354 : f32
    %218 = vector.broadcast %cst_76 : f32 to vector<24x64xf32>
    %219 = arith.divf %215, %218 : vector<24x64xf32>
    %220 = math.erf %219 : vector<24x64xf32>
    %cst_77 = arith.constant 1.000000e+00 : f32
    %221 = vector.broadcast %cst_77 : f32 to vector<24x64xf32>
    %222 = arith.addf %221, %220 : vector<24x64xf32>
    %223 = arith.mulf %217, %222 : vector<24x64xf32>
    %cst_78 = arith.constant dense<0.000000e+00> : vector<24x32xf32>
    %224 = tpu.matmul %223, %136, %cst_78 {dimension_numbers = #tpu.dot_dimension_numbers<[1], [0], [0], [1], [0, 0, 1, 1], [], []>} : vector<24x64xf32>, vector<64x32xf32>, vector<24x32xf32> -> vector<24x32xf32>
    %225 = vector.broadcast %140 : vector<1x32xf32> to vector<24x32xf32>
    %226 = arith.addf %224, %225 : vector<24x32xf32>
    %227 = arith.addf %212, %226 : vector<24x32xf32>
    %cst_79 = arith.constant dense<0.000000e+00> : vector<24xf32>
    %228 = vector.multi_reduction <add>, %227, %cst_79 [1] : vector<24x32xf32> to vector<24xf32>
    %229 = vector.shape_cast %228 : vector<24xf32> to vector<24x1xf32>
    %cst_80 = arith.constant 3.200000e+01 : f32
    %230 = vector.broadcast %cst_80 : f32 to vector<24x1xf32>
    %231 = arith.divf %229, %230 : vector<24x1xf32>
    %232 = vector.broadcast %231 : vector<24x1xf32> to vector<24x32xf32>
    %233 = arith.subf %227, %232 : vector<24x32xf32>
    %234 = arith.mulf %233, %233 : vector<24x32xf32>
    %cst_81 = arith.constant dense<0.000000e+00> : vector<24xf32>
    %235 = vector.multi_reduction <add>, %234, %cst_81 [1] : vector<24x32xf32> to vector<24xf32>
    %236 = vector.shape_cast %235 : vector<24xf32> to vector<24x1xf32>
    %cst_82 = arith.constant 3.200000e+01 : f32
    %237 = vector.broadcast %cst_82 : f32 to vector<24x1xf32>
    %238 = arith.divf %236, %237 : vector<24x1xf32>
    %239 = vector.broadcast %231 : vector<24x1xf32> to vector<24x32xf32>
    %240 = arith.subf %227, %239 : vector<24x32xf32>
    %cst_83 = arith.constant 9.99999974E-6 : f32
    %241 = vector.broadcast %cst_83 : f32 to vector<24x1xf32>
    %242 = arith.addf %238, %241 : vector<24x1xf32>
    %243 = math.rsqrt %242 : vector<24x1xf32>
    %244 = vector.broadcast %243 : vector<24x1xf32> to vector<24x32xf32>
    %245 = arith.mulf %240, %244 : vector<24x32xf32>
    %246 = vector.broadcast %143 : vector<1x32xf32> to vector<24x32xf32>
    %247 = arith.mulf %245, %246 : vector<24x32xf32>
    %248 = vector.broadcast %144 : vector<1x32xf32> to vector<24x32xf32>
    %249 = arith.addf %247, %248 : vector<24x32xf32>
    %250 = vector.extract_strided_slice %249 {offsets = [0, 0], sizes = [2, 32], strides = [1, 1]} : vector<24x32xf32> to vector<2x32xf32>
    %c0_84 = arith.constant 0 : index
    %c0_85 = arith.constant 0 : index
    %251 = vector.load %arg2[%c0_84, %c0_85] : memref<2x32xf32, #tpu.memory_space<vmem>>, vector<2x32xf32>
    tpu.vector_store %arg2[%c0_84, %c0_85], %250 {strides = array<i32>} : memref<2x32xf32, #tpu.memory_space<vmem>>, vector<2x32xf32>,
    return
  }
}

</mosaic_0001>

<llo_original>
// kernel: constraint_embedding_forward.1
$region0: #{constraint_embedding_forward.1}
  #allocation0 [shape = 'u32[]', space=smem, size = 0x4, offset = 0x4, fixed_abs, tag = 'smem constant byte address 0x4 - core index']
  #allocation1 [shape = 'u32[144,128]{1,0:T(1,128)}', space=vmem, size = 0x12000, scoped, tag = 'internal scratch']
  %s0 = inlined_call_operand.vmem [shape: f32[24,5], index: 0, kind: input, shape index: {}]
  %s1 = inlined_call_operand.vmem [shape: f32[448,128], index: 1, kind: input, shape index: {}]
  %s2 = inlined_call_operand.hbm [shape: f32[2,32], index: 2, kind: output, shape index: {}]
  %s3 = sld [smem:[#allocation0]]
  $region18: #{constraint_embedding_forward.1} parent=0
    _
  %s5 = ssub.s32 1, %s3
  %s6 = scalar_select 0, %s5, %s3
  $region1: #{constraint_embedding_forward.1} parent=0
    #allocation2 [shape = 'u8[1024]{0}', space=vmem, size = 0x400, scoped, tag = 'output window, operand 0, single buffered']
    #allocation3 [shape = 's32[1]{0}', space=sflag, size = 0x4, scoped, tag = 'scoped memory for constraint_embedding_forward.1']
    %7 = vsyncpa [#allocation3], 0
    // Predicated region
    $region2: #{constraint_embedding_forward.1} parent=1 // pred_check
      _
    $region3: #{constraint_embedding_forward.1} parent=1 // pred_check_branch
      %9 = sbr.rel (0) target = $region5
    $region4: #{constraint_embedding_forward.1} parent=1 // pred_region
      _
    $region5: #{constraint_embedding_forward.1} parent=1 // pred_fallthru
      _
    // Predicated region
    $region6: #{constraint_embedding_forward.1} parent=1 // pred_check
      _
    $region7: #{constraint_embedding_forward.1} parent=1 // pred_check_branch
      %11 = sbr.rel (0) target = $region9
    $region8: #{constraint_embedding_forward.1} parent=1 // pred_region
      _
    $region9: #{constraint_embedding_forward.1} parent=1 // pred_fallthru
      _
    %v12 = vld [vmem:[%s1] sm:$0x1f]
    %v13 = vld [vmem:[%s1 + $0x8] sm:$0x1]
    %v14 = vld [vmem:[%s1 + $0x9] sm:$0x1]
    %v15 = vld [vmem:[%s1 + $0x160] sm:$0xff]
    %v16 = vld [vmem:[%s1 + $0x168] sm:$0xff]
    %v17 = vld [vmem:[%s1 + $0x170] sm:$0xff]
    %v18 = vld [vmem:[%s1 + $0x178] sm:$0xff]
    %v19 = vld [vmem:[%s1 + $0x180] sm:$0xff]
    %v20 = vld [vmem:[%s1 + $0x188] sm:$0xff]
    %v21 = vld [vmem:[%s1 + $0x190] sm:$0xff]
    %v22 = vld [vmem:[%s1 + $0x198] sm:$0xff]
    %v23 = vld [vmem:[%s1 + $0x1a0] sm:$0xff]
    %v24 = vld [vmem:[%s1 + $0x1a8] sm:$0xff]
    %v25 = vld [vmem:[%s1 + $0x1b0] sm:$0xff]
    %v26 = vld [vmem:[%s1 + $0x1b8] sm:$0xff]
    %v27 = vld [vmem:[%s0] sm:$0xff]
    %v28 = vld [vmem:[%s0 + $0x8] sm:$0xff]
    %v29 = vld [vmem:[%s0 + $0x10] sm:$0xff]
    %v30 = vlaneseq
    %v31 = vshrl.u32 %v30, 7
    %v32 = vsub.s32 0, %v31
    %v33 = vrot.slane %v13, %v32
    %vm34 = vcmask 39936
    %v36 = vsel %vm34, %v27, 0
    %v39 = vsel %vm34, %v28, 0
    %v42 = vsel %vm34, %v29, 0
    %vm44 = vcmask 1044480
    %v46 = vsel %vm44, %v12, 0
    %48 = vmatprep.subr.mxu0 0.0
    %49 = vmatpush1.msra.mxu0 %v46
    %50 = vmatprep.subr.mxu0 0.0
    %51 = vmatpush1.msra.mxu0 0.0
    %52 = vmatprep.subr.mxu0 0.0
    %53 = vmatpush1.msra.mxu0 0.0
    %54 = vmatprep.subr.mxu0 0.0
    %55 = vmatpush1.msra.mxu0 0.0
    %56 = vmatprep.subr.mxu0 0.0
    %57 = vmatpush1.msra.mxu0 0.0
    %58 = vmatprep.subr.mxu0 0.0
    %59 = vmatpush1.msra.mxu0 0.0
    %60 = vmatprep.subr.mxu0 0.0
    %61 = vmatpush1.msra.mxu0 0.0
    %62 = vmatprep.subr.mxu0 0.0
    %63 = vmatpush1.msra.mxu0 0.0
    %64 = vmatprep.subr.mxu0 0.0
    %65 = vmatpush1.msra.mxu0 0.0
    %66 = vmatprep.subr.mxu0 0.0
    %67 = vmatpush1.msra.mxu0 0.0
    %68 = vmatprep.subr.mxu0 0.0
    %69 = vmatpush1.msra.mxu0 0.0
    %70 = vmatprep.subr.mxu0 0.0
    %71 = vmatpush1.msra.mxu0 0.0
    %72 = vmatprep.subr.mxu0 0.0
    %73 = vmatpush1.msra.mxu0 0.0
    %74 = vmatprep.subr.mxu0 0.0
    %75 = vmatpush1.msra.mxu0 0.0
    %76 = vmatprep.subr.mxu0 0.0
    %77 = vmatpush1.msra.mxu0 0.0
    %78 = vmatprep.subr.mxu0 0.0
    %79 = vmatpush1.msra.mxu0 0.0
    %80 = vmatprep.subr.mxu0 0.0
    %81 = vmatpush1.msra.mxu0 0.0
    %82 = vmatprep.subr.mxu0 0.0
    %83 = vmatpush1.msra.mxu0 0.0
    %84 = vmatprep.subr.mxu0 0.0
    %85 = vmatpush1.msra.mxu0 0.0
    %86 = vmatprep.subr.mxu0 0.0
    %87 = vmatpush1.msra.mxu0 0.0
    %88 = vmatprep.subr.mxu0 0.0
    %89 = vmatpush1.msra.mxu0 0.0
    %90 = vmatprep.subr.mxu0 0.0
    %91 = vmatpush1.msra.mxu0 0.0
    %92 = vmatprep.subr.mxu0 0.0
    %93 = vmatpush1.msra.mxu0 0.0
    %94 = vmatprep.subr.mxu0 0.0
    %95 = vmatpush1.msra.mxu0 0.0
    %96 = vmatprep.subr.mxu0 0.0
    %97 = vmatpush1.msra.mxu0 0.0
    %98 = vmatprep.subr.mxu0 0.0
    %99 = vmatpush1.msra.mxu0 0.0
    %100 = vmatprep.subr.mxu0 0.0
    %101 = vmatpush1.msra.mxu0 0.0
    %102 = vmatprep.subr.mxu0 0.0
    %103 = vmatpush1.msra.mxu0 0.0
    %104 = vmatprep.subr.mxu0 0.0
    %105 = vmatpush1.msra.mxu0 0.0
    %106 = vmatprep.subr.mxu0 0.0
    %107 = vmatpush1.msra.mxu0 0.0
    %108 = vmatprep.subr.mxu0 0.0
    %109 = vmatpush1.msra.mxu0 0.0
    %110 = vmatprep.subr.mxu0 0.0
    %111 = vmatpush1.msra.mxu0 0.0
    %112 = vmatprep.mubr.f32.mxu0 0.0
    %113 = vmatmul.mubr.f32.gmra.mrb[0].mxu0 %v36
    %v114 = vpop.f32.mrb[0].mxu0
    %v115 = vadd.f32 %v33, %v114
    %v116 = vpop.f32.mrb[0].mxu0
    %117 = vmatprep.mubr.f32.mxu0 0.0
    %118 = vmatmul.mubr.f32.gmra.mrb[0].mxu0 %v39
    %v119 = vpop.f32.mrb[0].mxu0
    %v120 = vadd.f32 %v33, %v119
    %v121 = vpop.f32.mrb[0].mxu0
    %122 = vmatprep.mubr.f32.mxu0 0.0
    %123 = vmatmul.mubr.f32.gmra.mrb[0].mxu0 %v42
    %v124 = vpop.f32.mrb[0].mxu0
    %v125 = vadd.f32 %v33, %v124
    %v126 = vpop.f32.mrb[0].mxu0
    %127 = vdwg.mxu0
    %v128 = vlaneseq
    %v129 = vshrl.u32 %v128, 7
    %v130 = vadd.s32 %v129, 8
    %v131 = vadd.s32 %v129, 16
    %vm132 = vcmp.lt.s32.totalorder %v129, 2
    %vm133 = vcmp.lt.s32.totalorder %v130, 2
    %vm134 = vcmp.lt.s32.totalorder %v131, 2
    %v135 = vsel %vm132, 1, 0
    %v136 = vsel %vm133, 1, 0
    %v137 = vsel %vm134, 1, 0
    %vm138 = vcmp.eq.s32.totalorder %v135, 1
    %vm139 = vcmp.eq.s32.totalorder %v136, 1
    %vm140 = vcmp.eq.s32.totalorder %v137, 1
    %v141 = vlaneseq
    %v142 = vshrl.u32 %v141, 7
    %v143 = vsub.s32 0, %v142
    %v144 = vrot.slane %v14, %v143
    %v145 = vsel %vm138, %v144, %v115
    %v146 = vsel %vm139, %v144, %v120
    %v147 = vsel %vm140, %v144, %v125
    %v148 = vld [vmem:[%s1 + $0x20] sm:$0xff]
    %v149 = vld [vmem:[%s1 + $0x28] sm:$0xff]
    %v150 = vld [vmem:[%s1 + $0x30] sm:$0xff]
    %v151 = vld [vmem:[%s1 + $0x38] sm:$0xff]
    %v152 = vld [vmem:[%s1 + $0x40] sm:$0xff]
    %v153 = vld [vmem:[%s1 + $0x48] sm:$0xff]
    %v154 = vld [vmem:[%s1 + $0x50] sm:$0xff]
    %v155 = vld [vmem:[%s1 + $0x58] sm:$0xff]
    %v156 = vld [vmem:[%s1 + $0x60] sm:$0xff]
    %v157 = vld [vmem:[%s1 + $0x68] sm:$0xff]
    %v158 = vld [vmem:[%s1 + $0x70] sm:$0xff]
    %v159 = vld [vmem:[%s1 + $0x78] sm:$0xff]
    %v160 = vld [vmem:[%s1 + $0x80] sm:$0xff]
    %v161 = vld [vmem:[%s1 + $0x88] sm:$0xff]
    %v162 = vld [vmem:[%s1 + $0x90] sm:$0xff]
    %v163 = vld [vmem:[%s1 + $0x98] sm:$0xff]
    %v164 = vld [vmem:[%s1 + $0xa0] sm:$0xff]
    %v165 = vld [vmem:[%s1 + $0xa8] sm:$0xff]
    %v166 = vld [vmem:[%s1 + $0xb0] sm:$0xff]
    %v167 = vld [vmem:[%s1 + $0xb8] sm:$0xff]
    %v168 = vld [vmem:[%s1 + $0xa] sm:$0x1]
    %v169 = vld [vmem:[%s1 + $0xb] sm:$0x1]
    %v170 = vld [vmem:[%s1 + $0xc] sm:$0x1]
    %v171 = vld [vmem:[%s1 + $0xd] sm:$0x1]
    %v172 = vld [vmem:[%s1 + $0xe] sm:$0x1]
    %v173 = vld [vmem:[%s1 + $0xf] sm:$0x1]
    %v174 = vld [vmem:[%s1 + $0x10] sm:$0x1]
    %v175 = vld [vmem:[%s1 + $0x11] sm:$0x1]
    %v176 = vlaneseq
    %v177 = vshrl.u32 %v176, 7
    %v178 = vsub.s32 0, %v177
    %v179 = vrot.slane %v168, %v178
    %vm180 = vcmask 261120
    %v182 = vsel %vm180, %v145, 0
    %v185 = vsel %vm180, %v146, 0
    %v188 = vsel %vm180, %v147, 0
    %190 = vmatprep.subr.mxu0 0.0
    %191 = vmatpush1.msra.mxu0 %v148
    %192 = vmatprep.subr.mxu0 0.0
    %193 = vmatpush1.msra.mxu0 %v149
    %194 = vmatprep.subr.mxu0 0.0
    %195 = vmatpush1.msra.mxu0 %v150
    %196 = vmatprep.subr.mxu0 0.0
    %197 = vmatpush1.msra.mxu0 %v151
    %198 = vmatprep.subr.mxu0 0.0
    %199 = vmatpush1.msra.mxu0 0.0
    %200 = vmatprep.subr.mxu0 0.0
    %201 = vmatpush1.msra.mxu0 0.0
    %202 = vmatprep.subr.mxu0 0.0
    %203 = vmatpush1.msra.mxu0 0.0
    %204 = vmatprep.subr.mxu0 0.0
    %205 = vmatpush1.msra.mxu0 0.0
    %206 = vmatprep.subr.mxu0 0.0
    %207 = vmatpush1.msra.mxu0 0.0
    %208 = vmatprep.subr.mxu0 0.0
    %209 = vmatpush1.msra.mxu0 0.0
    %210 = vmatprep.subr.mxu0 0.0
    %211 = vmatpush1.msra.mxu0 0.0
    %212 = vmatprep.subr.mxu0 0.0
    %213 = vmatpush1.msra.mxu0 0.0
    %214 = vmatprep.subr.mxu0 0.0
    %215 = vmatpush1.msra.mxu0 0.0
    %216 = vmatprep.subr.mxu0 0.0
    %217 = vmatpush1.msra.mxu0 0.0
    %218 = vmatprep.subr.mxu0 0.0
    %219 = vmatpush1.msra.mxu0 0.0
    %220 = vmatprep.subr.mxu0 0.0
    %221 = vmatpush1.msra.mxu0 0.0
    %222 = vmatprep.subr.mxu0 0.0
    %223 = vmatpush1.msra.mxu0 0.0
    %224 = vmatprep.subr.mxu0 0.0
    %225 = vmatpush1.msra.mxu0 0.0
    %226 = vmatprep.subr.mxu0 0.0
    %227 = vmatpush1.msra.mxu0 0.0
    %228 = vmatprep.subr.mxu0 0.0
    %229 = vmatpush1.msra.mxu0 0.0
    %230 = vmatprep.subr.mxu0 0.0
    %231 = vmatpush1.msra.mxu0 0.0
    %232 = vmatprep.subr.mxu0 0.0
    %233 = vmatpush1.msra.mxu0 0.0
    %234 = vmatprep.subr.mxu0 0.0
    %235 = vmatpush1.msra.mxu0 0.0
    %236 = vmatprep.subr.mxu0 0.0
    %237 = vmatpush1.msra.mxu0 0.0
    %238 = vmatprep.subr.mxu0 0.0
    %239 = vmatpush1.msra.mxu0 0.0
    %240 = vmatprep.subr.mxu0 0.0
    %241 = vmatpush1.msra.mxu0 0.0
    %242 = vmatprep.subr.mxu0 0.0
    %243 = vmatpush1.msra.mxu0 0.0
    %244 = vmatprep.subr.mxu0 0.0
    %245 = vmatpush1.msra.mxu0 0.0
    %246 = vmatprep.subr.mxu0 0.0
    %247 = vmatpush1.msra.mxu0 0.0
    %248 = vmatprep.subr.mxu0 0.0
    %249 = vmatpush1.msra.mxu0 0.0
    %250 = vmatprep.subr.mxu0 0.0
    %251 = vmatpush1.msra.mxu0 0.0
    %252 = vmatprep.subr.mxu0 0.0
    %253 = vmatpush1.msra.mxu0 0.0
    %254 = vmatprep.mubr.f32.mxu0 0.0
    %255 = vmatmul.mubr.f32.gmra.mrb[0].mxu0 %v182
    %v256 = vpop.f32.mrb[0].mxu0
    %v257 = vadd.f32 %v179, %v256
    %v258 = vpop.f32.mrb[0].mxu0
    %259 = vmatprep.mubr.f32.mxu0 0.0
    %260 = vmatmul.mubr.f32.gmra.mrb[0].mxu0 %v185
    %v261 = vpop.f32.mrb[0].mxu0
    %v262 = vadd.f32 %v179, %v261
    %v263 = vpop.f32.mrb[0].mxu0
    %264 = vmatprep.mubr.f32.mxu0 0.0
    %265 = vmatmul.mubr.f32.gmra.mrb[0].mxu0 %v188
    %v266 = vpop.f32.mrb[0].mxu0
    %v267 = vadd.f32 %v179, %v266
    %v268 = vpop.f32.mrb[0].mxu0
    %269 = vdwg.mxu0
    %273 = vrot.lane.b32.xlu0 %v257, 96
    %v274 = vpop.permute.xlu0 %273
    %275 = vrot.lane.b32.xlu0 %v262, 96
    %v276 = vpop.permute.xlu0 %275
    %277 = vrot.lane.b32.xlu0 %v267, 96
    %v278 = vpop.permute.xlu0 %277
    %vm279 = vcmask 64512
    %v280 = vsel %vm279, %v257, 0
    %v282 = vsel %vm279, %v262, 0
    %v284 = vsel %vm279, %v267, 0
    %v286 = vsel %vm279, %v274, 0
    %v288 = vsel %vm279, %v276, 0
    %v290 = vsel %vm279, %v278, 0
    %292 = vmatprep.subr.mxu0 0.0
    %293 = vmatpush1.xpose.msra.mxu0 %v286
    %294 = vmatprep.subr.mxu0 0.0
    %295 = vmatpush1.xpose.msra.mxu0 %v288
    %296 = vmatprep.subr.mxu0 0.0
    %297 = vmatpush1.xpose.msra.mxu0 %v290
    %298 = vmatprep.subr.mxu0 0.0
    %299 = vmatpush1.xpose.msra.mxu0 0.0
    %300 = vmatprep.subr.mxu0 0.0
    %301 = vmatpush1.xpose.msra.mxu0 0.0
    %302 = vmatprep.subr.mxu0 0.0
    %303 = vmatpush1.xpose.msra.mxu0 0.0
    %304 = vmatprep.subr.mxu0 0.0
    %305 = vmatpush1.xpose.msra.mxu0 0.0
    %306 = vmatprep.subr.mxu0 0.0
    %307 = vmatpush1.xpose.msra.mxu0 0.0
    %308 = vmatprep.subr.mxu0 0.0
    %309 = vmatpush1.xpose.msra.mxu0 0.0
    %310 = vmatprep.subr.mxu0 0.0
    %311 = vmatpush1.xpose.msra.mxu0 0.0
    %312 = vmatprep.subr.mxu0 0.0
    %313 = vmatpush1.xpose.msra.mxu0 0.0
    %314 = vmatprep.subr.mxu0 0.0
    %315 = vmatpush1.xpose.msra.mxu0 0.0
    %316 = vmatprep.subr.mxu0 0.0
    %317 = vmatpush1.xpose.msra.mxu0 0.0
    %318 = vmatprep.subr.mxu0 0.0
    %319 = vmatpush1.xpose.msra.mxu0 0.0
    %320 = vmatprep.subr.mxu0 0.0
    %321 = vmatpush1.xpose.msra.mxu0 0.0
    %322 = vmatprep.subr.mxu0 0.0
    %323 = vmatpush1.xpose.msra.mxu0 0.0
    %324 = vmatprep.subr.mxu0 0.0
    %325 = vmatpush1.xpose.msra.mxu0 0.0
    %326 = vmatprep.subr.mxu0 0.0
    %327 = vmatpush1.xpose.msra.mxu0 0.0
    %328 = vmatprep.subr.mxu0 0.0
    %329 = vmatpush1.xpose.msra.mxu0 0.0
    %330 = vmatprep.subr.mxu0 0.0
    %331 = vmatpush1.xpose.msra.mxu0 0.0
    %332 = vmatprep.subr.mxu0 0.0
    %333 = vmatpush1.xpose.msra.mxu0 0.0
    %334 = vmatprep.subr.mxu0 0.0
    %335 = vmatpush1.xpose.msra.mxu0 0.0
    %336 = vmatprep.subr.mxu0 0.0
    %337 = vmatpush1.xpose.msra.mxu0 0.0
    %338 = vmatprep.subr.mxu0 0.0
    %339 = vmatpush1.xpose.msra.mxu0 0.0
    %340 = vmatprep.subr.mxu0 0.0
    %341 = vmatpush1.xpose.msra.mxu0 0.0
    %342 = vmatprep.subr.mxu0 0.0
    %343 = vmatpush1.xpose.msra.mxu0 0.0
    %344 = vmatprep.subr.mxu0 0.0
    %345 = vmatpush1.xpose.msra.mxu0 0.0
    %346 = vmatprep.subr.mxu0 0.0
    %347 = vmatpush1.xpose.msra.mxu0 0.0
    %348 = vmatprep.subr.mxu0 0.0
    %349 = vmatpush1.xpose.msra.mxu0 0.0
    %350 = vmatprep.subr.mxu0 0.0
    %351 = vmatpush1.xpose.msra.mxu0 0.0
    %352 = vmatprep.subr.mxu0 0.0
    %353 = vmatpush1.xpose.msra.mxu0 0.0
    %354 = vmatprep.subr.mxu0 0.0
    %355 = vmatpush1.xpose.msra.mxu0 0.0
    %356 = vmatprep.mubr.f32.mxu0 0.0
    %357 = vmatmul.mubr.f32.gmra.mrb[0].mxu0 %v280
    %v358 = vpop.f32.mrb[0].mxu0
    %v359 = vadd.f32 0.0, %v358
    %v360 = vpop.f32.mrb[0].mxu0
    %361 = vmatprep.mubr.f32.mxu0 0.0
    %362 = vmatmul.mubr.f32.gmra.mrb[0].mxu0 %v282
    %v363 = vpop.f32.mrb[0].mxu0
    %v364 = vadd.f32 0.0, %v363
    %v365 = vpop.f32.mrb[0].mxu0
    %366 = vmatprep.mubr.f32.mxu0 0.0
    %367 = vmatmul.mubr.f32.gmra.mrb[0].mxu0 %v284
    %v368 = vpop.f32.mrb[0].mxu0
    %v369 = vadd.f32 0.0, %v368
    %v370 = vpop.f32.mrb[0].mxu0
    %371 = vdwg.mxu0
    %372 = vrot.lane.b32.xlu0 %v257, 120
    %v373 = vpop.permute.xlu0 %372
    %374 = vrot.lane.b32.xlu0 %v262, 120
    %v375 = vpop.permute.xlu0 %374
    %376 = vrot.lane.b32.xlu0 %v267, 120
    %v377 = vpop.permute.xlu0 %376
    %378 = vrot.lane.b32.xlu0 %v257, 88
    %v379 = vpop.permute.xlu0 %378
    %380 = vrot.lane.b32.xlu0 %v262, 88
    %v381 = vpop.permute.xlu0 %380
    %382 = vrot.lane.b32.xlu0 %v267, 88
    %v383 = vpop.permute.xlu0 %382
    %v384 = vsel %vm279, %v373, 0
    %v386 = vsel %vm279, %v375, 0
    %v388 = vsel %vm279, %v377, 0
    %v390 = vsel %vm279, %v379, 0
    %v392 = vsel %vm279, %v381, 0
    %v394 = vsel %vm279, %v383, 0
    %396 = vmatprep.subr.mxu0 0.0
    %397 = vmatpush1.xpose.msra.mxu0 %v390
    %398 = vmatprep.subr.mxu0 0.0
    %399 = vmatpush1.xpose.msra.mxu0 %v392
    %400 = vmatprep.subr.mxu0 0.0
    %401 = vmatpush1.xpose.msra.mxu0 %v394
    %402 = vmatprep.subr.mxu0 0.0
    %403 = vmatpush1.xpose.msra.mxu0 0.0
    %404 = vmatprep.subr.mxu0 0.0
    %405 = vmatpush1.xpose.msra.mxu0 0.0
    %406 = vmatprep.subr.mxu0 0.0
    %407 = vmatpush1.xpose.msra.mxu0 0.0
    %408 = vmatprep.subr.mxu0 0.0
    %409 = vmatpush1.xpose.msra.mxu0 0.0
    %410 = vmatprep.subr.mxu0 0.0
    %411 = vmatpush1.xpose.msra.mxu0 0.0
    %412 = vmatprep.subr.mxu0 0.0
    %413 = vmatpush1.xpose.msra.mxu0 0.0
    %414 = vmatprep.subr.mxu0 0.0
    %415 = vmatpush1.xpose.msra.mxu0 0.0
    %416 = vmatprep.subr.mxu0 0.0
    %417 = vmatpush1.xpose.msra.mxu0 0.0
    %418 = vmatprep.subr.mxu0 0.0
    %419 = vmatpush1.xpose.msra.mxu0 0.0
    %420 = vmatprep.subr.mxu0 0.0
    %421 = vmatpush1.xpose.msra.mxu0 0.0
    %422 = vmatprep.subr.mxu0 0.0
    %423 = vmatpush1.xpose.msra.mxu0 0.0
    %424 = vmatprep.subr.mxu0 0.0
    %425 = vmatpush1.xpose.msra.mxu0 0.0
    %426 = vmatprep.subr.mxu0 0.0
    %427 = vmatpush1.xpose.msra.mxu0 0.0
    %428 = vmatprep.subr.mxu0 0.0
    %429 = vmatpush1.xpose.msra.mxu0 0.0
    %430 = vmatprep.subr.mxu0 0.0
    %431 = vmatpush1.xpose.msra.mxu0 0.0
    %432 = vmatprep.subr.mxu0 0.0
    %433 = vmatpush1.xpose.msra.mxu0 0.0
    %434 = vmatprep.subr.mxu0 0.0
    %435 = vmatpush1.xpose.msra.mxu0 0.0
    %436 = vmatprep.subr.mxu0 0.0
    %437 = vmatpush1.xpose.msra.mxu0 0.0
    %438 = vmatprep.subr.mxu0 0.0
    %439 = vmatpush1.xpose.msra.mxu0 0.0
    %440 = vmatprep.subr.mxu0 0.0
    %441 = vmatpush1.xpose.msra.mxu0 0.0
    %442 = vmatprep.subr.mxu0 0.0
    %443 = vmatpush1.xpose.msra.mxu0 0.0
    %444 = vmatprep.subr.mxu0 0.0
    %445 = vmatpush1.xpose.msra.mxu0 0.0
    %446 = vmatprep.subr.mxu0 0.0
    %447 = vmatpush1.xpose.msra.mxu0 0.0
    %448 = vmatprep.subr.mxu0 0.0
    %449 = vmatpush1.xpose.msra.mxu0 0.0
    %450 = vmatprep.subr.mxu0 0.0
    %451 = vmatpush1.xpose.msra.mxu0 0.0
    %452 = vmatprep.subr.mxu0 0.0
    %453 = vmatpush1.xpose.msra.mxu0 0.0
    %454 = vmatprep.subr.mxu0 0.0
    %455 = vmatpush1.xpose.msra.mxu0 0.0
    %456 = vmatprep.subr.mxu0 0.0
    %457 = vmatpush1.xpose.msra.mxu0 0.0
    %458 = vmatprep.subr.mxu0 0.0
    %459 = vmatpush1.xpose.msra.mxu0 0.0
    %460 = vmatprep.mubr.f32.mxu0 0.0
    %461 = vmatmul.mubr.f32.gmra.mrb[0].mxu0 %v384
    %v462 = vpop.f32.mrb[0].mxu0
    %v463 = vadd.f32 0.0, %v462
    %v464 = vpop.f32.mrb[0].mxu0
    %465 = vmatprep.mubr.f32.mxu0 0.0
    %466 = vmatmul.mubr.f32.gmra.mrb[0].mxu0 %v386
    %v467 = vpop.f32.mrb[0].mxu0
    %v468 = vadd.f32 0.0, %v467
    %v469 = vpop.f32.mrb[0].mxu0
    %470 = vmatprep.mubr.f32.mxu0 0.0
    %471 = vmatmul.mubr.f32.gmra.mrb[0].mxu0 %v388
    %v472 = vpop.f32.mrb[0].mxu0
    %v473 = vadd.f32 0.0, %v472
    %v474 = vpop.f32.mrb[0].mxu0
    %475 = vdwg.mxu0
    %476 = vrot.lane.b32.xlu0 %v257, 112
    %v477 = vpop.permute.xlu0 %476
    %478 = vrot.lane.b32.xlu0 %v262, 112
    %v479 = vpop.permute.xlu0 %478
    %480 = vrot.lane.b32.xlu0 %v267, 112
    %v481 = vpop.permute.xlu0 %480
    %482 = vrot.lane.b32.xlu0 %v257, 80
    %v483 = vpop.permute.xlu0 %482
    %484 = vrot.lane.b32.xlu0 %v262, 80
    %v485 = vpop.permute.xlu0 %484
    %486 = vrot.lane.b32.xlu0 %v267, 80
    %v487 = vpop.permute.xlu0 %486
    %v488 = vsel %vm279, %v477, 0
    %v490 = vsel %vm279, %v479, 0
    %v492 = vsel %vm279, %v481, 0
    %v494 = vsel %vm279, %v483, 0
    %v496 = vsel %vm279, %v485, 0
    %v498 = vsel %vm279, %v487, 0
    %500 = vmatprep.subr.mxu0 0.0
    %501 = vmatpush1.xpose.msra.mxu0 %v494
    %502 = vmatprep.subr.mxu0 0.0
    %503 = vmatpush1.xpose.msra.mxu0 %v496
    %504 = vmatprep.subr.mxu0 0.0
    %505 = vmatpush1.xpose.msra.mxu0 %v498
    %506 = vmatprep.subr.mxu0 0.0
    %507 = vmatpush1.xpose.msra.mxu0 0.0
    %508 = vmatprep.subr.mxu0 0.0
    %509 = vmatpush1.xpose.msra.mxu0 0.0
    %510 = vmatprep.subr.mxu0 0.0
    %511 = vmatpush1.xpose.msra.mxu0 0.0
    %512 = vmatprep.subr.mxu0 0.0
    %513 = vmatpush1.xpose.msra.mxu0 0.0
    %514 = vmatprep.subr.mxu0 0.0
    %515 = vmatpush1.xpose.msra.mxu0 0.0
    %516 = vmatprep.subr.mxu0 0.0
    %517 = vmatpush1.xpose.msra.mxu0 0.0
    %518 = vmatprep.subr.mxu0 0.0
    %519 = vmatpush1.xpose.msra.mxu0 0.0
    %520 = vmatprep.subr.mxu0 0.0
    %521 = vmatpush1.xpose.msra.mxu0 0.0
    %522 = vmatprep.subr.mxu0 0.0
    %523 = vmatpush1.xpose.msra.mxu0 0.0
    %524 = vmatprep.subr.mxu0 0.0
    %525 = vmatpush1.xpose.msra.mxu0 0.0
    %526 = vmatprep.subr.mxu0 0.0
    %527 = vmatpush1.xpose.msra.mxu0 0.0
    %528 = vmatprep.subr.mxu0 0.0
    %529 = vmatpush1.xpose.msra.mxu0 0.0
    %530 = vmatprep.subr.mxu0 0.0
    %531 = vmatpush1.xpose.msra.mxu0 0.0
    %532 = vmatprep.subr.mxu0 0.0
    %533 = vmatpush1.xpose.msra.mxu0 0.0
    %534 = vmatprep.subr.mxu0 0.0
    %535 = vmatpush1.xpose.msra.mxu0 0.0
    %536 = vmatprep.subr.mxu0 0.0
    %537 = vmatpush1.xpose.msra.mxu0 0.0
    %538 = vmatprep.subr.mxu0 0.0
    %539 = vmatpush1.xpose.msra.mxu0 0.0
    %540 = vmatprep.subr.mxu0 0.0
    %541 = vmatpush1.xpose.msra.mxu0 0.0
    %542 = vmatprep.subr.mxu0 0.0
    %543 = vmatpush1.xpose.msra.mxu0 0.0
    %544 = vmatprep.subr.mxu0 0.0
    %545 = vmatpush1.xpose.msra.mxu0 0.0
    %546 = vmatprep.subr.mxu0 0.0
    %547 = vmatpush1.xpose.msra.mxu0 0.0
    %548 = vmatprep.subr.mxu0 0.0
    %549 = vmatpush1.xpose.msra.mxu0 0.0
    %550 = vmatprep.subr.mxu0 0.0
    %551 = vmatpush1.xpose.msra.mxu0 0.0
    %552 = vmatprep.subr.mxu0 0.0
    %553 = vmatpush1.xpose.msra.mxu0 0.0
    %554 = vmatprep.subr.mxu0 0.0
    %555 = vmatpush1.xpose.msra.mxu0 0.0
    %556 = vmatprep.subr.mxu0 0.0
    %557 = vmatpush1.xpose.msra.mxu0 0.0
    %558 = vmatprep.subr.mxu0 0.0
    %559 = vmatpush1.xpose.msra.mxu0 0.0
    %560 = vmatprep.subr.mxu0 0.0
    %561 = vmatpush1.xpose.msra.mxu0 0.0
    %562 = vmatprep.subr.mxu0 0.0
    %563 = vmatpush1.xpose.msra.mxu0 0.0
    %564 = vmatprep.mubr.f32.mxu0 0.0
    %565 = vmatmul.mubr.f32.gmra.mrb[0].mxu0 %v488
    %v566 = vpop.f32.mrb[0].mxu0
    %v567 = vadd.f32 0.0, %v566
    %v568 = vpop.f32.mrb[0].mxu0
    %569 = vmatprep.mubr.f32.mxu0 0.0
    %570 = vmatmul.mubr.f32.gmra.mrb[0].mxu0 %v490
    %v571 = vpop.f32.mrb[0].mxu0
    %v572 = vadd.f32 0.0, %v571
    %v573 = vpop.f32.mrb[0].mxu0
    %574 = vmatprep.mubr.f32.mxu0 0.0
    %575 = vmatmul.mubr.f32.gmra.mrb[0].mxu0 %v492
    %v576 = vpop.f32.mrb[0].mxu0
    %v577 = vadd.f32 0.0, %v576
    %v578 = vpop.f32.mrb[0].mxu0
    %579 = vdwg.mxu0
    %580 = vrot.lane.b32.xlu0 %v257, 104
    %v581 = vpop.permute.xlu0 %580
    %582 = vrot.lane.b32.xlu0 %v262, 104
    %v583 = vpop.permute.xlu0 %582
    %584 = vrot.lane.b32.xlu0 %v267, 104
    %v585 = vpop.permute.xlu0 %584
    %586 = vrot.lane.b32.xlu0 %v257, 72
    %v587 = vpop.permute.xlu0 %586
    %588 = vrot.lane.b32.xlu0 %v262, 72
    %v589 = vpop.permute.xlu0 %588
    %590 = vrot.lane.b32.xlu0 %v267, 72
    %v591 = vpop.permute.xlu0 %590
    %v592 = vsel %vm279, %v581, 0
    %v594 = vsel %vm279, %v583, 0
    %v596 = vsel %vm279, %v585, 0
    %v598 = vsel %vm279, %v587, 0
    %v600 = vsel %vm279, %v589, 0
    %v602 = vsel %vm279, %v591, 0
    %604 = vmatprep.subr.mxu0 0.0
    %605 = vmatpush1.xpose.msra.mxu0 %v598
    %606 = vmatprep.subr.mxu0 0.0
    %607 = vmatpush1.xpose.msra.mxu0 %v600
    %608 = vmatprep.subr.mxu0 0.0
    %609 = vmatpush1.xpose.msra.mxu0 %v602
    %610 = vmatprep.subr.mxu0 0.0
    %611 = vmatpush1.xpose.msra.mxu0 0.0
    %612 = vmatprep.subr.mxu0 0.0
    %613 = vmatpush1.xpose.msra.mxu0 0.0
    %614 = vmatprep.subr.mxu0 0.0
    %615 = vmatpush1.xpose.msra.mxu0 0.0
    %616 = vmatprep.subr.mxu0 0.0
    %617 = vmatpush1.xpose.msra.mxu0 0.0
    %618 = vmatprep.subr.mxu0 0.0
    %619 = vmatpush1.xpose.msra.mxu0 0.0
    %620 = vmatprep.subr.mxu0 0.0
    %621 = vmatpush1.xpose.msra.mxu0 0.0
    %622 = vmatprep.subr.mxu0 0.0
    %623 = vmatpush1.xpose.msra.mxu0 0.0
    %624 = vmatprep.subr.mxu0 0.0
    %625 = vmatpush1.xpose.msra.mxu0 0.0
    %626 = vmatprep.subr.mxu0 0.0
    %627 = vmatpush1.xpose.msra.mxu0 0.0
    %628 = vmatprep.subr.mxu0 0.0
    %629 = vmatpush1.xpose.msra.mxu0 0.0
    %630 = vmatprep.subr.mxu0 0.0
    %631 = vmatpush1.xpose.msra.mxu0 0.0
    %632 = vmatprep.subr.mxu0 0.0
    %633 = vmatpush1.xpose.msra.mxu0 0.0
    %634 = vmatprep.subr.mxu0 0.0
    %635 = vmatpush1.xpose.msra.mxu0 0.0
    %636 = vmatprep.subr.mxu0 0.0
    %637 = vmatpush1.xpose.msra.mxu0 0.0
    %638 = vmatprep.subr.mxu0 0.0
    %639 = vmatpush1.xpose.msra.mxu0 0.0
    %640 = vmatprep.subr.mxu0 0.0
    %641 = vmatpush1.xpose.msra.mxu0 0.0
    %642 = vmatprep.subr.mxu0 0.0
    %643 = vmatpush1.xpose.msra.mxu0 0.0
    %644 = vmatprep.subr.mxu0 0.0
    %645 = vmatpush1.xpose.msra.mxu0 0.0
    %646 = vmatprep.subr.mxu0 0.0
    %647 = vmatpush1.xpose.msra.mxu0 0.0
    %648 = vmatprep.subr.mxu0 0.0
    %649 = vmatpush1.xpose.msra.mxu0 0.0
    %650 = vmatprep.subr.mxu0 0.0
    %651 = vmatpush1.xpose.msra.mxu0 0.0
    %652 = vmatprep.subr.mxu0 0.0
    %653 = vmatpush1.xpose.msra.mxu0 0.0
    %654 = vmatprep.subr.mxu0 0.0
    %655 = vmatpush1.xpose.msra.mxu0 0.0
    %656 = vmatprep.subr.mxu0 0.0
    %657 = vmatpush1.xpose.msra.mxu0 0.0
    %658 = vmatprep.subr.mxu0 0.0
    %659 = vmatpush1.xpose.msra.mxu0 0.0
    %660 = vmatprep.subr.mxu0 0.0
    %661 = vmatpush1.xpose.msra.mxu0 0.0
    %662 = vmatprep.subr.mxu0 0.0
    %663 = vmatpush1.xpose.msra.mxu0 0.0
    %664 = vmatprep.subr.mxu0 0.0
    %665 = vmatpush1.xpose.msra.mxu0 0.0
    %666 = vmatprep.subr.mxu0 0.0
    %667 = vmatpush1.xpose.msra.mxu0 0.0
    %668 = vmatprep.mubr.f32.mxu0 0.0
    %669 = vmatmul.mubr.f32.gmra.mrb[0].mxu0 %v592
    %v670 = vpop.f32.mrb[0].mxu0
    %v671 = vadd.f32 0.0, %v670
    %v672 = vpop.f32.mrb[0].mxu0
    %673 = vmatprep.mubr.f32.mxu0 0.0
    %674 = vmatmul.mubr.f32.gmra.mrb[0].mxu0 %v594
    %v675 = vpop.f32.mrb[0].mxu0
    %v676 = vadd.f32 0.0, %v675
    %v677 = vpop.f32.mrb[0].mxu0
    %678 = vmatprep.mubr.f32.mxu0 0.0
    %679 = vmatmul.mubr.f32.gmra.mrb[0].mxu0 %v596
    %v680 = vpop.f32.mrb[0].mxu0
    %v681 = vadd.f32 0.0, %v680
    %v682 = vpop.f32.mrb[0].mxu0
    %683 = vdwg.mxu0
    %v684 = vadd.f32 %v359, %v15
    %v685 = vadd.f32 %v364, %v16
    %v686 = vadd.f32 %v369, %v17
    %v687 = vadd.f32 %v463, %v18
    %v688 = vadd.f32 %v468, %v19
    %v689 = vadd.f32 %v473, %v20
    %v690 = vadd.f32 %v567, %v21
    %v691 = vadd.f32 %v572, %v22
    %v692 = vadd.f32 %v577, %v23
    %v693 = vadd.f32 %v671, %v24
    %v694 = vadd.f32 %v676, %v25
    %v695 = vadd.f32 %v681, %v26
    %vm696 = vcmask 195584
    %v697 = vsel %vm696, %v684, -inf
    %698 = vmax.xlane.f32.xlu0 %v697
    %v699 = vpop.xlane.xlu0 %698
    %v700 = vsel %vm696, %v685, -inf
    %701 = vmax.xlane.f32.xlu0 %v700
    %v702 = vpop.xlane.xlu0 %701
    %v703 = vsel %vm696, %v686, -inf
    %704 = vmax.xlane.f32.xlu0 %v703
    %v705 = vpop.xlane.xlu0 %704
    %v706 = vsel %vm696, %v687, -inf
    %707 = vmax.xlane.f32.xlu0 %v706
    %v708 = vpop.xlane.xlu0 %707
    %v709 = vsel %vm696, %v688, -inf
    %710 = vmax.xlane.f32.xlu0 %v709
    %v711 = vpop.xlane.xlu0 %710
    %v712 = vsel %vm696, %v689, -inf
    %713 = vmax.xlane.f32.xlu0 %v712
    %v714 = vpop.xlane.xlu0 %713
    %v715 = vsel %vm696, %v690, -inf
    %716 = vmax.xlane.f32.xlu0 %v715
    %v717 = vpop.xlane.xlu0 %716
    %v718 = vsel %vm696, %v691, -inf
    %719 = vmax.xlane.f32.xlu0 %v718
    %v720 = vpop.xlane.xlu0 %719
    %v721 = vsel %vm696, %v692, -inf
    %722 = vmax.xlane.f32.xlu0 %v721
    %v723 = vpop.xlane.xlu0 %722
    %v724 = vsel %vm696, %v693, -inf
    %725 = vmax.xlane.f32.xlu0 %v724
    %v726 = vpop.xlane.xlu0 %725
    %v727 = vsel %vm696, %v694, -inf
    %728 = vmax.xlane.f32.xlu0 %v727
    %v729 = vpop.xlane.xlu0 %728
    %v730 = vsel %vm696, %v695, -inf
    %731 = vmax.xlane.f32.xlu0 %v730
    %v732 = vpop.xlane.xlu0 %731
    %v733 = vsub.f32 %v684, %v699
    %v734 = vsub.f32 %v685, %v702
    %v735 = vsub.f32 %v686, %v705
    %v736 = vsub.f32 %v687, %v708
    %v737 = vsub.f32 %v688, %v711
    %v738 = vsub.f32 %v689, %v714
    %v739 = vsub.f32 %v690, %v717
    %v740 = vsub.f32 %v691, %v720
    %v741 = vsub.f32 %v692, %v723
    %v742 = vsub.f32 %v693, %v726
    %v743 = vsub.f32 %v694, %v729
    %v744 = vsub.f32 %v695, %v732
    %v745 = vmul.f32 %v733, 1.442695
    %v746 = vpow.pop %v745
    %v747 = vmul.f32 %v734, 1.442695
    %v748 = vpow.pop %v747
    %v749 = vmul.f32 %v735, 1.442695
    %v750 = vpow.pop %v749
    %v751 = vmul.f32 %v736, 1.442695
    %v752 = vpow.pop %v751
    %v753 = vmul.f32 %v737, 1.442695
    %v754 = vpow.pop %v753
    %v755 = vmul.f32 %v738, 1.442695
    %v756 = vpow.pop %v755
    %v757 = vmul.f32 %v739, 1.442695
    %v758 = vpow.pop %v757
    %v759 = vmul.f32 %v740, 1.442695
    %v760 = vpow.pop %v759
    %v761 = vmul.f32 %v741, 1.442695
    %v762 = vpow.pop %v761
    %v763 = vmul.f32 %v742, 1.442695
    %v764 = vpow.pop %v763
    %v765 = vmul.f32 %v743, 1.442695
    %v766 = vpow.pop %v765
    %v767 = vmul.f32 %v744, 1.442695
    %v768 = vpow.pop %v767
    %v769 = vsel %vm696, %v746, 0.0
    %770 = vadd.xlane.f32.xlu0 %v769
    %v771 = vpop.xlane.xlu0 %770
    %v772 = vsel %vm696, %v748, 0.0
    %773 = vadd.xlane.f32.xlu0 %v772
    %v774 = vpop.xlane.xlu0 %773
    %v775 = vsel %vm696, %v750, 0.0
    %776 = vadd.xlane.f32.xlu0 %v775
    %v777 = vpop.xlane.xlu0 %776
    %v778 = vsel %vm696, %v752, 0.0
    %779 = vadd.xlane.f32.xlu0 %v778
    %v780 = vpop.xlane.xlu0 %779
    %v781 = vsel %vm696, %v754, 0.0
    %782 = vadd.xlane.f32.xlu0 %v781
    %v783 = vpop.xlane.xlu0 %782
    %v784 = vsel %vm696, %v756, 0.0
    %785 = vadd.xlane.f32.xlu0 %v784
    %v786 = vpop.xlane.xlu0 %785
    %v787 = vsel %vm696, %v758, 0.0
    %788 = vadd.xlane.f32.xlu0 %v787
    %v789 = vpop.xlane.xlu0 %788
    %v790 = vsel %vm696, %v760, 0.0
    %791 = vadd.xlane.f32.xlu0 %v790
    %v792 = vpop.xlane.xlu0 %791
    %v793 = vsel %vm696, %v762, 0.0
    %794 = vadd.xlane.f32.xlu0 %v793
    %v795 = vpop.xlane.xlu0 %794
    %v796 = vsel %vm696, %v764, 0.0
    %797 = vadd.xlane.f32.xlu0 %v796
    %v798 = vpop.xlane.xlu0 %797
    %v799 = vsel %vm696, %v766, 0.0
    %800 = vadd.xlane.f32.xlu0 %v799
    %v801 = vpop.xlane.xlu0 %800
    %v802 = vsel %vm696, %v768, 0.0
    %803 = vadd.xlane.f32.xlu0 %v802
    %v804 = vpop.xlane.xlu0 %803
    %v805 = vrcp.pop %v771
    %v806 = vmul.f32 %v746, %v805
    %v807 = vrcp.pop %v774
    %v808 = vmul.f32 %v748, %v807
    %v809 = vrcp.pop %v777
    %v810 = vmul.f32 %v750, %v809
    %v811 = vrcp.pop %v780
    %v812 = vmul.f32 %v752, %v811
    %v813 = vrcp.pop %v783
    %v814 = vmul.f32 %v754, %v813
    %v815 = vrcp.pop %v786
    %v816 = vmul.f32 %v756, %v815
    %v817 = vrcp.pop %v789
    %v818 = vmul.f32 %v758, %v817
    %v819 = vrcp.pop %v792
    %v820 = vmul.f32 %v760, %v819
    %v821 = vrcp.pop %v795
    %v822 = vmul.f32 %v762, %v821
    %v823 = vrcp.pop %v798
    %v824 = vmul.f32 %v764, %v823
    %v825 = vrcp.pop %v801
    %v826 = vmul.f32 %v766, %v825
    %v827 = vrcp.pop %v804
    %v828 = vmul.f32 %v768, %v827
    %829 = vrot.lane.b32.xlu0 %v257, 64
    %v830 = vpop.permute.xlu0 %829
    %831 = vrot.lane.b32.xlu0 %v262, 64
    %v832 = vpop.permute.xlu0 %831
    %833 = vrot.lane.b32.xlu0 %v267, 64
    %v834 = vpop.permute.xlu0 %833
    %v839 = vsel %vm696, %v806, 0
    %v842 = vsel %vm696, %v808, 0
    %v845 = vsel %vm696, %v810, 0
    %847 = vmatprep.subr.mxu0 0.0
    %848 = vmatpush1.msra.mxu0 %v830
    %849 = vmatprep.subr.mxu0 0.0
    %850 = vmatpush1.msra.mxu0 %v832
    %851 = vmatprep.subr.mxu0 0.0
    %852 = vmatpush1.msra.mxu0 %v834
    %853 = vmatprep.subr.mxu0 0.0
    %854 = vmatpush1.msra.mxu0 0.0
    %855 = vmatprep.subr.mxu0 0.0
    %856 = vmatpush1.msra.mxu0 0.0
    %857 = vmatprep.subr.mxu0 0.0
    %858 = vmatpush1.msra.mxu0 0.0
    %859 = vmatprep.subr.mxu0 0.0
    %860 = vmatpush1.msra.mxu0 0.0
    %861 = vmatprep.subr.mxu0 0.0
    %862 = vmatpush1.msra.mxu0 0.0
    %863 = vmatprep.subr.mxu0 0.0
    %864 = vmatpush1.msra.mxu0 0.0
    %865 = vmatprep.subr.mxu0 0.0
    %866 = vmatpush1.msra.mxu0 0.0
    %867 = vmatprep.subr.mxu0 0.0
    %868 = vmatpush1.msra.mxu0 0.0
    %869 = vmatprep.subr.mxu0 0.0
    %870 = vmatpush1.msra.mxu0 0.0
    %871 = vmatprep.subr.mxu0 0.0
    %872 = vmatpush1.msra.mxu0 0.0
    %873 = vmatprep.subr.mxu0 0.0
    %874 = vmatpush1.msra.mxu0 0.0
    %875 = vmatprep.subr.mxu0 0.0
    %876 = vmatpush1.msra.mxu0 0.0
    %877 = vmatprep.subr.mxu0 0.0
    %878 = vmatpush1.msra.mxu0 0.0
    %879 = vmatprep.subr.mxu0 0.0
    %880 = vmatpush1.msra.mxu0 0.0
    %881 = vmatprep.subr.mxu0 0.0
    %882 = vmatpush1.msra.mxu0 0.0
    %883 = vmatprep.subr.mxu0 0.0
    %884 = vmatpush1.msra.mxu0 0.0
    %885 = vmatprep.subr.mxu0 0.0
    %886 = vmatpush1.msra.mxu0 0.0
    %887 = vmatprep.subr.mxu0 0.0
    %888 = vmatpush1.msra.mxu0 0.0
    %889 = vmatprep.subr.mxu0 0.0
    %890 = vmatpush1.msra.mxu0 0.0
    %891 = vmatprep.subr.mxu0 0.0
    %892 = vmatpush1.msra.mxu0 0.0
    %893 = vmatprep.subr.mxu0 0.0
    %894 = vmatpush1.msra.mxu0 0.0
    %895 = vmatprep.subr.mxu0 0.0
    %896 = vmatpush1.msra.mxu0 0.0
    %897 = vmatprep.subr.mxu0 0.0
    %898 = vmatpush1.msra.mxu0 0.0
    %899 = vmatprep.subr.mxu0 0.0
    %900 = vmatpush1.msra.mxu0 0.0
    %901 = vmatprep.subr.mxu0 0.0
    %902 = vmatpush1.msra.mxu0 0.0
    %903 = vmatprep.subr.mxu0 0.0
    %904 = vmatpush1.msra.mxu0 0.0
    %905 = vmatprep.subr.mxu0 0.0
    %906 = vmatpush1.msra.mxu0 0.0
    %907 = vmatprep.subr.mxu0 0.0
    %908 = vmatpush1.msra.mxu0 0.0
    %909 = vmatprep.subr.mxu0 0.0
    %910 = vmatpush1.msra.mxu0 0.0
    %911 = vmatprep.mubr.f32.mxu0 0.0
    %912 = vmatmul.mubr.f32.gmra.mrb[0].mxu0 %v839
    %v913 = vpop.f32.mrb[0].mxu0
    %v914 = vadd.f32 0.0, %v913
    %v915 = vpop.f32.mrb[0].mxu0
    %916 = vmatprep.mubr.f32.mxu0 0.0
    %917 = vmatmul.mubr.f32.gmra.mrb[0].mxu0 %v842
    %v918 = vpop.f32.mrb[0].mxu0
    %v919 = vadd.f32 0.0, %v918
    %v920 = vpop.f32.mrb[0].mxu0
    %921 = vmatprep.mubr.f32.mxu0 0.0
    %922 = vmatmul.mubr.f32.gmra.mrb[0].mxu0 %v845
    %v923 = vpop.f32.mrb[0].mxu0
    %v924 = vadd.f32 0.0, %v923
    %v925 = vpop.f32.mrb[0].mxu0
    %926 = vdwg.mxu0
    %927 = vrot.lane.b32.xlu0 %v257, 56
    %v928 = vpop.permute.xlu0 %927
    %929 = vrot.lane.b32.xlu0 %v262, 56
    %v930 = vpop.permute.xlu0 %929
    %931 = vrot.lane.b32.xlu0 %v267, 56
    %v932 = vpop.permute.xlu0 %931
    %v937 = vsel %vm696, %v812, 0
    %v940 = vsel %vm696, %v814, 0
    %v943 = vsel %vm696, %v816, 0
    %945 = vmatprep.subr.mxu0 0.0
    %946 = vmatpush1.msra.mxu0 %v928
    %947 = vmatprep.subr.mxu0 0.0
    %948 = vmatpush1.msra.mxu0 %v930
    %949 = vmatprep.subr.mxu0 0.0
    %950 = vmatpush1.msra.mxu0 %v932
    %951 = vmatprep.subr.mxu0 0.0
    %952 = vmatpush1.msra.mxu0 0.0
    %953 = vmatprep.subr.mxu0 0.0
    %954 = vmatpush1.msra.mxu0 0.0
    %955 = vmatprep.subr.mxu0 0.0
    %956 = vmatpush1.msra.mxu0 0.0
    %957 = vmatprep.subr.mxu0 0.0
    %958 = vmatpush1.msra.mxu0 0.0
    %959 = vmatprep.subr.mxu0 0.0
    %960 = vmatpush1.msra.mxu0 0.0
    %961 = vmatprep.subr.mxu0 0.0
    %962 = vmatpush1.msra.mxu0 0.0
    %963 = vmatprep.subr.mxu0 0.0
    %964 = vmatpush1.msra.mxu0 0.0
    %965 = vmatprep.subr.mxu0 0.0
    %966 = vmatpush1.msra.mxu0 0.0
    %967 = vmatprep.subr.mxu0 0.0
    %968 = vmatpush1.msra.mxu0 0.0
    %969 = vmatprep.subr.mxu0 0.0
    %970 = vmatpush1.msra.mxu0 0.0
    %971 = vmatprep.subr.mxu0 0.0
    %972 = vmatpush1.msra.mxu0 0.0
    %973 = vmatprep.subr.mxu0 0.0
    %974 = vmatpush1.msra.mxu0 0.0
    %975 = vmatprep.subr.mxu0 0.0
    %976 = vmatpush1.msra.mxu0 0.0
    %977 = vmatprep.subr.mxu0 0.0
    %978 = vmatpush1.msra.mxu0 0.0
    %979 = vmatprep.subr.mxu0 0.0
    %980 = vmatpush1.msra.mxu0 0.0
    %981 = vmatprep.subr.mxu0 0.0
    %982 = vmatpush1.msra.mxu0 0.0
    %983 = vmatprep.subr.mxu0 0.0
    %984 = vmatpush1.msra.mxu0 0.0
    %985 = vmatprep.subr.mxu0 0.0
    %986 = vmatpush1.msra.mxu0 0.0
    %987 = vmatprep.subr.mxu0 0.0
    %988 = vmatpush1.msra.mxu0 0.0
    %989 = vmatprep.subr.mxu0 0.0
    %990 = vmatpush1.msra.mxu0 0.0
    %991 = vmatprep.subr.mxu0 0.0
    %992 = vmatpush1.msra.mxu0 0.0
    %993 = vmatprep.subr.mxu0 0.0
    %994 = vmatpush1.msra.mxu0 0.0
    %995 = vmatprep.subr.mxu0 0.0
    %996 = vmatpush1.msra.mxu0 0.0
    %997 = vmatprep.subr.mxu0 0.0
    %998 = vmatpush1.msra.mxu0 0.0
    %999 = vmatprep.subr.mxu0 0.0
    %1000 = vmatpush1.msra.mxu0 0.0
    %1001 = vmatprep.subr.mxu0 0.0
    %1002 = vmatpush1.msra.mxu0 0.0
    %1003 = vmatprep.subr.mxu0 0.0
    %1004 = vmatpush1.msra.mxu0 0.0
    %1005 = vmatprep.subr.mxu0 0.0
    %1006 = vmatpush1.msra.mxu0 0.0
    %1007 = vmatprep.subr.mxu0 0.0
    %1008 = vmatpush1.msra.mxu0 0.0
    %1009 = vmatprep.mubr.f32.mxu0 0.0
    %1010 = vmatmul.mubr.f32.gmra.mrb[0].mxu0 %v937
    %v1011 = vpop.f32.mrb[0].mxu0
    %v1012 = vadd.f32 0.0, %v1011
    %v1013 = vpop.f32.mrb[0].mxu0
    %1014 = vmatprep.mubr.f32.mxu0 0.0
    %1015 = vmatmul.mubr.f32.gmra.mrb[0].mxu0 %v940
    %v1016 = vpop.f32.mrb[0].mxu0
    %v1017 = vadd.f32 0.0, %v1016
    %v1018 = vpop.f32.mrb[0].mxu0
    %1019 = vmatprep.mubr.f32.mxu0 0.0
    %1020 = vmatmul.mubr.f32.gmra.mrb[0].mxu0 %v943
    %v1021 = vpop.f32.mrb[0].mxu0
    %v1022 = vadd.f32 0.0, %v1021
    %v1023 = vpop.f32.mrb[0].mxu0
    %1024 = vdwg.mxu0
    %1025 = vrot.lane.b32.xlu0 %v257, 48
    %v1026 = vpop.permute.xlu0 %1025
    %1027 = vrot.lane.b32.xlu0 %v262, 48
    %v1028 = vpop.permute.xlu0 %1027
    %1029 = vrot.lane.b32.xlu0 %v267, 48
    %v1030 = vpop.permute.xlu0 %1029
    %v1035 = vsel %vm696, %v818, 0
    %v1038 = vsel %vm696, %v820, 0
    %v1041 = vsel %vm696, %v822, 0
    %1043 = vmatprep.subr.mxu0 0.0
    %1044 = vmatpush1.msra.mxu0 %v1026
    %1045 = vmatprep.subr.mxu0 0.0
    %1046 = vmatpush1.msra.mxu0 %v1028
    %1047 = vmatprep.subr.mxu0 0.0
    %1048 = vmatpush1.msra.mxu0 %v1030
    %1049 = vmatprep.subr.mxu0 0.0
    %1050 = vmatpush1.msra.mxu0 0.0
    %1051 = vmatprep.subr.mxu0 0.0
    %1052 = vmatpush1.msra.mxu0 0.0
    %1053 = vmatprep.subr.mxu0 0.0
    %1054 = vmatpush1.msra.mxu0 0.0
    %1055 = vmatprep.subr.mxu0 0.0
    %1056 = vmatpush1.msra.mxu0 0.0
    %1057 = vmatprep.subr.mxu0 0.0
    %1058 = vmatpush1.msra.mxu0 0.0
    %1059 = vmatprep.subr.mxu0 0.0
    %1060 = vmatpush1.msra.mxu0 0.0
    %1061 = vmatprep.subr.mxu0 0.0
    %1062 = vmatpush1.msra.mxu0 0.0
    %1063 = vmatprep.subr.mxu0 0.0
    %1064 = vmatpush1.msra.mxu0 0.0
    %1065 = vmatprep.subr.mxu0 0.0
    %1066 = vmatpush1.msra.mxu0 0.0
    %1067 = vmatprep.subr.mxu0 0.0
    %1068 = vmatpush1.msra.mxu0 0.0
    %1069 = vmatprep.subr.mxu0 0.0
    %1070 = vmatpush1.msra.mxu0 0.0
    %1071 = vmatprep.subr.mxu0 0.0
    %1072 = vmatpush1.msra.mxu0 0.0
    %1073 = vmatprep.subr.mxu0 0.0
    %1074 = vmatpush1.msra.mxu0 0.0
    %1075 = vmatprep.subr.mxu0 0.0
    %1076 = vmatpush1.msra.mxu0 0.0
    %1077 = vmatprep.subr.mxu0 0.0
    %1078 = vmatpush1.msra.mxu0 0.0
    %1079 = vmatprep.subr.mxu0 0.0
    %1080 = vmatpush1.msra.mxu0 0.0
    %1081 = vmatprep.subr.mxu0 0.0
    %1082 = vmatpush1.msra.mxu0 0.0
    %1083 = vmatprep.subr.mxu0 0.0
    %1084 = vmatpush1.msra.mxu0 0.0
    %1085 = vmatprep.subr.mxu0 0.0
    %1086 = vmatpush1.msra.mxu0 0.0
    %1087 = vmatprep.subr.mxu0 0.0
    %1088 = vmatpush1.msra.mxu0 0.0
    %1089 = vmatprep.subr.mxu0 0.0
    %1090 = vmatpush1.msra.mxu0 0.0
    %1091 = vmatprep.subr.mxu0 0.0
    %1092 = vmatpush1.msra.mxu0 0.0
    %1093 = vmatprep.subr.mxu0 0.0
    %1094 = vmatpush1.msra.mxu0 0.0
    %1095 = vmatprep.subr.mxu0 0.0
    %1096 = vmatpush1.msra.mxu0 0.0
    %1097 = vmatprep.subr.mxu0 0.0
    %1098 = vmatpush1.msra.mxu0 0.0
    %1099 = vmatprep.subr.mxu0 0.0
    %1100 = vmatpush1.msra.mxu0 0.0
    %1101 = vmatprep.subr.mxu0 0.0
    %1102 = vmatpush1.msra.mxu0 0.0
    %1103 = vmatprep.subr.mxu0 0.0
    %1104 = vmatpush1.msra.mxu0 0.0
    %1105 = vmatprep.subr.mxu0 0.0
    %1106 = vmatpush1.msra.mxu0 0.0
    %1107 = vmatprep.mubr.f32.mxu0 0.0
    %1108 = vmatmul.mubr.f32.gmra.mrb[0].mxu0 %v1035
    %v1109 = vpop.f32.mrb[0].mxu0
    %v1110 = vadd.f32 0.0, %v1109
    %v1111 = vpop.f32.mrb[0].mxu0
    %1112 = vmatprep.mubr.f32.mxu0 0.0
    %1113 = vmatmul.mubr.f32.gmra.mrb[0].mxu0 %v1038
    %v1114 = vpop.f32.mrb[0].mxu0
    %v1115 = vadd.f32 0.0, %v1114
    %v1116 = vpop.f32.mrb[0].mxu0
    %1117 = vmatprep.mubr.f32.mxu0 0.0
    %1118 = vmatmul.mubr.f32.gmra.mrb[0].mxu0 %v1041
    %v1119 = vpop.f32.mrb[0].mxu0
    %v1120 = vadd.f32 0.0, %v1119
    %v1121 = vpop.f32.mrb[0].mxu0
    %1122 = vdwg.mxu0
    %1123 = vrot.lane.b32.xlu0 %v257, 40
    %v1124 = vpop.permute.xlu0 %1123
    %1125 = vrot.lane.b32.xlu0 %v262, 40
    %v1126 = vpop.permute.xlu0 %1125
    %1127 = vrot.lane.b32.xlu0 %v267, 40
    %v1128 = vpop.permute.xlu0 %1127
    %v1133 = vsel %vm696, %v824, 0
    %v1136 = vsel %vm696, %v826, 0
    %v1139 = vsel %vm696, %v828, 0
    %1141 = vmatprep.subr.mxu0 0.0
    %1142 = vmatpush1.msra.mxu0 %v1124
    %1143 = vmatprep.subr.mxu0 0.0
    %1144 = vmatpush1.msra.mxu0 %v1126
    %1145 = vmatprep.subr.mxu0 0.0
    %1146 = vmatpush1.msra.mxu0 %v1128
    %1147 = vmatprep.subr.mxu0 0.0
    %1148 = vmatpush1.msra.mxu0 0.0
    %1149 = vmatprep.subr.mxu0 0.0
    %1150 = vmatpush1.msra.mxu0 0.0
    %1151 = vmatprep.subr.mxu0 0.0
    %1152 = vmatpush1.msra.mxu0 0.0
    %1153 = vmatprep.subr.mxu0 0.0
    %1154 = vmatpush1.msra.mxu0 0.0
    %1155 = vmatprep.subr.mxu0 0.0
    %1156 = vmatpush1.msra.mxu0 0.0
    %1157 = vmatprep.subr.mxu0 0.0
    %1158 = vmatpush1.msra.mxu0 0.0
    %1159 = vmatprep.subr.mxu0 0.0
    %1160 = vmatpush1.msra.mxu0 0.0
    %1161 = vmatprep.subr.mxu0 0.0
    %1162 = vmatpush1.msra.mxu0 0.0
    %1163 = vmatprep.subr.mxu0 0.0
    %1164 = vmatpush1.msra.mxu0 0.0
    %1165 = vmatprep.subr.mxu0 0.0
    %1166 = vmatpush1.msra.mxu0 0.0
    %1167 = vmatprep.subr.mxu0 0.0
    %1168 = vmatpush1.msra.mxu0 0.0
    %1169 = vmatprep.subr.mxu0 0.0
    %1170 = vmatpush1.msra.mxu0 0.0
    %1171 = vmatprep.subr.mxu0 0.0
    %1172 = vmatpush1.msra.mxu0 0.0
    %1173 = vmatprep.subr.mxu0 0.0
    %1174 = vmatpush1.msra.mxu0 0.0
    %1175 = vmatprep.subr.mxu0 0.0
    %1176 = vmatpush1.msra.mxu0 0.0
    %1177 = vmatprep.subr.mxu0 0.0
    %1178 = vmatpush1.msra.mxu0 0.0
    %1179 = vmatprep.subr.mxu0 0.0
    %1180 = vmatpush1.msra.mxu0 0.0
    %1181 = vmatprep.subr.mxu0 0.0
    %1182 = vmatpush1.msra.mxu0 0.0
    %1183 = vmatprep.subr.mxu0 0.0
    %1184 = vmatpush1.msra.mxu0 0.0
    %1185 = vmatprep.subr.mxu0 0.0
    %1186 = vmatpush1.msra.mxu0 0.0
    %1187 = vmatprep.subr.mxu0 0.0
    %1188 = vmatpush1.msra.mxu0 0.0
    %1189 = vmatprep.subr.mxu0 0.0
    %1190 = vmatpush1.msra.mxu0 0.0
    %1191 = vmatprep.subr.mxu0 0.0
    %1192 = vmatpush1.msra.mxu0 0.0
    %1193 = vmatprep.subr.mxu0 0.0
    %1194 = vmatpush1.msra.mxu0 0.0
    %1195 = vmatprep.subr.mxu0 0.0
    %1196 = vmatpush1.msra.mxu0 0.0
    %1197 = vmatprep.subr.mxu0 0.0
    %1198 = vmatpush1.msra.mxu0 0.0
    %1199 = vmatprep.subr.mxu0 0.0
    %1200 = vmatpush1.msra.mxu0 0.0
    %1201 = vmatprep.subr.mxu0 0.0
    %1202 = vmatpush1.msra.mxu0 0.0
    %1203 = vmatprep.subr.mxu0 0.0
    %1204 = vmatpush1.msra.mxu0 0.0
    %1205 = vmatprep.mubr.f32.mxu0 0.0
    %1206 = vmatmul.mubr.f32.gmra.mrb[0].mxu0 %v1133
    %v1207 = vpop.f32.mrb[0].mxu0
    %v1208 = vadd.f32 0.0, %v1207
    %v1209 = vpop.f32.mrb[0].mxu0
    %1210 = vmatprep.mubr.f32.mxu0 0.0
    %1211 = vmatmul.mubr.f32.gmra.mrb[0].mxu0 %v1136
    %v1212 = vpop.f32.mrb[0].mxu0
    %v1213 = vadd.f32 0.0, %v1212
    %v1214 = vpop.f32.mrb[0].mxu0
    %1215 = vmatprep.mubr.f32.mxu0 0.0
    %1216 = vmatmul.mubr.f32.gmra.mrb[0].mxu0 %v1139
    %v1217 = vpop.f32.mrb[0].mxu0
    %v1218 = vadd.f32 0.0, %v1217
    %v1219 = vpop.f32.mrb[0].mxu0
    %1220 = vdwg.mxu0
    %1224 = vrot.lane.b32.xlu0 %v1012, 8
    %v1225 = vpop.permute.xlu0 %1224
    %1226 = vrot.lane.b32.xlu0 %v1017, 8
    %v1227 = vpop.permute.xlu0 %1226
    %1228 = vrot.lane.b32.xlu0 %v1022, 8
    %v1229 = vpop.permute.xlu0 %1228
    %1236 = vrot.lane.b32.xlu0 %v1110, 16
    %v1237 = vpop.permute.xlu0 %1236
    %1238 = vrot.lane.b32.xlu0 %v1115, 16
    %v1239 = vpop.permute.xlu0 %1238
    %1240 = vrot.lane.b32.xlu0 %v1120, 16
    %v1241 = vpop.permute.xlu0 %1240
    %1248 = vrot.lane.b32.xlu0 %v1208, 24
    %v1249 = vpop.permute.xlu0 %1248
    %1250 = vrot.lane.b32.xlu0 %v1213, 24
    %v1251 = vpop.permute.xlu0 %1250
    %1252 = vrot.lane.b32.xlu0 %v1218, 24
    %v1253 = vpop.permute.xlu0 %1252
    %v1257 = vsel %vm279, %v914, %v1225
    %v1258 = vsel %vm279, %v919, %v1227
    %v1259 = vsel %vm279, %v924, %v1229
    %vm1260 = vcmask 130048
    %v1261 = vsel %vm1260, %v1257, %v1237
    %v1262 = vsel %vm1260, %v1258, %v1239
    %v1263 = vsel %vm1260, %v1259, %v1241
    %v1264 = vsel %vm696, %v1261, %v1249
    %v1265 = vsel %vm696, %v1262, %v1251
    %v1266 = vsel %vm696, %v1263, %v1253
    %v1267 = vlaneseq
    %v1268 = vshrl.u32 %v1267, 7
    %v1269 = vsub.s32 0, %v1268
    %v1270 = vrot.slane %v169, %v1269
    %v1272 = vsel %vm180, %v1264, 0
    %v1275 = vsel %vm180, %v1265, 0
    %v1278 = vsel %vm180, %v1266, 0
    %1280 = vmatprep.subr.mxu0 0.0
    %1281 = vmatpush1.msra.mxu0 %v152
    %1282 = vmatprep.subr.mxu0 0.0
    %1283 = vmatpush1.msra.mxu0 %v153
    %1284 = vmatprep.subr.mxu0 0.0
    %1285 = vmatpush1.msra.mxu0 %v154
    %1286 = vmatprep.subr.mxu0 0.0
    %1287 = vmatpush1.msra.mxu0 %v155
    %1288 = vmatprep.subr.mxu0 0.0
    %1289 = vmatpush1.msra.mxu0 0.0
    %1290 = vmatprep.subr.mxu0 0.0
    %1291 = vmatpush1.msra.mxu0 0.0
    %1292 = vmatprep.subr.mxu0 0.0
    %1293 = vmatpush1.msra.mxu0 0.0
    %1294 = vmatprep.subr.mxu0 0.0
    %1295 = vmatpush1.msra.mxu0 0.0
    %1296 = vmatprep.subr.mxu0 0.0
    %1297 = vmatpush1.msra.mxu0 0.0
    %1298 = vmatprep.subr.mxu0 0.0
    %1299 = vmatpush1.msra.mxu0 0.0
    %1300 = vmatprep.subr.mxu0 0.0
    %1301 = vmatpush1.msra.mxu0 0.0
    %1302 = vmatprep.subr.mxu0 0.0
    %1303 = vmatpush1.msra.mxu0 0.0
    %1304 = vmatprep.subr.mxu0 0.0
    %1305 = vmatpush1.msra.mxu0 0.0
    %1306 = vmatprep.subr.mxu0 0.0
    %1307 = vmatpush1.msra.mxu0 0.0
    %1308 = vmatprep.subr.mxu0 0.0
    %1309 = vmatpush1.msra.mxu0 0.0
    %1310 = vmatprep.subr.mxu0 0.0
    %1311 = vmatpush1.msra.mxu0 0.0
    %1312 = vmatprep.subr.mxu0 0.0
    %1313 = vmatpush1.msra.mxu0 0.0
    %1314 = vmatprep.subr.mxu0 0.0
    %1315 = vmatpush1.msra.mxu0 0.0
    %1316 = vmatprep.subr.mxu0 0.0
    %1317 = vmatpush1.msra.mxu0 0.0
    %1318 = vmatprep.subr.mxu0 0.0
    %1319 = vmatpush1.msra.mxu0 0.0
    %1320 = vmatprep.subr.mxu0 0.0
    %1321 = vmatpush1.msra.mxu0 0.0
    %1322 = vmatprep.subr.mxu0 0.0
    %1323 = vmatpush1.msra.mxu0 0.0
    %1324 = vmatprep.subr.mxu0 0.0
    %1325 = vmatpush1.msra.mxu0 0.0
    %1326 = vmatprep.subr.mxu0 0.0
    %1327 = vmatpush1.msra.mxu0 0.0
    %1328 = vmatprep.subr.mxu0 0.0
    %1329 = vmatpush1.msra.mxu0 0.0
    %1330 = vmatprep.subr.mxu0 0.0
    %1331 = vmatpush1.msra.mxu0 0.0
    %1332 = vmatprep.subr.mxu0 0.0
    %1333 = vmatpush1.msra.mxu0 0.0
    %1334 = vmatprep.subr.mxu0 0.0
    %1335 = vmatpush1.msra.mxu0 0.0
    %1336 = vmatprep.subr.mxu0 0.0
    %1337 = vmatpush1.msra.mxu0 0.0
    %1338 = vmatprep.subr.mxu0 0.0
    %1339 = vmatpush1.msra.mxu0 0.0
    %1340 = vmatprep.subr.mxu0 0.0
    %1341 = vmatpush1.msra.mxu0 0.0
    %1342 = vmatprep.subr.mxu0 0.0
    %1343 = vmatpush1.msra.mxu0 0.0
    %1344 = vmatprep.mubr.f32.mxu0 0.0
    %1345 = vmatmul.mubr.f32.gmra.mrb[0].mxu0 %v1272
    %v1346 = vpop.f32.mrb[0].mxu0
    %v1347 = vadd.f32 %v1270, %v1346
    %v1348 = vpop.f32.mrb[0].mxu0
    %1349 = vmatprep.mubr.f32.mxu0 0.0
    %1350 = vmatmul.mubr.f32.gmra.mrb[0].mxu0 %v1275
    %v1351 = vpop.f32.mrb[0].mxu0
    %v1352 = vadd.f32 %v1270, %v1351
    %v1353 = vpop.f32.mrb[0].mxu0
    %1354 = vmatprep.mubr.f32.mxu0 0.0
    %1355 = vmatmul.mubr.f32.gmra.mrb[0].mxu0 %v1278
    %v1356 = vpop.f32.mrb[0].mxu0
    %v1357 = vadd.f32 %v1270, %v1356
    %v1358 = vpop.f32.mrb[0].mxu0
    %1359 = vdwg.mxu0
    %v1360 = vadd.f32 %v145, %v1347
    %v1361 = vadd.f32 %v146, %v1352
    %v1362 = vadd.f32 %v147, %v1357
    %v1363 = vsel %vm180, %v1360, 0.0
    %1364 = vadd.xlane.f32.xlu0 %v1363
    %v1365 = vpop.xlane.xlu0 %1364
    %v1366 = vsel %vm180, %v1361, 0.0
    %1367 = vadd.xlane.f32.xlu0 %v1366
    %v1368 = vpop.xlane.xlu0 %1367
    %v1369 = vsel %vm180, %v1362, 0.0
    %1370 = vadd.xlane.f32.xlu0 %v1369
    %v1371 = vpop.xlane.xlu0 %1370
    %v1372 = vrcp.pop 32.0
    %v1373 = vmul.f32 %v1365, %v1372
    %v1374 = vmul.f32 %v1368, %v1372
    %v1375 = vmul.f32 %v1371, %v1372
    %v1376 = vsub.f32 %v1360, %v1373
    %v1377 = vsub.f32 %v1361, %v1374
    %v1378 = vsub.f32 %v1362, %v1375
    %v1379 = vmul.f32 %v1376, %v1376
    %v1380 = vmul.f32 %v1377, %v1377
    %v1381 = vmul.f32 %v1378, %v1378
    %v1382 = vsel %vm180, %v1379, 0.0
    %1383 = vadd.xlane.f32.xlu0 %v1382
    %v1384 = vpop.xlane.xlu0 %1383
    %v1385 = vsel %vm180, %v1380, 0.0
    %1386 = vadd.xlane.f32.xlu0 %v1385
    %v1387 = vpop.xlane.xlu0 %1386
    %v1388 = vsel %vm180, %v1381, 0.0
    %1389 = vadd.xlane.f32.xlu0 %v1388
    %v1390 = vpop.xlane.xlu0 %1389
    %v1391 = vmul.f32 %v1384, %v1372
    %v1392 = vmul.f32 %v1387, %v1372
    %v1393 = vmul.f32 %v1390, %v1372
    %v1394 = vadd.f32 %v1391, 1e-05
    %v1395 = vadd.f32 %v1392, 1e-05
    %v1396 = vadd.f32 %v1393, 1e-05
    %v1397 = vrsqrt.pop %v1394
    %v1398 = vrsqrt.pop %v1395
    %v1399 = vrsqrt.pop %v1396
    %v1400 = vmul.f32 %v1376, %v1397
    %v1401 = vmul.f32 %v1377, %v1398
    %v1402 = vmul.f32 %v1378, %v1399
    %v1403 = vlaneseq
    %v1404 = vshrl.u32 %v1403, 7
    %v1405 = vsub.s32 0, %v1404
    %v1406 = vrot.slane %v172, %v1405
    %v1407 = vmul.f32 %v1400, %v1406
    %v1408 = vmul.f32 %v1401, %v1406
    %v1409 = vmul.f32 %v1402, %v1406
    %v1410 = vlaneseq
    %v1411 = vshrl.u32 %v1410, 7
    %v1412 = vsub.s32 0, %v1411
    %v1413 = vrot.slane %v173, %v1412
    %v1414 = vadd.f32 %v1407, %v1413
    %v1415 = vadd.f32 %v1408, %v1413
    %v1416 = vadd.f32 %v1409, %v1413
    %v1417 = vlaneseq
    %v1418 = vshrl.u32 %v1417, 7
    %v1419 = vsub.s32 0, %v1418
    %v1420 = vrot.slane %v170, %v1419
    %v1422 = vsel %vm180, %v1414, 0
    %v1425 = vsel %vm180, %v1415, 0
    %v1428 = vsel %vm180, %v1416, 0
    %1430 = vmatprep.subr.mxu0 0.0
    %1431 = vmatpush1.msra.mxu0 %v156
    %1432 = vmatprep.subr.mxu0 0.0
    %1433 = vmatpush1.msra.mxu0 %v157
    %1434 = vmatprep.subr.mxu0 0.0
    %1435 = vmatpush1.msra.mxu0 %v158
    %1436 = vmatprep.subr.mxu0 0.0
    %1437 = vmatpush1.msra.mxu0 %v159
    %1438 = vmatprep.subr.mxu0 0.0
    %1439 = vmatpush1.msra.mxu0 0.0
    %1440 = vmatprep.subr.mxu0 0.0
    %1441 = vmatpush1.msra.mxu0 0.0
    %1442 = vmatprep.subr.mxu0 0.0
    %1443 = vmatpush1.msra.mxu0 0.0
    %1444 = vmatprep.subr.mxu0 0.0
    %1445 = vmatpush1.msra.mxu0 0.0
    %1446 = vmatprep.subr.mxu0 0.0
    %1447 = vmatpush1.msra.mxu0 0.0
    %1448 = vmatprep.subr.mxu0 0.0
    %1449 = vmatpush1.msra.mxu0 0.0
    %1450 = vmatprep.subr.mxu0 0.0
    %1451 = vmatpush1.msra.mxu0 0.0
    %1452 = vmatprep.subr.mxu0 0.0
    %1453 = vmatpush1.msra.mxu0 0.0
    %1454 = vmatprep.subr.mxu0 0.0
    %1455 = vmatpush1.msra.mxu0 0.0
    %1456 = vmatprep.subr.mxu0 0.0
    %1457 = vmatpush1.msra.mxu0 0.0
    %1458 = vmatprep.subr.mxu0 0.0
    %1459 = vmatpush1.msra.mxu0 0.0
    %1460 = vmatprep.subr.mxu0 0.0
    %1461 = vmatpush1.msra.mxu0 0.0
    %1462 = vmatprep.subr.mxu0 0.0
    %1463 = vmatpush1.msra.mxu0 0.0
    %1464 = vmatprep.subr.mxu0 0.0
    %1465 = vmatpush1.msra.mxu0 0.0
    %1466 = vmatprep.subr.mxu0 0.0
    %1467 = vmatpush1.msra.mxu0 0.0
    %1468 = vmatprep.subr.mxu0 0.0
    %1469 = vmatpush1.msra.mxu0 0.0
    %1470 = vmatprep.subr.mxu0 0.0
    %1471 = vmatpush1.msra.mxu0 0.0
    %1472 = vmatprep.subr.mxu0 0.0
    %1473 = vmatpush1.msra.mxu0 0.0
    %1474 = vmatprep.subr.mxu0 0.0
    %1475 = vmatpush1.msra.mxu0 0.0
    %1476 = vmatprep.subr.mxu0 0.0
    %1477 = vmatpush1.msra.mxu0 0.0
    %1478 = vmatprep.subr.mxu0 0.0
    %1479 = vmatpush1.msra.mxu0 0.0
    %1480 = vmatprep.subr.mxu0 0.0
    %1481 = vmatpush1.msra.mxu0 0.0
    %1482 = vmatprep.subr.mxu0 0.0
    %1483 = vmatpush1.msra.mxu0 0.0
    %1484 = vmatprep.subr.mxu0 0.0
    %1485 = vmatpush1.msra.mxu0 0.0
    %1486 = vmatprep.subr.mxu0 0.0
    %1487 = vmatpush1.msra.mxu0 0.0
    %1488 = vmatprep.subr.mxu0 0.0
    %1489 = vmatpush1.msra.mxu0 0.0
    %1490 = vmatprep.subr.mxu0 0.0
    %1491 = vmatpush1.msra.mxu0 0.0
    %1492 = vmatprep.subr.mxu0 0.0
    %1493 = vmatpush1.msra.mxu0 0.0
    %1494 = vmatprep.mubr.f32.mxu0 0.0
    %1495 = vmatmul.mubr.f32.gmra.mrb[0].mxu0 %v1422
    %v1496 = vpop.f32.mrb[0].mxu0
    %v1497 = vadd.f32 %v1420, %v1496
    %v1498 = vpop.f32.mrb[0].mxu0
    %1499 = vmatprep.mubr.f32.mxu0 0.0
    %1500 = vmatmul.mubr.f32.gmra.mrb[0].mxu0 %v1425
    %v1501 = vpop.f32.mrb[0].mxu0
    %v1502 = vadd.f32 %v1420, %v1501
    %v1503 = vpop.f32.mrb[0].mxu0
    %1504 = vmatprep.mubr.f32.mxu0 0.0
    %1505 = vmatmul.mubr.f32.gmra.mrb[0].mxu0 %v1428
    %v1506 = vpop.f32.mrb[0].mxu0
    %v1507 = vadd.f32 %v1420, %v1506
    %v1508 = vpop.f32.mrb[0].mxu0
    %1509 = vdwg.mxu0
    %v1510 = vmul.f32 %v1497, 0.5
    %v1511 = vmul.f32 %v1502, 0.5
    %v1512 = vmul.f32 %v1507, 0.5
    %v1513 = vrcp.pop 1.4142135
    %v1514 = vmul.f32 %v1497, %v1513
    %v1515 = vmul.f32 %v1502, %v1513
    %v1516 = vmul.f32 %v1507, %v1513
    %v1517 = verf.f32.pop %v1514
    %v1518 = verf.f32.pop %v1515
    %v1519 = verf.f32.pop %v1516
    %v1520 = vadd.f32 %v1517, 1.0
    %v1521 = vadd.f32 %v1518, 1.0
    %v1522 = vadd.f32 %v1519, 1.0
    %v1523 = vmul.f32 %v1510, %v1520
    %v1524 = vmul.f32 %v1511, %v1521
    %v1525 = vmul.f32 %v1512, %v1522
    %v1526 = vlaneseq
    %v1527 = vshrl.u32 %v1526, 7
    %v1528 = vsub.s32 0, %v1527
    %v1529 = vrot.slane %v171, %v1528
    %vm1530 = vcmask 523264
    %v1532 = vsel %vm1530, %v1523, 0
    %v1535 = vsel %vm1530, %v1524, 0
    %v1538 = vsel %vm1530, %v1525, 0
    %1540 = vmatprep.subr.mxu0 0.0
    %1541 = vmatpush1.msra.mxu0 %v160
    %1542 = vmatprep.subr.mxu0 0.0
    %1543 = vmatpush1.msra.mxu0 %v161
    %1544 = vmatprep.subr.mxu0 0.0
    %1545 = vmatpush1.msra.mxu0 %v162
    %1546 = vmatprep.subr.mxu0 0.0
    %1547 = vmatpush1.msra.mxu0 %v163
    %1548 = vmatprep.subr.mxu0 0.0
    %1549 = vmatpush1.msra.mxu0 %v164
    %1550 = vmatprep.subr.mxu0 0.0
    %1551 = vmatpush1.msra.mxu0 %v165
    %1552 = vmatprep.subr.mxu0 0.0
    %1553 = vmatpush1.msra.mxu0 %v166
    %1554 = vmatprep.subr.mxu0 0.0
    %1555 = vmatpush1.msra.mxu0 %v167
    %1556 = vmatprep.subr.mxu0 0.0
    %1557 = vmatpush1.msra.mxu0 0.0
    %1558 = vmatprep.subr.mxu0 0.0
    %1559 = vmatpush1.msra.mxu0 0.0
    %1560 = vmatprep.subr.mxu0 0.0
    %1561 = vmatpush1.msra.mxu0 0.0
    %1562 = vmatprep.subr.mxu0 0.0
    %1563 = vmatpush1.msra.mxu0 0.0
    %1564 = vmatprep.subr.mxu0 0.0
    %1565 = vmatpush1.msra.mxu0 0.0
    %1566 = vmatprep.subr.mxu0 0.0
    %1567 = vmatpush1.msra.mxu0 0.0
    %1568 = vmatprep.subr.mxu0 0.0
    %1569 = vmatpush1.msra.mxu0 0.0
    %1570 = vmatprep.subr.mxu0 0.0
    %1571 = vmatpush1.msra.mxu0 0.0
    %1572 = vmatprep.subr.mxu0 0.0
    %1573 = vmatpush1.msra.mxu0 0.0
    %1574 = vmatprep.subr.mxu0 0.0
    %1575 = vmatpush1.msra.mxu0 0.0
    %1576 = vmatprep.subr.mxu0 0.0
    %1577 = vmatpush1.msra.mxu0 0.0
    %1578 = vmatprep.subr.mxu0 0.0
    %1579 = vmatpush1.msra.mxu0 0.0
    %1580 = vmatprep.subr.mxu0 0.0
    %1581 = vmatpush1.msra.mxu0 0.0
    %1582 = vmatprep.subr.mxu0 0.0
    %1583 = vmatpush1.msra.mxu0 0.0
    %1584 = vmatprep.subr.mxu0 0.0
    %1585 = vmatpush1.msra.mxu0 0.0
    %1586 = vmatprep.subr.mxu0 0.0
    %1587 = vmatpush1.msra.mxu0 0.0
    %1588 = vmatprep.subr.mxu0 0.0
    %1589 = vmatpush1.msra.mxu0 0.0
    %1590 = vmatprep.subr.mxu0 0.0
    %1591 = vmatpush1.msra.mxu0 0.0
    %1592 = vmatprep.subr.mxu0 0.0
    %1593 = vmatpush1.msra.mxu0 0.0
    %1594 = vmatprep.subr.mxu0 0.0
    %1595 = vmatpush1.msra.mxu0 0.0
    %1596 = vmatprep.subr.mxu0 0.0
    %1597 = vmatpush1.msra.mxu0 0.0
    %1598 = vmatprep.subr.mxu0 0.0
    %1599 = vmatpush1.msra.mxu0 0.0
    %1600 = vmatprep.subr.mxu0 0.0
    %1601 = vmatpush1.msra.mxu0 0.0
    %1602 = vmatprep.subr.mxu0 0.0
    %1603 = vmatpush1.msra.mxu0 0.0
    %1604 = vmatprep.mubr.f32.mxu0 0.0
    %1605 = vmatmul.mubr.f32.gmra.mrb[0].mxu0 %v1532
    %v1606 = vpop.f32.mrb[0].mxu0
    %v1607 = vadd.f32 %v1529, %v1606
    %v1608 = vpop.f32.mrb[0].mxu0
    %1609 = vmatprep.mubr.f32.mxu0 0.0
    %1610 = vmatmul.mubr.f32.gmra.mrb[0].mxu0 %v1535
    %v1611 = vpop.f32.mrb[0].mxu0
    %v1612 = vadd.f32 %v1529, %v1611
    %v1613 = vpop.f32.mrb[0].mxu0
    %1614 = vmatprep.mubr.f32.mxu0 0.0
    %1615 = vmatmul.mubr.f32.gmra.mrb[0].mxu0 %v1538
    %v1616 = vpop.f32.mrb[0].mxu0
    %v1617 = vadd.f32 %v1529, %v1616
    %v1618 = vpop.f32.mrb[0].mxu0
    %1619 = vdwg.mxu0
    %v1620 = vadd.f32 %v1414, %v1607
    %v1621 = vadd.f32 %v1415, %v1612
    %v1622 = vadd.f32 %v1416, %v1617
    %v1623 = vsel %vm180, %v1620, 0.0
    %1624 = vadd.xlane.f32.xlu0 %v1623
    %v1625 = vpop.xlane.xlu0 %1624
    %v1626 = vsel %vm180, %v1621, 0.0
    %1627 = vadd.xlane.f32.xlu0 %v1626
    %v1628 = vpop.xlane.xlu0 %1627
    %v1629 = vsel %vm180, %v1622, 0.0
    %1630 = vadd.xlane.f32.xlu0 %v1629
    %v1631 = vpop.xlane.xlu0 %1630
    %v1632 = vmul.f32 %v1625, %v1372
    %v1633 = vmul.f32 %v1628, %v1372
    %v1634 = vmul.f32 %v1631, %v1372
    %v1635 = vsub.f32 %v1620, %v1632
    %v1636 = vsub.f32 %v1621, %v1633
    %v1637 = vsub.f32 %v1622, %v1634
    %v1638 = vmul.f32 %v1635, %v1635
    %v1639 = vmul.f32 %v1636, %v1636
    %v1640 = vmul.f32 %v1637, %v1637
    %v1641 = vsel %vm180, %v1638, 0.0
    %1642 = vadd.xlane.f32.xlu0 %v1641
    %v1643 = vpop.xlane.xlu0 %1642
    %v1644 = vsel %vm180, %v1639, 0.0
    %1645 = vadd.xlane.f32.xlu0 %v1644
    %v1646 = vpop.xlane.xlu0 %1645
    %v1647 = vsel %vm180, %v1640, 0.0
    %1648 = vadd.xlane.f32.xlu0 %v1647
    %v1649 = vpop.xlane.xlu0 %1648
    %v1650 = vmul.f32 %v1643, %v1372
    %v1651 = vmul.f32 %v1646, %v1372
    %v1652 = vmul.f32 %v1649, %v1372
    %v1653 = vadd.f32 %v1650, 1e-05
    %v1654 = vadd.f32 %v1651, 1e-05
    %v1655 = vadd.f32 %v1652, 1e-05
    %v1656 = vrsqrt.pop %v1653
    %v1657 = vrsqrt.pop %v1654
    %v1658 = vrsqrt.pop %v1655
    %v1659 = vmul.f32 %v1635, %v1656
    %v1660 = vmul.f32 %v1636, %v1657
    %v1661 = vmul.f32 %v1637, %v1658
    %v1662 = vlaneseq
    %v1663 = vshrl.u32 %v1662, 7
    %v1664 = vsub.s32 0, %v1663
    %v1665 = vrot.slane %v174, %v1664
    %v1666 = vmul.f32 %v1659, %v1665
    %v1667 = vmul.f32 %v1660, %v1665
    %v1668 = vmul.f32 %v1661, %v1665
    %v1669 = vlaneseq
    %v1670 = vshrl.u32 %v1669, 7
    %v1671 = vsub.s32 0, %v1670
    %v1672 = vrot.slane %v175, %v1671
    %v1673 = vadd.f32 %v1666, %v1672
    %v1674 = vadd.f32 %v1667, %v1672
    %v1675 = vadd.f32 %v1668, %v1672
    %v1676 = vld [vmem:[%s1 + $0xc0] sm:$0xff]
    %v1677 = vld [vmem:[%s1 + $0xc8] sm:$0xff]
    %v1678 = vld [vmem:[%s1 + $0xd0] sm:$0xff]
    %v1679 = vld [vmem:[%s1 + $0xd8] sm:$0xff]
    %v1680 = vld [vmem:[%s1 + $0xe0] sm:$0xff]
    %v1681 = vld [vmem:[%s1 + $0xe8] sm:$0xff]
    %v1682 = vld [vmem:[%s1 + $0xf0] sm:$0xff]
    %v1683 = vld [vmem:[%s1 + $0xf8] sm:$0xff]
    %v1684 = vld [vmem:[%s1 + $0x100] sm:$0xff]
    %v1685 = vld [vmem:[%s1 + $0x108] sm:$0xff]
    %v1686 = vld [vmem:[%s1 + $0x110] sm:$0xff]
    %v1687 = vld [vmem:[%s1 + $0x118] sm:$0xff]
    %v1688 = vld [vmem:[%s1 + $0x120] sm:$0xff]
    %v1689 = vld [vmem:[%s1 + $0x128] sm:$0xff]
    %v1690 = vld [vmem:[%s1 + $0x130] sm:$0xff]
    %v1691 = vld [vmem:[%s1 + $0x138] sm:$0xff]
    %v1692 = vld [vmem:[%s1 + $0x140] sm:$0xff]
    %v1693 = vld [vmem:[%s1 + $0x148] sm:$0xff]
    %v1694 = vld [vmem:[%s1 + $0x150] sm:$0xff]
    %v1695 = vld [vmem:[%s1 + $0x158] sm:$0xff]
    %v1696 = vld [vmem:[%s1 + $0x12] sm:$0x1]
    %v1697 = vld [vmem:[%s1 + $0x13] sm:$0x1]
    %v1698 = vld [vmem:[%s1 + $0x14] sm:$0x1]
    %v1699 = vld [vmem:[%s1 + $0x15] sm:$0x1]
    %v1700 = vld [vmem:[%s1 + $0x16] sm:$0x1]
    %v1701 = vld [vmem:[%s1 + $0x17] sm:$0x1]
    %v1702 = vld [vmem:[%s1 + $0x18] sm:$0x1]
    %v1703 = vld [vmem:[%s1 + $0x19] sm:$0x1]
    %v1704 = vlaneseq
    %v1705 = vshrl.u32 %v1704, 7
    %v1706 = vsub.s32 0, %v1705
    %v1707 = vrot.slane %v1696, %v1706
    %v1709 = vsel %vm180, %v1673, 0
    %v1712 = vsel %vm180, %v1674, 0
    %v1715 = vsel %vm180, %v1675, 0
    %1717 = vmatprep.subr.mxu0 0.0
    %1718 = vmatpush1.msra.mxu0 %v1676
    %1719 = vmatprep.subr.mxu0 0.0
    %1720 = vmatpush1.msra.mxu0 %v1677
    %1721 = vmatprep.subr.mxu0 0.0
    %1722 = vmatpush1.msra.mxu0 %v1678
    %1723 = vmatprep.subr.mxu0 0.0
    %1724 = vmatpush1.msra.mxu0 %v1679
    %1725 = vmatprep.subr.mxu0 0.0
    %1726 = vmatpush1.msra.mxu0 0.0
    %1727 = vmatprep.subr.mxu0 0.0
    %1728 = vmatpush1.msra.mxu0 0.0
    %1729 = vmatprep.subr.mxu0 0.0
    %1730 = vmatpush1.msra.mxu0 0.0
    %1731 = vmatprep.subr.mxu0 0.0
    %1732 = vmatpush1.msra.mxu0 0.0
    %1733 = vmatprep.subr.mxu0 0.0
    %1734 = vmatpush1.msra.mxu0 0.0
    %1735 = vmatprep.subr.mxu0 0.0
    %1736 = vmatpush1.msra.mxu0 0.0
    %1737 = vmatprep.subr.mxu0 0.0
    %1738 = vmatpush1.msra.mxu0 0.0
    %1739 = vmatprep.subr.mxu0 0.0
    %1740 = vmatpush1.msra.mxu0 0.0
    %1741 = vmatprep.subr.mxu0 0.0
    %1742 = vmatpush1.msra.mxu0 0.0
    %1743 = vmatprep.subr.mxu0 0.0
    %1744 = vmatpush1.msra.mxu0 0.0
    %1745 = vmatprep.subr.mxu0 0.0
    %1746 = vmatpush1.msra.mxu0 0.0
    %1747 = vmatprep.subr.mxu0 0.0
    %1748 = vmatpush1.msra.mxu0 0.0
    %1749 = vmatprep.subr.mxu0 0.0
    %1750 = vmatpush1.msra.mxu0 0.0
    %1751 = vmatprep.subr.mxu0 0.0
    %1752 = vmatpush1.msra.mxu0 0.0
    %1753 = vmatprep.subr.mxu0 0.0
    %1754 = vmatpush1.msra.mxu0 0.0
    %1755 = vmatprep.subr.mxu0 0.0
    %1756 = vmatpush1.msra.mxu0 0.0
    %1757 = vmatprep.subr.mxu0 0.0
    %1758 = vmatpush1.msra.mxu0 0.0
    %1759 = vmatprep.subr.mxu0 0.0
    %1760 = vmatpush1.msra.mxu0 0.0
    %1761 = vmatprep.subr.mxu0 0.0
    %1762 = vmatpush1.msra.mxu0 0.0
    %1763 = vmatprep.subr.mxu0 0.0
    %1764 = vmatpush1.msra.mxu0 0.0
    %1765 = vmatprep.subr.mxu0 0.0
    %1766 = vmatpush1.msra.mxu0 0.0
    %1767 = vmatprep.subr.mxu0 0.0
    %1768 = vmatpush1.msra.mxu0 0.0
    %1769 = vmatprep.subr.mxu0 0.0
    %1770 = vmatpush1.msra.mxu0 0.0
    %1771 = vmatprep.subr.mxu0 0.0
    %1772 = vmatpush1.msra.mxu0 0.0
    %1773 = vmatprep.subr.mxu0 0.0
    %1774 = vmatpush1.msra.mxu0 0.0
    %1775 = vmatprep.subr.mxu0 0.0
    %1776 = vmatpush1.msra.mxu0 0.0
    %1777 = vmatprep.subr.mxu0 0.0
    %1778 = vmatpush1.msra.mxu0 0.0
    %1779 = vmatprep.subr.mxu0 0.0
    %1780 = vmatpush1.msra.mxu0 0.0
    %1781 = vmatprep.mubr.f32.mxu0 0.0
    %1782 = vmatmul.mubr.f32.gmra.mrb[0].mxu0 %v1709
    %v1783 = vpop.f32.mrb[0].mxu0
    %v1784 = vadd.f32 %v1707, %v1783
    %v1785 = vpop.f32.mrb[0].mxu0
    %1786 = vmatprep.mubr.f32.mxu0 0.0
    %1787 = vmatmul.mubr.f32.gmra.mrb[0].mxu0 %v1712
    %v1788 = vpop.f32.mrb[0].mxu0
    %v1789 = vadd.f32 %v1707, %v1788
    %v1790 = vpop.f32.mrb[0].mxu0
    %1791 = vmatprep.mubr.f32.mxu0 0.0
    %1792 = vmatmul.mubr.f32.gmra.mrb[0].mxu0 %v1715
    %v1793 = vpop.f32.mrb[0].mxu0
    %v1794 = vadd.f32 %v1707, %v1793
    %v1795 = vpop.f32.mrb[0].mxu0
    %1796 = vdwg.mxu0
    %1800 = vrot.lane.b32.xlu0 %v1784, 96
    %v1801 = vpop.permute.xlu0 %1800
    %1802 = vrot.lane.b32.xlu0 %v1789, 96
    %v1803 = vpop.permute.xlu0 %1802
    %1804 = vrot.lane.b32.xlu0 %v1794, 96
    %v1805 = vpop.permute.xlu0 %1804
    %v1806 = vsel %vm279, %v1784, 0
    %v1808 = vsel %vm279, %v1789, 0
    %v1810 = vsel %vm279, %v1794, 0
    %v1812 = vsel %vm279, %v1801, 0
    %v1814 = vsel %vm279, %v1803, 0
    %v1816 = vsel %vm279, %v1805, 0
    %1818 = vmatprep.subr.mxu0 0.0
    %1819 = vmatpush1.xpose.msra.mxu0 %v1812
    %1820 = vmatprep.subr.mxu0 0.0
    %1821 = vmatpush1.xpose.msra.mxu0 %v1814
    %1822 = vmatprep.subr.mxu0 0.0
    %1823 = vmatpush1.xpose.msra.mxu0 %v1816
    %1824 = vmatprep.subr.mxu0 0.0
    %1825 = vmatpush1.xpose.msra.mxu0 0.0
    %1826 = vmatprep.subr.mxu0 0.0
    %1827 = vmatpush1.xpose.msra.mxu0 0.0
    %1828 = vmatprep.subr.mxu0 0.0
    %1829 = vmatpush1.xpose.msra.mxu0 0.0
    %1830 = vmatprep.subr.mxu0 0.0
    %1831 = vmatpush1.xpose.msra.mxu0 0.0
    %1832 = vmatprep.subr.mxu0 0.0
    %1833 = vmatpush1.xpose.msra.mxu0 0.0
    %1834 = vmatprep.subr.mxu0 0.0
    %1835 = vmatpush1.xpose.msra.mxu0 0.0
    %1836 = vmatprep.subr.mxu0 0.0
    %1837 = vmatpush1.xpose.msra.mxu0 0.0
    %1838 = vmatprep.subr.mxu0 0.0
    %1839 = vmatpush1.xpose.msra.mxu0 0.0
    %1840 = vmatprep.subr.mxu0 0.0
    %1841 = vmatpush1.xpose.msra.mxu0 0.0
    %1842 = vmatprep.subr.mxu0 0.0
    %1843 = vmatpush1.xpose.msra.mxu0 0.0
    %1844 = vmatprep.subr.mxu0 0.0
    %1845 = vmatpush1.xpose.msra.mxu0 0.0
    %1846 = vmatprep.subr.mxu0 0.0
    %1847 = vmatpush1.xpose.msra.mxu0 0.0
    %1848 = vmatprep.subr.mxu0 0.0
    %1849 = vmatpush1.xpose.msra.mxu0 0.0
    %1850 = vmatprep.subr.mxu0 0.0
    %1851 = vmatpush1.xpose.msra.mxu0 0.0
    %1852 = vmatprep.subr.mxu0 0.0
    %1853 = vmatpush1.xpose.msra.mxu0 0.0
    %1854 = vmatprep.subr.mxu0 0.0
    %1855 = vmatpush1.xpose.msra.mxu0 0.0
    %1856 = vmatprep.subr.mxu0 0.0
    %1857 = vmatpush1.xpose.msra.mxu0 0.0
    %1858 = vmatprep.subr.mxu0 0.0
    %1859 = vmatpush1.xpose.msra.mxu0 0.0
    %1860 = vmatprep.subr.mxu0 0.0
    %1861 = vmatpush1.xpose.msra.mxu0 0.0
    %1862 = vmatprep.subr.mxu0 0.0
    %1863 = vmatpush1.xpose.msra.mxu0 0.0
    %1864 = vmatprep.subr.mxu0 0.0
    %1865 = vmatpush1.xpose.msra.mxu0 0.0
    %1866 = vmatprep.subr.mxu0 0.0
    %1867 = vmatpush1.xpose.msra.mxu0 0.0
    %1868 = vmatprep.subr.mxu0 0.0
    %1869 = vmatpush1.xpose.msra.mxu0 0.0
    %1870 = vmatprep.subr.mxu0 0.0
    %1871 = vmatpush1.xpose.msra.mxu0 0.0
    %1872 = vmatprep.subr.mxu0 0.0
    %1873 = vmatpush1.xpose.msra.mxu0 0.0
    %1874 = vmatprep.subr.mxu0 0.0
    %1875 = vmatpush1.xpose.msra.mxu0 0.0
    %1876 = vmatprep.subr.mxu0 0.0
    %1877 = vmatpush1.xpose.msra.mxu0 0.0
    %1878 = vmatprep.subr.mxu0 0.0
    %1879 = vmatpush1.xpose.msra.mxu0 0.0
    %1880 = vmatprep.subr.mxu0 0.0
    %1881 = vmatpush1.xpose.msra.mxu0 0.0
    %1882 = vmatprep.mubr.f32.mxu0 0.0
    %1883 = vmatmul.mubr.f32.gmra.mrb[0].mxu0 %v1806
    %v1884 = vpop.f32.mrb[0].mxu0
    %v1885 = vadd.f32 0.0, %v1884
    %v1886 = vpop.f32.mrb[0].mxu0
    %1887 = vmatprep.mubr.f32.mxu0 0.0
    %1888 = vmatmul.mubr.f32.gmra.mrb[0].mxu0 %v1808
    %v1889 = vpop.f32.mrb[0].mxu0
    %v1890 = vadd.f32 0.0, %v1889
    %v1891 = vpop.f32.mrb[0].mxu0
    %1892 = vmatprep.mubr.f32.mxu0 0.0
    %1893 = vmatmul.mubr.f32.gmra.mrb[0].mxu0 %v1810
    %v1894 = vpop.f32.mrb[0].mxu0
    %v1895 = vadd.f32 0.0, %v1894
    %v1896 = vpop.f32.mrb[0].mxu0
    %1897 = vdwg.mxu0
    %1898 = vrot.lane.b32.xlu0 %v1784, 120
    %v1899 = vpop.permute.xlu0 %1898
    %1900 = vrot.lane.b32.xlu0 %v1789, 120
    %v1901 = vpop.permute.xlu0 %1900
    %1902 = vrot.lane.b32.xlu0 %v1794, 120
    %v1903 = vpop.permute.xlu0 %1902
    %1904 = vrot.lane.b32.xlu0 %v1784, 88
    %v1905 = vpop.permute.xlu0 %1904
    %1906 = vrot.lane.b32.xlu0 %v1789, 88
    %v1907 = vpop.permute.xlu0 %1906
    %1908 = vrot.lane.b32.xlu0 %v1794, 88
    %v1909 = vpop.permute.xlu0 %1908
    %v1910 = vsel %vm279, %v1899, 0
    %v1912 = vsel %vm279, %v1901, 0
    %v1914 = vsel %vm279, %v1903, 0
    %v1916 = vsel %vm279, %v1905, 0
    %v1918 = vsel %vm279, %v1907, 0
    %v1920 = vsel %vm279, %v1909, 0
    %1922 = vmatprep.subr.mxu0 0.0
    %1923 = vmatpush1.xpose.msra.mxu0 %v1916
    %1924 = vmatprep.subr.mxu0 0.0
    %1925 = vmatpush1.xpose.msra.mxu0 %v1918
    %1926 = vmatprep.subr.mxu0 0.0
    %1927 = vmatpush1.xpose.msra.mxu0 %v1920
    %1928 = vmatprep.subr.mxu0 0.0
    %1929 = vmatpush1.xpose.msra.mxu0 0.0
    %1930 = vmatprep.subr.mxu0 0.0
    %1931 = vmatpush1.xpose.msra.mxu0 0.0
    %1932 = vmatprep.subr.mxu0 0.0
    %1933 = vmatpush1.xpose.msra.mxu0 0.0
    %1934 = vmatprep.subr.mxu0 0.0
    %1935 = vmatpush1.xpose.msra.mxu0 0.0
    %1936 = vmatprep.subr.mxu0 0.0
    %1937 = vmatpush1.xpose.msra.mxu0 0.0
    %1938 = vmatprep.subr.mxu0 0.0
    %1939 = vmatpush1.xpose.msra.mxu0 0.0
    %1940 = vmatprep.subr.mxu0 0.0
    %1941 = vmatpush1.xpose.msra.mxu0 0.0
    %1942 = vmatprep.subr.mxu0 0.0
    %1943 = vmatpush1.xpose.msra.mxu0 0.0
    %1944 = vmatprep.subr.mxu0 0.0
    %1945 = vmatpush1.xpose.msra.mxu0 0.0
    %1946 = vmatprep.subr.mxu0 0.0
    %1947 = vmatpush1.xpose.msra.mxu0 0.0
    %1948 = vmatprep.subr.mxu0 0.0
    %1949 = vmatpush1.xpose.msra.mxu0 0.0
    %1950 = vmatprep.subr.mxu0 0.0
    %1951 = vmatpush1.xpose.msra.mxu0 0.0
    %1952 = vmatprep.subr.mxu0 0.0
    %1953 = vmatpush1.xpose.msra.mxu0 0.0
    %1954 = vmatprep.subr.mxu0 0.0
    %1955 = vmatpush1.xpose.msra.mxu0 0.0
    %1956 = vmatprep.subr.mxu0 0.0
    %1957 = vmatpush1.xpose.msra.mxu0 0.0
    %1958 = vmatprep.subr.mxu0 0.0
    %1959 = vmatpush1.xpose.msra.mxu0 0.0
    %1960 = vmatprep.subr.mxu0 0.0
    %1961 = vmatpush1.xpose.msra.mxu0 0.0
    %1962 = vmatprep.subr.mxu0 0.0
    %1963 = vmatpush1.xpose.msra.mxu0 0.0
    %1964 = vmatprep.subr.mxu0 0.0
    %1965 = vmatpush1.xpose.msra.mxu0 0.0
    %1966 = vmatprep.subr.mxu0 0.0
    %1967 = vmatpush1.xpose.msra.mxu0 0.0
    %1968 = vmatprep.subr.mxu0 0.0
    %1969 = vmatpush1.xpose.msra.mxu0 0.0
    %1970 = vmatprep.subr.mxu0 0.0
    %1971 = vmatpush1.xpose.msra.mxu0 0.0
    %1972 = vmatprep.subr.mxu0 0.0
    %1973 = vmatpush1.xpose.msra.mxu0 0.0
    %1974 = vmatprep.subr.mxu0 0.0
    %1975 = vmatpush1.xpose.msra.mxu0 0.0
    %1976 = vmatprep.subr.mxu0 0.0
    %1977 = vmatpush1.xpose.msra.mxu0 0.0
    %1978 = vmatprep.subr.mxu0 0.0
    %1979 = vmatpush1.xpose.msra.mxu0 0.0
    %1980 = vmatprep.subr.mxu0 0.0
    %1981 = vmatpush1.xpose.msra.mxu0 0.0
    %1982 = vmatprep.subr.mxu0 0.0
    %1983 = vmatpush1.xpose.msra.mxu0 0.0
    %1984 = vmatprep.subr.mxu0 0.0
    %1985 = vmatpush1.xpose.msra.mxu0 0.0
    %1986 = vmatprep.mubr.f32.mxu0 0.0
    %1987 = vmatmul.mubr.f32.gmra.mrb[0].mxu0 %v1910
    %v1988 = vpop.f32.mrb[0].mxu0
    %v1989 = vadd.f32 0.0, %v1988
    %v1990 = vpop.f32.mrb[0].mxu0
    %1991 = vmatprep.mubr.f32.mxu0 0.0
    %1992 = vmatmul.mubr.f32.gmra.mrb[0].mxu0 %v1912
    %v1993 = vpop.f32.mrb[0].mxu0
    %v1994 = vadd.f32 0.0, %v1993
    %v1995 = vpop.f32.mrb[0].mxu0
    %1996 = vmatprep.mubr.f32.mxu0 0.0
    %1997 = vmatmul.mubr.f32.gmra.mrb[0].mxu0 %v1914
    %v1998 = vpop.f32.mrb[0].mxu0
    %v1999 = vadd.f32 0.0, %v1998
    %v2000 = vpop.f32.mrb[0].mxu0
    %2001 = vdwg.mxu0
    %2002 = vrot.lane.b32.xlu0 %v1784, 112
    %v2003 = vpop.permute.xlu0 %2002
    %2004 = vrot.lane.b32.xlu0 %v1789, 112
    %v2005 = vpop.permute.xlu0 %2004
    %2006 = vrot.lane.b32.xlu0 %v1794, 112
    %v2007 = vpop.permute.xlu0 %2006
    %2008 = vrot.lane.b32.xlu0 %v1784, 80
    %v2009 = vpop.permute.xlu0 %2008
    %2010 = vrot.lane.b32.xlu0 %v1789, 80
    %v2011 = vpop.permute.xlu0 %2010
    %2012 = vrot.lane.b32.xlu0 %v1794, 80
    %v2013 = vpop.permute.xlu0 %2012
    %v2014 = vsel %vm279, %v2003, 0
    %v2016 = vsel %vm279, %v2005, 0
    %v2018 = vsel %vm279, %v2007, 0
    %v2020 = vsel %vm279, %v2009, 0
    %v2022 = vsel %vm279, %v2011, 0
    %v2024 = vsel %vm279, %v2013, 0
    %2026 = vmatprep.subr.mxu0 0.0
    %2027 = vmatpush1.xpose.msra.mxu0 %v2020
    %2028 = vmatprep.subr.mxu0 0.0
    %2029 = vmatpush1.xpose.msra.mxu0 %v2022
    %2030 = vmatprep.subr.mxu0 0.0
    %2031 = vmatpush1.xpose.msra.mxu0 %v2024
    %2032 = vmatprep.subr.mxu0 0.0
    %2033 = vmatpush1.xpose.msra.mxu0 0.0
    %2034 = vmatprep.subr.mxu0 0.0
    %2035 = vmatpush1.xpose.msra.mxu0 0.0
    %2036 = vmatprep.subr.mxu0 0.0
    %2037 = vmatpush1.xpose.msra.mxu0 0.0
    %2038 = vmatprep.subr.mxu0 0.0
    %2039 = vmatpush1.xpose.msra.mxu0 0.0
    %2040 = vmatprep.subr.mxu0 0.0
    %2041 = vmatpush1.xpose.msra.mxu0 0.0
    %2042 = vmatprep.subr.mxu0 0.0
    %2043 = vmatpush1.xpose.msra.mxu0 0.0
    %2044 = vmatprep.subr.mxu0 0.0
    %2045 = vmatpush1.xpose.msra.mxu0 0.0
    %2046 = vmatprep.subr.mxu0 0.0
    %2047 = vmatpush1.xpose.msra.mxu0 0.0
    %2048 = vmatprep.subr.mxu0 0.0
    %2049 = vmatpush1.xpose.msra.mxu0 0.0
    %2050 = vmatprep.subr.mxu0 0.0
    %2051 = vmatpush1.xpose.msra.mxu0 0.0
    %2052 = vmatprep.subr.mxu0 0.0
    %2053 = vmatpush1.xpose.msra.mxu0 0.0
    %2054 = vmatprep.subr.mxu0 0.0
    %2055 = vmatpush1.xpose.msra.mxu0 0.0
    %2056 = vmatprep.subr.mxu0 0.0
    %2057 = vmatpush1.xpose.msra.mxu0 0.0
    %2058 = vmatprep.subr.mxu0 0.0
    %2059 = vmatpush1.xpose.msra.mxu0 0.0
    %2060 = vmatprep.subr.mxu0 0.0
    %2061 = vmatpush1.xpose.msra.mxu0 0.0
    %2062 = vmatprep.subr.mxu0 0.0
    %2063 = vmatpush1.xpose.msra.mxu0 0.0
    %2064 = vmatprep.subr.mxu0 0.0
    %2065 = vmatpush1.xpose.msra.mxu0 0.0
    %2066 = vmatprep.subr.mxu0 0.0
    %2067 = vmatpush1.xpose.msra.mxu0 0.0
    %2068 = vmatprep.subr.mxu0 0.0
    %2069 = vmatpush1.xpose.msra.mxu0 0.0
    %2070 = vmatprep.subr.mxu0 0.0
    %2071 = vmatpush1.xpose.msra.mxu0 0.0
    %2072 = vmatprep.subr.mxu0 0.0
    %2073 = vmatpush1.xpose.msra.mxu0 0.0
    %2074 = vmatprep.subr.mxu0 0.0
    %2075 = vmatpush1.xpose.msra.mxu0 0.0
    %2076 = vmatprep.subr.mxu0 0.0
    %2077 = vmatpush1.xpose.msra.mxu0 0.0
    %2078 = vmatprep.subr.mxu0 0.0
    %2079 = vmatpush1.xpose.msra.mxu0 0.0
    %2080 = vmatprep.subr.mxu0 0.0
    %2081 = vmatpush1.xpose.msra.mxu0 0.0
    %2082 = vmatprep.subr.mxu0 0.0
    %2083 = vmatpush1.xpose.msra.mxu0 0.0
    %2084 = vmatprep.subr.mxu0 0.0
    %2085 = vmatpush1.xpose.msra.mxu0 0.0
    %2086 = vmatprep.subr.mxu0 0.0
    %2087 = vmatpush1.xpose.msra.mxu0 0.0
    %2088 = vmatprep.subr.mxu0 0.0
    %2089 = vmatpush1.xpose.msra.mxu0 0.0
    %2090 = vmatprep.mubr.f32.mxu0 0.0
    %2091 = vmatmul.mubr.f32.gmra.mrb[0].mxu0 %v2014
    %v2092 = vpop.f32.mrb[0].mxu0
    %v2093 = vadd.f32 0.0, %v2092
    %v2094 = vpop.f32.mrb[0].mxu0
    %2095 = vmatprep.mubr.f32.mxu0 0.0
    %2096 = vmatmul.mubr.f32.gmra.mrb[0].mxu0 %v2016
    %v2097 = vpop.f32.mrb[0].mxu0
    %v2098 = vadd.f32 0.0, %v2097
    %v2099 = vpop.f32.mrb[0].mxu0
    %2100 = vmatprep.mubr.f32.mxu0 0.0
    %2101 = vmatmul.mubr.f32.gmra.mrb[0].mxu0 %v2018
    %v2102 = vpop.f32.mrb[0].mxu0
    %v2103 = vadd.f32 0.0, %v2102
    %v2104 = vpop.f32.mrb[0].mxu0
    %2105 = vdwg.mxu0
    %2106 = vrot.lane.b32.xlu0 %v1784, 104
    %v2107 = vpop.permute.xlu0 %2106
    %2108 = vrot.lane.b32.xlu0 %v1789, 104
    %v2109 = vpop.permute.xlu0 %2108
    %2110 = vrot.lane.b32.xlu0 %v1794, 104
    %v2111 = vpop.permute.xlu0 %2110
    %2112 = vrot.lane.b32.xlu0 %v1784, 72
    %v2113 = vpop.permute.xlu0 %2112
    %2114 = vrot.lane.b32.xlu0 %v1789, 72
    %v2115 = vpop.permute.xlu0 %2114
    %2116 = vrot.lane.b32.xlu0 %v1794, 72
    %v2117 = vpop.permute.xlu0 %2116
    %v2118 = vsel %vm279, %v2107, 0
    %v2120 = vsel %vm279, %v2109, 0
    %v2122 = vsel %vm279, %v2111, 0
    %v2124 = vsel %vm279, %v2113, 0
    %v2126 = vsel %vm279, %v2115, 0
    %v2128 = vsel %vm279, %v2117, 0
    %2130 = vmatprep.subr.mxu0 0.0
    %2131 = vmatpush1.xpose.msra.mxu0 %v2124
    %2132 = vmatprep.subr.mxu0 0.0
    %2133 = vmatpush1.xpose.msra.mxu0 %v2126
    %2134 = vmatprep.subr.mxu0 0.0
    %2135 = vmatpush1.xpose.msra.mxu0 %v2128
    %2136 = vmatprep.subr.mxu0 0.0
    %2137 = vmatpush1.xpose.msra.mxu0 0.0
    %2138 = vmatprep.subr.mxu0 0.0
    %2139 = vmatpush1.xpose.msra.mxu0 0.0
    %2140 = vmatprep.subr.mxu0 0.0
    %2141 = vmatpush1.xpose.msra.mxu0 0.0
    %2142 = vmatprep.subr.mxu0 0.0
    %2143 = vmatpush1.xpose.msra.mxu0 0.0
    %2144 = vmatprep.subr.mxu0 0.0
    %2145 = vmatpush1.xpose.msra.mxu0 0.0
    %2146 = vmatprep.subr.mxu0 0.0
    %2147 = vmatpush1.xpose.msra.mxu0 0.0
    %2148 = vmatprep.subr.mxu0 0.0
    %2149 = vmatpush1.xpose.msra.mxu0 0.0
    %2150 = vmatprep.subr.mxu0 0.0
    %2151 = vmatpush1.xpose.msra.mxu0 0.0
    %2152 = vmatprep.subr.mxu0 0.0
    %2153 = vmatpush1.xpose.msra.mxu0 0.0
    %2154 = vmatprep.subr.mxu0 0.0
    %2155 = vmatpush1.xpose.msra.mxu0 0.0
    %2156 = vmatprep.subr.mxu0 0.0
    %2157 = vmatpush1.xpose.msra.mxu0 0.0
    %2158 = vmatprep.subr.mxu0 0.0
    %2159 = vmatpush1.xpose.msra.mxu0 0.0
    %2160 = vmatprep.subr.mxu0 0.0
    %2161 = vmatpush1.xpose.msra.mxu0 0.0
    %2162 = vmatprep.subr.mxu0 0.0
    %2163 = vmatpush1.xpose.msra.mxu0 0.0
    %2164 = vmatprep.subr.mxu0 0.0
    %2165 = vmatpush1.xpose.msra.mxu0 0.0
    %2166 = vmatprep.subr.mxu0 0.0
    %2167 = vmatpush1.xpose.msra.mxu0 0.0
    %2168 = vmatprep.subr.mxu0 0.0
    %2169 = vmatpush1.xpose.msra.mxu0 0.0
    %2170 = vmatprep.subr.mxu0 0.0
    %2171 = vmatpush1.xpose.msra.mxu0 0.0
    %2172 = vmatprep.subr.mxu0 0.0
    %2173 = vmatpush1.xpose.msra.mxu0 0.0
    %2174 = vmatprep.subr.mxu0 0.0
    %2175 = vmatpush1.xpose.msra.mxu0 0.0
    %2176 = vmatprep.subr.mxu0 0.0
    %2177 = vmatpush1.xpose.msra.mxu0 0.0
    %2178 = vmatprep.subr.mxu0 0.0
    %2179 = vmatpush1.xpose.msra.mxu0 0.0
    %2180 = vmatprep.subr.mxu0 0.0
    %2181 = vmatpush1.xpose.msra.mxu0 0.0
    %2182 = vmatprep.subr.mxu0 0.0
    %2183 = vmatpush1.xpose.msra.mxu0 0.0
    %2184 = vmatprep.subr.mxu0 0.0
    %2185 = vmatpush1.xpose.msra.mxu0 0.0
    %2186 = vmatprep.subr.mxu0 0.0
    %2187 = vmatpush1.xpose.msra.mxu0 0.0
    %2188 = vmatprep.subr.mxu0 0.0
    %2189 = vmatpush1.xpose.msra.mxu0 0.0
    %2190 = vmatprep.subr.mxu0 0.0
    %2191 = vmatpush1.xpose.msra.mxu0 0.0
    %2192 = vmatprep.subr.mxu0 0.0
    %2193 = vmatpush1.xpose.msra.mxu0 0.0
    %2194 = vmatprep.mubr.f32.mxu0 0.0
    %2195 = vmatmul.mubr.f32.gmra.mrb[0].mxu0 %v2118
    %v2196 = vpop.f32.mrb[0].mxu0
    %v2197 = vadd.f32 0.0, %v2196
    %v2198 = vpop.f32.mrb[0].mxu0
    %2199 = vmatprep.mubr.f32.mxu0 0.0
    %2200 = vmatmul.mubr.f32.gmra.mrb[0].mxu0 %v2120
    %v2201 = vpop.f32.mrb[0].mxu0
    %v2202 = vadd.f32 0.0, %v2201
    %v2203 = vpop.f32.mrb[0].mxu0
    %2204 = vmatprep.mubr.f32.mxu0 0.0
    %2205 = vmatmul.mubr.f32.gmra.mrb[0].mxu0 %v2122
    %v2206 = vpop.f32.mrb[0].mxu0
    %v2207 = vadd.f32 0.0, %v2206
    %v2208 = vpop.f32.mrb[0].mxu0
    %2209 = vdwg.mxu0
    %v2210 = vadd.f32 %v1885, %v15
    %v2211 = vadd.f32 %v1890, %v16
    %v2212 = vadd.f32 %v1895, %v17
    %v2213 = vadd.f32 %v1989, %v18
    %v2214 = vadd.f32 %v1994, %v19
    %v2215 = vadd.f32 %v1999, %v20
    %v2216 = vadd.f32 %v2093, %v21
    %v2217 = vadd.f32 %v2098, %v22
    %v2218 = vadd.f32 %v2103, %v23
    %v2219 = vadd.f32 %v2197, %v24
    %v2220 = vadd.f32 %v2202, %v25
    %v2221 = vadd.f32 %v2207, %v26
    %v2222 = vsel %vm696, %v2210, -inf
    %2223 = vmax.xlane.f32.xlu0 %v2222
    %v2224 = vpop.xlane.xlu0 %2223
    %v2225 = vsel %vm696, %v2211, -inf
    %2226 = vmax.xlane.f32.xlu0 %v2225
    %v2227 = vpop.xlane.xlu0 %2226
    %v2228 = vsel %vm696, %v2212, -inf
    %2229 = vmax.xlane.f32.xlu0 %v2228
    %v2230 = vpop.xlane.xlu0 %2229
    %v2231 = vsel %vm696, %v2213, -inf
    %2232 = vmax.xlane.f32.xlu0 %v2231
    %v2233 = vpop.xlane.xlu0 %2232
    %v2234 = vsel %vm696, %v2214, -inf
    %2235 = vmax.xlane.f32.xlu0 %v2234
    %v2236 = vpop.xlane.xlu0 %2235
    %v2237 = vsel %vm696, %v2215, -inf
    %2238 = vmax.xlane.f32.xlu0 %v2237
    %v2239 = vpop.xlane.xlu0 %2238
    %v2240 = vsel %vm696, %v2216, -inf
    %2241 = vmax.xlane.f32.xlu0 %v2240
    %v2242 = vpop.xlane.xlu0 %2241
    %v2243 = vsel %vm696, %v2217, -inf
    %2244 = vmax.xlane.f32.xlu0 %v2243
    %v2245 = vpop.xlane.xlu0 %2244
    %v2246 = vsel %vm696, %v2218, -inf
    %2247 = vmax.xlane.f32.xlu0 %v2246
    %v2248 = vpop.xlane.xlu0 %2247
    %v2249 = vsel %vm696, %v2219, -inf
    %2250 = vmax.xlane.f32.xlu0 %v2249
    %v2251 = vpop.xlane.xlu0 %2250
    %v2252 = vsel %vm696, %v2220, -inf
    %2253 = vmax.xlane.f32.xlu0 %v2252
    %v2254 = vpop.xlane.xlu0 %2253
    %v2255 = vsel %vm696, %v2221, -inf
    %2256 = vmax.xlane.f32.xlu0 %v2255
    %v2257 = vpop.xlane.xlu0 %2256
    %v2258 = vsub.f32 %v2210, %v2224
    %v2259 = vsub.f32 %v2211, %v2227
    %v2260 = vsub.f32 %v2212, %v2230
    %v2261 = vsub.f32 %v2213, %v2233
    %v2262 = vsub.f32 %v2214, %v2236
    %v2263 = vsub.f32 %v2215, %v2239
    %v2264 = vsub.f32 %v2216, %v2242
    %v2265 = vsub.f32 %v2217, %v2245
    %v2266 = vsub.f32 %v2218, %v2248
    %v2267 = vsub.f32 %v2219, %v2251
    %v2268 = vsub.f32 %v2220, %v2254
    %v2269 = vsub.f32 %v2221, %v2257
    %v2270 = vmul.f32 %v2258, 1.442695
    %v2271 = vpow.pop %v2270
    %v2272 = vmul.f32 %v2259, 1.442695
    %v2273 = vpow.pop %v2272
    %v2274 = vmul.f32 %v2260, 1.442695
    %v2275 = vpow.pop %v2274
    %v2276 = vmul.f32 %v2261, 1.442695
    %v2277 = vpow.pop %v2276
    %v2278 = vmul.f32 %v2262, 1.442695
    %v2279 = vpow.pop %v2278
    %v2280 = vmul.f32 %v2263, 1.442695
    %v2281 = vpow.pop %v2280
    %v2282 = vmul.f32 %v2264, 1.442695
    %v2283 = vpow.pop %v2282
    %v2284 = vmul.f32 %v2265, 1.442695
    %v2285 = vpow.pop %v2284
    %v2286 = vmul.f32 %v2266, 1.442695
    %v2287 = vpow.pop %v2286
    %v2288 = vmul.f32 %v2267, 1.442695
    %v2289 = vpow.pop %v2288
    %v2290 = vmul.f32 %v2268, 1.442695
    %v2291 = vpow.pop %v2290
    %v2292 = vmul.f32 %v2269, 1.442695
    %v2293 = vpow.pop %v2292
    %v2294 = vsel %vm696, %v2271, 0.0
    %2295 = vadd.xlane.f32.xlu0 %v2294
    %v2296 = vpop.xlane.xlu0 %2295
    %v2297 = vsel %vm696, %v2273, 0.0
    %2298 = vadd.xlane.f32.xlu0 %v2297
    %v2299 = vpop.xlane.xlu0 %2298
    %v2300 = vsel %vm696, %v2275, 0.0
    %2301 = vadd.xlane.f32.xlu0 %v2300
    %v2302 = vpop.xlane.xlu0 %2301
    %v2303 = vsel %vm696, %v2277, 0.0
    %2304 = vadd.xlane.f32.xlu0 %v2303
    %v2305 = vpop.xlane.xlu0 %2304
    %v2306 = vsel %vm696, %v2279, 0.0
    %2307 = vadd.xlane.f32.xlu0 %v2306
    %v2308 = vpop.xlane.xlu0 %2307
    %v2309 = vsel %vm696, %v2281, 0.0
    %2310 = vadd.xlane.f32.xlu0 %v2309
    %v2311 = vpop.xlane.xlu0 %2310
    %v2312 = vsel %vm696, %v2283, 0.0
    %2313 = vadd.xlane.f32.xlu0 %v2312
    %v2314 = vpop.xlane.xlu0 %2313
    %v2315 = vsel %vm696, %v2285, 0.0
    %2316 = vadd.xlane.f32.xlu0 %v2315
    %v2317 = vpop.xlane.xlu0 %2316
    %v2318 = vsel %vm696, %v2287, 0.0
    %2319 = vadd.xlane.f32.xlu0 %v2318
    %v2320 = vpop.xlane.xlu0 %2319
    %v2321 = vsel %vm696, %v2289, 0.0
    %2322 = vadd.xlane.f32.xlu0 %v2321
    %v2323 = vpop.xlane.xlu0 %2322
    %v2324 = vsel %vm696, %v2291, 0.0
    %2325 = vadd.xlane.f32.xlu0 %v2324
    %v2326 = vpop.xlane.xlu0 %2325
    %v2327 = vsel %vm696, %v2293, 0.0
    %2328 = vadd.xlane.f32.xlu0 %v2327
    %v2329 = vpop.xlane.xlu0 %2328
    %v2330 = vrcp.pop %v2296
    %v2331 = vmul.f32 %v2271, %v2330
    %v2332 = vrcp.pop %v2299
    %v2333 = vmul.f32 %v2273, %v2332
    %v2334 = vrcp.pop %v2302
    %v2335 = vmul.f32 %v2275, %v2334
    %v2336 = vrcp.pop %v2305
    %v2337 = vmul.f32 %v2277, %v2336
    %v2338 = vrcp.pop %v2308
    %v2339 = vmul.f32 %v2279, %v2338
    %v2340 = vrcp.pop %v2311
    %v2341 = vmul.f32 %v2281, %v2340
    %v2342 = vrcp.pop %v2314
    %v2343 = vmul.f32 %v2283, %v2342
    %v2344 = vrcp.pop %v2317
    %v2345 = vmul.f32 %v2285, %v2344
    %v2346 = vrcp.pop %v2320
    %v2347 = vmul.f32 %v2287, %v2346
    %v2348 = vrcp.pop %v2323
    %v2349 = vmul.f32 %v2289, %v2348
    %v2350 = vrcp.pop %v2326
    %v2351 = vmul.f32 %v2291, %v2350
    %v2352 = vrcp.pop %v2329
    %v2353 = vmul.f32 %v2293, %v2352
    %2354 = vrot.lane.b32.xlu0 %v1784, 64
    %v2355 = vpop.permute.xlu0 %2354
    %2356 = vrot.lane.b32.xlu0 %v1789, 64
    %v2357 = vpop.permute.xlu0 %2356
    %2358 = vrot.lane.b32.xlu0 %v1794, 64
    %v2359 = vpop.permute.xlu0 %2358
    %v2364 = vsel %vm696, %v2331, 0
    %v2367 = vsel %vm696, %v2333, 0
    %v2370 = vsel %vm696, %v2335, 0
    %2372 = vmatprep.subr.mxu0 0.0
    %2373 = vmatpush1.msra.mxu0 %v2355
    %2374 = vmatprep.subr.mxu0 0.0
    %2375 = vmatpush1.msra.mxu0 %v2357
    %2376 = vmatprep.subr.mxu0 0.0
    %2377 = vmatpush1.msra.mxu0 %v2359
    %2378 = vmatprep.subr.mxu0 0.0
    %2379 = vmatpush1.msra.mxu0 0.0
    %2380 = vmatprep.subr.mxu0 0.0
    %2381 = vmatpush1.msra.mxu0 0.0
    %2382 = vmatprep.subr.mxu0 0.0
    %2383 = vmatpush1.msra.mxu0 0.0
    %2384 = vmatprep.subr.mxu0 0.0
    %2385 = vmatpush1.msra.mxu0 0.0
    %2386 = vmatprep.subr.mxu0 0.0
    %2387 = vmatpush1.msra.mxu0 0.0
    %2388 = vmatprep.subr.mxu0 0.0
    %2389 = vmatpush1.msra.mxu0 0.0
    %2390 = vmatprep.subr.mxu0 0.0
    %2391 = vmatpush1.msra.mxu0 0.0
    %2392 = vmatprep.subr.mxu0 0.0
    %2393 = vmatpush1.msra.mxu0 0.0
    %2394 = vmatprep.subr.mxu0 0.0
    %2395 = vmatpush1.msra.mxu0 0.0
    %2396 = vmatprep.subr.mxu0 0.0
    %2397 = vmatpush1.msra.mxu0 0.0
    %2398 = vmatprep.subr.mxu0 0.0
    %2399 = vmatpush1.msra.mxu0 0.0
    %2400 = vmatprep.subr.mxu0 0.0
    %2401 = vmatpush1.msra.mxu0 0.0
    %2402 = vmatprep.subr.mxu0 0.0
    %2403 = vmatpush1.msra.mxu0 0.0
    %2404 = vmatprep.subr.mxu0 0.0
    %2405 = vmatpush1.msra.mxu0 0.0
    %2406 = vmatprep.subr.mxu0 0.0
    %2407 = vmatpush1.msra.mxu0 0.0
    %2408 = vmatprep.subr.mxu0 0.0
    %2409 = vmatpush1.msra.mxu0 0.0
    %2410 = vmatprep.subr.mxu0 0.0
    %2411 = vmatpush1.msra.mxu0 0.0
    %2412 = vmatprep.subr.mxu0 0.0
    %2413 = vmatpush1.msra.mxu0 0.0
    %2414 = vmatprep.subr.mxu0 0.0
    %2415 = vmatpush1.msra.mxu0 0.0
    %2416 = vmatprep.subr.mxu0 0.0
    %2417 = vmatpush1.msra.mxu0 0.0
    %2418 = vmatprep.subr.mxu0 0.0
    %2419 = vmatpush1.msra.mxu0 0.0
    %2420 = vmatprep.subr.mxu0 0.0
    %2421 = vmatpush1.msra.mxu0 0.0
    %2422 = vmatprep.subr.mxu0 0.0
    %2423 = vmatpush1.msra.mxu0 0.0
    %2424 = vmatprep.subr.mxu0 0.0
    %2425 = vmatpush1.msra.mxu0 0.0
    %2426 = vmatprep.subr.mxu0 0.0
    %2427 = vmatpush1.msra.mxu0 0.0
    %2428 = vmatprep.subr.mxu0 0.0
    %2429 = vmatpush1.msra.mxu0 0.0
    %2430 = vmatprep.subr.mxu0 0.0
    %2431 = vmatpush1.msra.mxu0 0.0
    %2432 = vmatprep.subr.mxu0 0.0
    %2433 = vmatpush1.msra.mxu0 0.0
    %2434 = vmatprep.subr.mxu0 0.0
    %2435 = vmatpush1.msra.mxu0 0.0
    %2436 = vmatprep.mubr.f32.mxu0 0.0
    %2437 = vmatmul.mubr.f32.gmra.mrb[0].mxu0 %v2364
    %v2438 = vpop.f32.mrb[0].mxu0
    %v2439 = vadd.f32 0.0, %v2438
    %v2440 = vpop.f32.mrb[0].mxu0
    %2441 = vmatprep.mubr.f32.mxu0 0.0
    %2442 = vmatmul.mubr.f32.gmra.mrb[0].mxu0 %v2367
    %v2443 = vpop.f32.mrb[0].mxu0
    %v2444 = vadd.f32 0.0, %v2443
    %v2445 = vpop.f32.mrb[0].mxu0
    %2446 = vmatprep.mubr.f32.mxu0 0.0
    %2447 = vmatmul.mubr.f32.gmra.mrb[0].mxu0 %v2370
    %v2448 = vpop.f32.mrb[0].mxu0
    %v2449 = vadd.f32 0.0, %v2448
    %v2450 = vpop.f32.mrb[0].mxu0
    %2451 = vdwg.mxu0
    %2452 = vrot.lane.b32.xlu0 %v1784, 56
    %v2453 = vpop.permute.xlu0 %2452
    %2454 = vrot.lane.b32.xlu0 %v1789, 56
    %v2455 = vpop.permute.xlu0 %2454
    %2456 = vrot.lane.b32.xlu0 %v1794, 56
    %v2457 = vpop.permute.xlu0 %2456
    %v2462 = vsel %vm696, %v2337, 0
    %v2465 = vsel %vm696, %v2339, 0
    %v2468 = vsel %vm696, %v2341, 0
    %2470 = vmatprep.subr.mxu0 0.0
    %2471 = vmatpush1.msra.mxu0 %v2453
    %2472 = vmatprep.subr.mxu0 0.0
    %2473 = vmatpush1.msra.mxu0 %v2455
    %2474 = vmatprep.subr.mxu0 0.0
    %2475 = vmatpush1.msra.mxu0 %v2457
    %2476 = vmatprep.subr.mxu0 0.0
    %2477 = vmatpush1.msra.mxu0 0.0
    %2478 = vmatprep.subr.mxu0 0.0
    %2479 = vmatpush1.msra.mxu0 0.0
    %2480 = vmatprep.subr.mxu0 0.0
    %2481 = vmatpush1.msra.mxu0 0.0
    %2482 = vmatprep.subr.mxu0 0.0
    %2483 = vmatpush1.msra.mxu0 0.0
    %2484 = vmatprep.subr.mxu0 0.0
    %2485 = vmatpush1.msra.mxu0 0.0
    %2486 = vmatprep.subr.mxu0 0.0
    %2487 = vmatpush1.msra.mxu0 0.0
    %2488 = vmatprep.subr.mxu0 0.0
    %2489 = vmatpush1.msra.mxu0 0.0
    %2490 = vmatprep.subr.mxu0 0.0
    %2491 = vmatpush1.msra.mxu0 0.0
    %2492 = vmatprep.subr.mxu0 0.0
    %2493 = vmatpush1.msra.mxu0 0.0
    %2494 = vmatprep.subr.mxu0 0.0
    %2495 = vmatpush1.msra.mxu0 0.0
    %2496 = vmatprep.subr.mxu0 0.0
    %2497 = vmatpush1.msra.mxu0 0.0
    %2498 = vmatprep.subr.mxu0 0.0
    %2499 = vmatpush1.msra.mxu0 0.0
    %2500 = vmatprep.subr.mxu0 0.0
    %2501 = vmatpush1.msra.mxu0 0.0
    %2502 = vmatprep.subr.mxu0 0.0
    %2503 = vmatpush1.msra.mxu0 0.0
    %2504 = vmatprep.subr.mxu0 0.0
    %2505 = vmatpush1.msra.mxu0 0.0
    %2506 = vmatprep.subr.mxu0 0.0
    %2507 = vmatpush1.msra.mxu0 0.0
    %2508 = vmatprep.subr.mxu0 0.0
    %2509 = vmatpush1.msra.mxu0 0.0
    %2510 = vmatprep.subr.mxu0 0.0
    %2511 = vmatpush1.msra.mxu0 0.0
    %2512 = vmatprep.subr.mxu0 0.0
    %2513 = vmatpush1.msra.mxu0 0.0
    %2514 = vmatprep.subr.mxu0 0.0
    %2515 = vmatpush1.msra.mxu0 0.0
    %2516 = vmatprep.subr.mxu0 0.0
    %2517 = vmatpush1.msra.mxu0 0.0
    %2518 = vmatprep.subr.mxu0 0.0
    %2519 = vmatpush1.msra.mxu0 0.0
    %2520 = vmatprep.subr.mxu0 0.0
    %2521 = vmatpush1.msra.mxu0 0.0
    %2522 = vmatprep.subr.mxu0 0.0
    %2523 = vmatpush1.msra.mxu0 0.0
    %2524 = vmatprep.subr.mxu0 0.0
    %2525 = vmatpush1.msra.mxu0 0.0
    %2526 = vmatprep.subr.mxu0 0.0
    %2527 = vmatpush1.msra.mxu0 0.0
    %2528 = vmatprep.subr.mxu0 0.0
    %2529 = vmatpush1.msra.mxu0 0.0
    %2530 = vmatprep.subr.mxu0 0.0
    %2531 = vmatpush1.msra.mxu0 0.0
    %2532 = vmatprep.subr.mxu0 0.0
    %2533 = vmatpush1.msra.mxu0 0.0
    %2534 = vmatprep.mubr.f32.mxu0 0.0
    %2535 = vmatmul.mubr.f32.gmra.mrb[0].mxu0 %v2462
    %v2536 = vpop.f32.mrb[0].mxu0
    %v2537 = vadd.f32 0.0, %v2536
    %v2538 = vpop.f32.mrb[0].mxu0
    %2539 = vmatprep.mubr.f32.mxu0 0.0
    %2540 = vmatmul.mubr.f32.gmra.mrb[0].mxu0 %v2465
    %v2541 = vpop.f32.mrb[0].mxu0
    %v2542 = vadd.f32 0.0, %v2541
    %v2543 = vpop.f32.mrb[0].mxu0
    %2544 = vmatprep.mubr.f32.mxu0 0.0
    %2545 = vmatmul.mubr.f32.gmra.mrb[0].mxu0 %v2468
    %v2546 = vpop.f32.mrb[0].mxu0
    %v2547 = vadd.f32 0.0, %v2546
    %v2548 = vpop.f32.mrb[0].mxu0
    %2549 = vdwg.mxu0
    %2550 = vrot.lane.b32.xlu0 %v1784, 48
    %v2551 = vpop.permute.xlu0 %2550
    %2552 = vrot.lane.b32.xlu0 %v1789, 48
    %v2553 = vpop.permute.xlu0 %2552
    %2554 = vrot.lane.b32.xlu0 %v1794, 48
    %v2555 = vpop.permute.xlu0 %2554
    %v2560 = vsel %vm696, %v2343, 0
    %v2563 = vsel %vm696, %v2345, 0
    %v2566 = vsel %vm696, %v2347, 0
    %2568 = vmatprep.subr.mxu0 0.0
    %2569 = vmatpush1.msra.mxu0 %v2551
    %2570 = vmatprep.subr.mxu0 0.0
    %2571 = vmatpush1.msra.mxu0 %v2553
    %2572 = vmatprep.subr.mxu0 0.0
    %2573 = vmatpush1.msra.mxu0 %v2555
    %2574 = vmatprep.subr.mxu0 0.0
    %2575 = vmatpush1.msra.mxu0 0.0
    %2576 = vmatprep.subr.mxu0 0.0
    %2577 = vmatpush1.msra.mxu0 0.0
    %2578 = vmatprep.subr.mxu0 0.0
    %2579 = vmatpush1.msra.mxu0 0.0
    %2580 = vmatprep.subr.mxu0 0.0
    %2581 = vmatpush1.msra.mxu0 0.0
    %2582 = vmatprep.subr.mxu0 0.0
    %2583 = vmatpush1.msra.mxu0 0.0
    %2584 = vmatprep.subr.mxu0 0.0
    %2585 = vmatpush1.msra.mxu0 0.0
    %2586 = vmatprep.subr.mxu0 0.0
    %2587 = vmatpush1.msra.mxu0 0.0
    %2588 = vmatprep.subr.mxu0 0.0
    %2589 = vmatpush1.msra.mxu0 0.0
    %2590 = vmatprep.subr.mxu0 0.0
    %2591 = vmatpush1.msra.mxu0 0.0
    %2592 = vmatprep.subr.mxu0 0.0
    %2593 = vmatpush1.msra.mxu0 0.0
    %2594 = vmatprep.subr.mxu0 0.0
    %2595 = vmatpush1.msra.mxu0 0.0
    %2596 = vmatprep.subr.mxu0 0.0
    %2597 = vmatpush1.msra.mxu0 0.0
    %2598 = vmatprep.subr.mxu0 0.0
    %2599 = vmatpush1.msra.mxu0 0.0
    %2600 = vmatprep.subr.mxu0 0.0
    %2601 = vmatpush1.msra.mxu0 0.0
    %2602 = vmatprep.subr.mxu0 0.0
    %2603 = vmatpush1.msra.mxu0 0.0
    %2604 = vmatprep.subr.mxu0 0.0
    %2605 = vmatpush1.msra.mxu0 0.0
    %2606 = vmatprep.subr.mxu0 0.0
    %2607 = vmatpush1.msra.mxu0 0.0
    %2608 = vmatprep.subr.mxu0 0.0
    %2609 = vmatpush1.msra.mxu0 0.0
    %2610 = vmatprep.subr.mxu0 0.0
    %2611 = vmatpush1.msra.mxu0 0.0
    %2612 = vmatprep.subr.mxu0 0.0
    %2613 = vmatpush1.msra.mxu0 0.0
    %2614 = vmatprep.subr.mxu0 0.0
    %2615 = vmatpush1.msra.mxu0 0.0
    %2616 = vmatprep.subr.mxu0 0.0
    %2617 = vmatpush1.msra.mxu0 0.0
    %2618 = vmatprep.subr.mxu0 0.0
    %2619 = vmatpush1.msra.mxu0 0.0
    %2620 = vmatprep.subr.mxu0 0.0
    %2621 = vmatpush1.msra.mxu0 0.0
    %2622 = vmatprep.subr.mxu0 0.0
    %2623 = vmatpush1.msra.mxu0 0.0
    %2624 = vmatprep.subr.mxu0 0.0
    %2625 = vmatpush1.msra.mxu0 0.0
    %2626 = vmatprep.subr.mxu0 0.0
    %2627 = vmatpush1.msra.mxu0 0.0
    %2628 = vmatprep.subr.mxu0 0.0
    %2629 = vmatpush1.msra.mxu0 0.0
    %2630 = vmatprep.subr.mxu0 0.0
    %2631 = vmatpush1.msra.mxu0 0.0
    %2632 = vmatprep.mubr.f32.mxu0 0.0
    %2633 = vmatmul.mubr.f32.gmra.mrb[0].mxu0 %v2560
    %v2634 = vpop.f32.mrb[0].mxu0
    %v2635 = vadd.f32 0.0, %v2634
    %v2636 = vpop.f32.mrb[0].mxu0
    %2637 = vmatprep.mubr.f32.mxu0 0.0
    %2638 = vmatmul.mubr.f32.gmra.mrb[0].mxu0 %v2563
    %v2639 = vpop.f32.mrb[0].mxu0
    %v2640 = vadd.f32 0.0, %v2639
    %v2641 = vpop.f32.mrb[0].mxu0
    %2642 = vmatprep.mubr.f32.mxu0 0.0
    %2643 = vmatmul.mubr.f32.gmra.mrb[0].mxu0 %v2566
    %v2644 = vpop.f32.mrb[0].mxu0
    %v2645 = vadd.f32 0.0, %v2644
    %v2646 = vpop.f32.mrb[0].mxu0
    %2647 = vdwg.mxu0
    %2648 = vrot.lane.b32.xlu0 %v1784, 40
    %v2649 = vpop.permute.xlu0 %2648
    %2650 = vrot.lane.b32.xlu0 %v1789, 40
    %v2651 = vpop.permute.xlu0 %2650
    %2652 = vrot.lane.b32.xlu0 %v1794, 40
    %v2653 = vpop.permute.xlu0 %2652
    %v2658 = vsel %vm696, %v2349, 0
    %v2661 = vsel %vm696, %v2351, 0
    %v2664 = vsel %vm696, %v2353, 0
    %2666 = vmatprep.subr.mxu0 0.0
    %2667 = vmatpush1.msra.mxu0 %v2649
    %2668 = vmatprep.subr.mxu0 0.0
    %2669 = vmatpush1.msra.mxu0 %v2651
    %2670 = vmatprep.subr.mxu0 0.0
    %2671 = vmatpush1.msra.mxu0 %v2653
    %2672 = vmatprep.subr.mxu0 0.0
    %2673 = vmatpush1.msra.mxu0 0.0
    %2674 = vmatprep.subr.mxu0 0.0
    %2675 = vmatpush1.msra.mxu0 0.0
    %2676 = vmatprep.subr.mxu0 0.0
    %2677 = vmatpush1.msra.mxu0 0.0
    %2678 = vmatprep.subr.mxu0 0.0
    %2679 = vmatpush1.msra.mxu0 0.0
    %2680 = vmatprep.subr.mxu0 0.0
    %2681 = vmatpush1.msra.mxu0 0.0
    %2682 = vmatprep.subr.mxu0 0.0
    %2683 = vmatpush1.msra.mxu0 0.0
    %2684 = vmatprep.subr.mxu0 0.0
    %2685 = vmatpush1.msra.mxu0 0.0
    %2686 = vmatprep.subr.mxu0 0.0
    %2687 = vmatpush1.msra.mxu0 0.0
    %2688 = vmatprep.subr.mxu0 0.0
    %2689 = vmatpush1.msra.mxu0 0.0
    %2690 = vmatprep.subr.mxu0 0.0
    %2691 = vmatpush1.msra.mxu0 0.0
    %2692 = vmatprep.subr.mxu0 0.0
    %2693 = vmatpush1.msra.mxu0 0.0
    %2694 = vmatprep.subr.mxu0 0.0
    %2695 = vmatpush1.msra.mxu0 0.0
    %2696 = vmatprep.subr.mxu0 0.0
    %2697 = vmatpush1.msra.mxu0 0.0
    %2698 = vmatprep.subr.mxu0 0.0
    %2699 = vmatpush1.msra.mxu0 0.0
    %2700 = vmatprep.subr.mxu0 0.0
    %2701 = vmatpush1.msra.mxu0 0.0
    %2702 = vmatprep.subr.mxu0 0.0
    %2703 = vmatpush1.msra.mxu0 0.0
    %2704 = vmatprep.subr.mxu0 0.0
    %2705 = vmatpush1.msra.mxu0 0.0
    %2706 = vmatprep.subr.mxu0 0.0
    %2707 = vmatpush1.msra.mxu0 0.0
    %2708 = vmatprep.subr.mxu0 0.0
    %2709 = vmatpush1.msra.mxu0 0.0
    %2710 = vmatprep.subr.mxu0 0.0
    %2711 = vmatpush1.msra.mxu0 0.0
    %2712 = vmatprep.subr.mxu0 0.0
    %2713 = vmatpush1.msra.mxu0 0.0
    %2714 = vmatprep.subr.mxu0 0.0
    %2715 = vmatpush1.msra.mxu0 0.0
    %2716 = vmatprep.subr.mxu0 0.0
    %2717 = vmatpush1.msra.mxu0 0.0
    %2718 = vmatprep.subr.mxu0 0.0
    %2719 = vmatpush1.msra.mxu0 0.0
    %2720 = vmatprep.subr.mxu0 0.0
    %2721 = vmatpush1.msra.mxu0 0.0
    %2722 = vmatprep.subr.mxu0 0.0
    %2723 = vmatpush1.msra.mxu0 0.0
    %2724 = vmatprep.subr.mxu0 0.0
    %2725 = vmatpush1.msra.mxu0 0.0
    %2726 = vmatprep.subr.mxu0 0.0
    %2727 = vmatpush1.msra.mxu0 0.0
    %2728 = vmatprep.subr.mxu0 0.0
    %2729 = vmatpush1.msra.mxu0 0.0
    %2730 = vmatprep.mubr.f32.mxu0 0.0
    %2731 = vmatmul.mubr.f32.gmra.mrb[0].mxu0 %v2658
    %v2732 = vpop.f32.mrb[0].mxu0
    %v2733 = vadd.f32 0.0, %v2732
    %v2734 = vpop.f32.mrb[0].mxu0
    %2735 = vmatprep.mubr.f32.mxu0 0.0
    %2736 = vmatmul.mubr.f32.gmra.mrb[0].mxu0 %v2661
    %v2737 = vpop.f32.mrb[0].mxu0
    %v2738 = vadd.f32 0.0, %v2737
    %v2739 = vpop.f32.mrb[0].mxu0
    %2740 = vmatprep.mubr.f32.mxu0 0.0
    %2741 = vmatmul.mubr.f32.gmra.mrb[0].mxu0 %v2664
    %v2742 = vpop.f32.mrb[0].mxu0
    %v2743 = vadd.f32 0.0, %v2742
    %v2744 = vpop.f32.mrb[0].mxu0
    %2745 = vdwg.mxu0
    %2749 = vrot.lane.b32.xlu0 %v2537, 8
    %v2750 = vpop.permute.xlu0 %2749
    %2751 = vrot.lane.b32.xlu0 %v2542, 8
    %v2752 = vpop.permute.xlu0 %2751
    %2753 = vrot.lane.b32.xlu0 %v2547, 8
    %v2754 = vpop.permute.xlu0 %2753
    %2761 = vrot.lane.b32.xlu0 %v2635, 16
    %v2762 = vpop.permute.xlu0 %2761
    %2763 = vrot.lane.b32.xlu0 %v2640, 16
    %v2764 = vpop.permute.xlu0 %2763
    %2765 = vrot.lane.b32.xlu0 %v2645, 16
    %v2766 = vpop.permute.xlu0 %2765
    %2773 = vrot.lane.b32.xlu0 %v2733, 24
    %v2774 = vpop.permute.xlu0 %2773
    %2775 = vrot.lane.b32.xlu0 %v2738, 24
    %v2776 = vpop.permute.xlu0 %2775
    %2777 = vrot.lane.b32.xlu0 %v2743, 24
    %v2778 = vpop.permute.xlu0 %2777
    %v2782 = vsel %vm279, %v2439, %v2750
    %v2783 = vsel %vm279, %v2444, %v2752
    %v2784 = vsel %vm279, %v2449, %v2754
    %v2785 = vsel %vm1260, %v2782, %v2762
    %v2786 = vsel %vm1260, %v2783, %v2764
    %v2787 = vsel %vm1260, %v2784, %v2766
    %v2788 = vsel %vm696, %v2785, %v2774
    %v2789 = vsel %vm696, %v2786, %v2776
    %v2790 = vsel %vm696, %v2787, %v2778
    %v2791 = vlaneseq
    %v2792 = vshrl.u32 %v2791, 7
    %v2793 = vsub.s32 0, %v2792
    %v2794 = vrot.slane %v1697, %v2793
    %v2796 = vsel %vm180, %v2788, 0
    %v2799 = vsel %vm180, %v2789, 0
    %v2802 = vsel %vm180, %v2790, 0
    %2804 = vmatprep.subr.mxu0 0.0
    %2805 = vmatpush1.msra.mxu0 %v1680
    %2806 = vmatprep.subr.mxu0 0.0
    %2807 = vmatpush1.msra.mxu0 %v1681
    %2808 = vmatprep.subr.mxu0 0.0
    %2809 = vmatpush1.msra.mxu0 %v1682
    %2810 = vmatprep.subr.mxu0 0.0
    %2811 = vmatpush1.msra.mxu0 %v1683
    %2812 = vmatprep.subr.mxu0 0.0
    %2813 = vmatpush1.msra.mxu0 0.0
    %2814 = vmatprep.subr.mxu0 0.0
    %2815 = vmatpush1.msra.mxu0 0.0
    %2816 = vmatprep.subr.mxu0 0.0
    %2817 = vmatpush1.msra.mxu0 0.0
    %2818 = vmatprep.subr.mxu0 0.0
    %2819 = vmatpush1.msra.mxu0 0.0
    %2820 = vmatprep.subr.mxu0 0.0
    %2821 = vmatpush1.msra.mxu0 0.0
    %2822 = vmatprep.subr.mxu0 0.0
    %2823 = vmatpush1.msra.mxu0 0.0
    %2824 = vmatprep.subr.mxu0 0.0
    %2825 = vmatpush1.msra.mxu0 0.0
    %2826 = vmatprep.subr.mxu0 0.0
    %2827 = vmatpush1.msra.mxu0 0.0
    %2828 = vmatprep.subr.mxu0 0.0
    %2829 = vmatpush1.msra.mxu0 0.0
    %2830 = vmatprep.subr.mxu0 0.0
    %2831 = vmatpush1.msra.mxu0 0.0
    %2832 = vmatprep.subr.mxu0 0.0
    %2833 = vmatpush1.msra.mxu0 0.0
    %2834 = vmatprep.subr.mxu0 0.0
    %2835 = vmatpush1.msra.mxu0 0.0
    %2836 = vmatprep.subr.mxu0 0.0
    %2837 = vmatpush1.msra.mxu0 0.0
    %2838 = vmatprep.subr.mxu0 0.0
    %2839 = vmatpush1.msra.mxu0 0.0
    %2840 = vmatprep.subr.mxu0 0.0
    %2841 = vmatpush1.msra.mxu0 0.0
    %2842 = vmatprep.subr.mxu0 0.0
    %2843 = vmatpush1.msra.mxu0 0.0
    %2844 = vmatprep.subr.mxu0 0.0
    %2845 = vmatpush1.msra.mxu0 0.0
    %2846 = vmatprep.subr.mxu0 0.0
    %2847 = vmatpush1.msra.mxu0 0.0
    %2848 = vmatprep.subr.mxu0 0.0
    %2849 = vmatpush1.msra.mxu0 0.0
    %2850 = vmatprep.subr.mxu0 0.0
    %2851 = vmatpush1.msra.mxu0 0.0
    %2852 = vmatprep.subr.mxu0 0.0
    %2853 = vmatpush1.msra.mxu0 0.0
    %2854 = vmatprep.subr.mxu0 0.0
    %2855 = vmatpush1.msra.mxu0 0.0
    %2856 = vmatprep.subr.mxu0 0.0
    %2857 = vmatpush1.msra.mxu0 0.0
    %2858 = vmatprep.subr.mxu0 0.0
    %2859 = vmatpush1.msra.mxu0 0.0
    %2860 = vmatprep.subr.mxu0 0.0
    %2861 = vmatpush1.msra.mxu0 0.0
    %2862 = vmatprep.subr.mxu0 0.0
    %2863 = vmatpush1.msra.mxu0 0.0
    %2864 = vmatprep.subr.mxu0 0.0
    %2865 = vmatpush1.msra.mxu0 0.0
    %2866 = vmatprep.subr.mxu0 0.0
    %2867 = vmatpush1.msra.mxu0 0.0
    %2868 = vmatprep.mubr.f32.mxu0 0.0
    %2869 = vmatmul.mubr.f32.gmra.mrb[0].mxu0 %v2796
    %v2870 = vpop.f32.mrb[0].mxu0
    %v2871 = vadd.f32 %v2794, %v2870
    %v2872 = vpop.f32.mrb[0].mxu0
    %2873 = vmatprep.mubr.f32.mxu0 0.0
    %2874 = vmatmul.mubr.f32.gmra.mrb[0].mxu0 %v2799
    %v2875 = vpop.f32.mrb[0].mxu0
    %v2876 = vadd.f32 %v2794, %v2875
    %v2877 = vpop.f32.mrb[0].mxu0
    %2878 = vmatprep.mubr.f32.mxu0 0.0
    %2879 = vmatmul.mubr.f32.gmra.mrb[0].mxu0 %v2802
    %v2880 = vpop.f32.mrb[0].mxu0
    %v2881 = vadd.f32 %v2794, %v2880
    %v2882 = vpop.f32.mrb[0].mxu0
    %2883 = vdwg.mxu0
    %v2884 = vadd.f32 %v1673, %v2871
    %v2885 = vadd.f32 %v1674, %v2876
    %v2886 = vadd.f32 %v1675, %v2881
    %v2887 = vsel %vm180, %v2884, 0.0
    %2888 = vadd.xlane.f32.xlu0 %v2887
    %v2889 = vpop.xlane.xlu0 %2888
    %v2890 = vsel %vm180, %v2885, 0.0
    %2891 = vadd.xlane.f32.xlu0 %v2890
    %v2892 = vpop.xlane.xlu0 %2891
    %v2893 = vsel %vm180, %v2886, 0.0
    %2894 = vadd.xlane.f32.xlu0 %v2893
    %v2895 = vpop.xlane.xlu0 %2894
    %v2896 = vmul.f32 %v2889, %v1372
    %v2897 = vmul.f32 %v2892, %v1372
    %v2898 = vmul.f32 %v2895, %v1372
    %v2899 = vsub.f32 %v2884, %v2896
    %v2900 = vsub.f32 %v2885, %v2897
    %v2901 = vsub.f32 %v2886, %v2898
    %v2902 = vmul.f32 %v2899, %v2899
    %v2903 = vmul.f32 %v2900, %v2900
    %v2904 = vmul.f32 %v2901, %v2901
    %v2905 = vsel %vm180, %v2902, 0.0
    %2906 = vadd.xlane.f32.xlu0 %v2905
    %v2907 = vpop.xlane.xlu0 %2906
    %v2908 = vsel %vm180, %v2903, 0.0
    %2909 = vadd.xlane.f32.xlu0 %v2908
    %v2910 = vpop.xlane.xlu0 %2909
    %v2911 = vsel %vm180, %v2904, 0.0
    %2912 = vadd.xlane.f32.xlu0 %v2911
    %v2913 = vpop.xlane.xlu0 %2912
    %v2914 = vmul.f32 %v2907, %v1372
    %v2915 = vmul.f32 %v2910, %v1372
    %v2916 = vmul.f32 %v2913, %v1372
    %v2917 = vadd.f32 %v2914, 1e-05
    %v2918 = vadd.f32 %v2915, 1e-05
    %v2919 = vadd.f32 %v2916, 1e-05
    %v2920 = vrsqrt.pop %v2917
    %v2921 = vrsqrt.pop %v2918
    %v2922 = vrsqrt.pop %v2919
    %v2923 = vmul.f32 %v2899, %v2920
    %v2924 = vmul.f32 %v2900, %v2921
    %v2925 = vmul.f32 %v2901, %v2922
    %v2926 = vlaneseq
    %v2927 = vshrl.u32 %v2926, 7
    %v2928 = vsub.s32 0, %v2927
    %v2929 = vrot.slane %v1700, %v2928
    %v2930 = vmul.f32 %v2923, %v2929
    %v2931 = vmul.f32 %v2924, %v2929
    %v2932 = vmul.f32 %v2925, %v2929
    %v2933 = vlaneseq
    %v2934 = vshrl.u32 %v2933, 7
    %v2935 = vsub.s32 0, %v2934
    %v2936 = vrot.slane %v1701, %v2935
    %v2937 = vadd.f32 %v2930, %v2936
    %v2938 = vadd.f32 %v2931, %v2936
    %v2939 = vadd.f32 %v2932, %v2936
    %v2940 = vlaneseq
    %v2941 = vshrl.u32 %v2940, 7
    %v2942 = vsub.s32 0, %v2941
    %v2943 = vrot.slane %v1698, %v2942
    %v2945 = vsel %vm180, %v2937, 0
    %v2948 = vsel %vm180, %v2938, 0
    %v2951 = vsel %vm180, %v2939, 0
    %2953 = vmatprep.subr.mxu0 0.0
    %2954 = vmatpush1.msra.mxu0 %v1684
    %2955 = vmatprep.subr.mxu0 0.0
    %2956 = vmatpush1.msra.mxu0 %v1685
    %2957 = vmatprep.subr.mxu0 0.0
    %2958 = vmatpush1.msra.mxu0 %v1686
    %2959 = vmatprep.subr.mxu0 0.0
    %2960 = vmatpush1.msra.mxu0 %v1687
    %2961 = vmatprep.subr.mxu0 0.0
    %2962 = vmatpush1.msra.mxu0 0.0
    %2963 = vmatprep.subr.mxu0 0.0
    %2964 = vmatpush1.msra.mxu0 0.0
    %2965 = vmatprep.subr.mxu0 0.0
    %2966 = vmatpush1.msra.mxu0 0.0
    %2967 = vmatprep.subr.mxu0 0.0
    %2968 = vmatpush1.msra.mxu0 0.0
    %2969 = vmatprep.subr.mxu0 0.0
    %2970 = vmatpush1.msra.mxu0 0.0
    %2971 = vmatprep.subr.mxu0 0.0
    %2972 = vmatpush1.msra.mxu0 0.0
    %2973 = vmatprep.subr.mxu0 0.0
    %2974 = vmatpush1.msra.mxu0 0.0
    %2975 = vmatprep.subr.mxu0 0.0
    %2976 = vmatpush1.msra.mxu0 0.0
    %2977 = vmatprep.subr.mxu0 0.0
    %2978 = vmatpush1.msra.mxu0 0.0
    %2979 = vmatprep.subr.mxu0 0.0
    %2980 = vmatpush1.msra.mxu0 0.0
    %2981 = vmatprep.subr.mxu0 0.0
    %2982 = vmatpush1.msra.mxu0 0.0
    %2983 = vmatprep.subr.mxu0 0.0
    %2984 = vmatpush1.msra.mxu0 0.0
    %2985 = vmatprep.subr.mxu0 0.0
    %2986 = vmatpush1.msra.mxu0 0.0
    %2987 = vmatprep.subr.mxu0 0.0
    %2988 = vmatpush1.msra.mxu0 0.0
    %2989 = vmatprep.subr.mxu0 0.0
    %2990 = vmatpush1.msra.mxu0 0.0
    %2991 = vmatprep.subr.mxu0 0.0
    %2992 = vmatpush1.msra.mxu0 0.0
    %2993 = vmatprep.subr.mxu0 0.0
    %2994 = vmatpush1.msra.mxu0 0.0
    %2995 = vmatprep.subr.mxu0 0.0
    %2996 = vmatpush1.msra.mxu0 0.0
    %2997 = vmatprep.subr.mxu0 0.0
    %2998 = vmatpush1.msra.mxu0 0.0
    %2999 = vmatprep.subr.mxu0 0.0
    %3000 = vmatpush1.msra.mxu0 0.0
    %3001 = vmatprep.subr.mxu0 0.0
    %3002 = vmatpush1.msra.mxu0 0.0
    %3003 = vmatprep.subr.mxu0 0.0
    %3004 = vmatpush1.msra.mxu0 0.0
    %3005 = vmatprep.subr.mxu0 0.0
    %3006 = vmatpush1.msra.mxu0 0.0
    %3007 = vmatprep.subr.mxu0 0.0
    %3008 = vmatpush1.msra.mxu0 0.0
    %3009 = vmatprep.subr.mxu0 0.0
    %3010 = vmatpush1.msra.mxu0 0.0
    %3011 = vmatprep.subr.mxu0 0.0
    %3012 = vmatpush1.msra.mxu0 0.0
    %3013 = vmatprep.subr.mxu0 0.0
    %3014 = vmatpush1.msra.mxu0 0.0
    %3015 = vmatprep.subr.mxu0 0.0
    %3016 = vmatpush1.msra.mxu0 0.0
    %3017 = vmatprep.mubr.f32.mxu0 0.0
    %3018 = vmatmul.mubr.f32.gmra.mrb[0].mxu0 %v2945
    %v3019 = vpop.f32.mrb[0].mxu0
    %v3020 = vadd.f32 %v2943, %v3019
    %v3021 = vpop.f32.mrb[0].mxu0
    %3022 = vmatprep.mubr.f32.mxu0 0.0
    %3023 = vmatmul.mubr.f32.gmra.mrb[0].mxu0 %v2948
    %v3024 = vpop.f32.mrb[0].mxu0
    %v3025 = vadd.f32 %v2943, %v3024
    %v3026 = vpop.f32.mrb[0].mxu0
    %3027 = vmatprep.mubr.f32.mxu0 0.0
    %3028 = vmatmul.mubr.f32.gmra.mrb[0].mxu0 %v2951
    %v3029 = vpop.f32.mrb[0].mxu0
    %v3030 = vadd.f32 %v2943, %v3029
    %v3031 = vpop.f32.mrb[0].mxu0
    %3032 = vdwg.mxu0
    %v3033 = vmul.f32 %v3020, 0.5
    %v3034 = vmul.f32 %v3025, 0.5
    %v3035 = vmul.f32 %v3030, 0.5
    %v3036 = vmul.f32 %v3020, %v1513
    %v3037 = vmul.f32 %v3025, %v1513
    %v3038 = vmul.f32 %v3030, %v1513
    %v3039 = verf.f32.pop %v3036
    %v3040 = verf.f32.pop %v3037
    %v3041 = verf.f32.pop %v3038
    %v3042 = vadd.f32 %v3039, 1.0
    %v3043 = vadd.f32 %v3040, 1.0
    %v3044 = vadd.f32 %v3041, 1.0
    %v3045 = vmul.f32 %v3033, %v3042
    %v3046 = vmul.f32 %v3034, %v3043
    %v3047 = vmul.f32 %v3035, %v3044
    %v3048 = vlaneseq
    %v3049 = vshrl.u32 %v3048, 7
    %v3050 = vsub.s32 0, %v3049
    %v3051 = vrot.slane %v1699, %v3050
    %v3053 = vsel %vm1530, %v3045, 0
    %v3056 = vsel %vm1530, %v3046, 0
    %v3059 = vsel %vm1530, %v3047, 0
    %3061 = vmatprep.subr.mxu0 0.0
    %3062 = vmatpush1.msra.mxu0 %v1688
    %3063 = vmatprep.subr.mxu0 0.0
    %3064 = vmatpush1.msra.mxu0 %v1689
    %3065 = vmatprep.subr.mxu0 0.0
    %3066 = vmatpush1.msra.mxu0 %v1690
    %3067 = vmatprep.subr.mxu0 0.0
    %3068 = vmatpush1.msra.mxu0 %v1691
    %3069 = vmatprep.subr.mxu0 0.0
    %3070 = vmatpush1.msra.mxu0 %v1692
    %3071 = vmatprep.subr.mxu0 0.0
    %3072 = vmatpush1.msra.mxu0 %v1693
    %3073 = vmatprep.subr.mxu0 0.0
    %3074 = vmatpush1.msra.mxu0 %v1694
    %3075 = vmatprep.subr.mxu0 0.0
    %3076 = vmatpush1.msra.mxu0 %v1695
    %3077 = vmatprep.subr.mxu0 0.0
    %3078 = vmatpush1.msra.mxu0 0.0
    %3079 = vmatprep.subr.mxu0 0.0
    %3080 = vmatpush1.msra.mxu0 0.0
    %3081 = vmatprep.subr.mxu0 0.0
    %3082 = vmatpush1.msra.mxu0 0.0
    %3083 = vmatprep.subr.mxu0 0.0
    %3084 = vmatpush1.msra.mxu0 0.0
    %3085 = vmatprep.subr.mxu0 0.0
    %3086 = vmatpush1.msra.mxu0 0.0
    %3087 = vmatprep.subr.mxu0 0.0
    %3088 = vmatpush1.msra.mxu0 0.0
    %3089 = vmatprep.subr.mxu0 0.0
    %3090 = vmatpush1.msra.mxu0 0.0
    %3091 = vmatprep.subr.mxu0 0.0
    %3092 = vmatpush1.msra.mxu0 0.0
    %3093 = vmatprep.subr.mxu0 0.0
    %3094 = vmatpush1.msra.mxu0 0.0
    %3095 = vmatprep.subr.mxu0 0.0
    %3096 = vmatpush1.msra.mxu0 0.0
    %3097 = vmatprep.subr.mxu0 0.0
    %3098 = vmatpush1.msra.mxu0 0.0
    %3099 = vmatprep.subr.mxu0 0.0
    %3100 = vmatpush1.msra.mxu0 0.0
    %3101 = vmatprep.subr.mxu0 0.0
    %3102 = vmatpush1.msra.mxu0 0.0
    %3103 = vmatprep.subr.mxu0 0.0
    %3104 = vmatpush1.msra.mxu0 0.0
    %3105 = vmatprep.subr.mxu0 0.0
    %3106 = vmatpush1.msra.mxu0 0.0
    %3107 = vmatprep.subr.mxu0 0.0
    %3108 = vmatpush1.msra.mxu0 0.0
    %3109 = vmatprep.subr.mxu0 0.0
    %3110 = vmatpush1.msra.mxu0 0.0
    %3111 = vmatprep.subr.mxu0 0.0
    %3112 = vmatpush1.msra.mxu0 0.0
    %3113 = vmatprep.subr.mxu0 0.0
    %3114 = vmatpush1.msra.mxu0 0.0
    %3115 = vmatprep.subr.mxu0 0.0
    %3116 = vmatpush1.msra.mxu0 0.0
    %3117 = vmatprep.subr.mxu0 0.0
    %3118 = vmatpush1.msra.mxu0 0.0
    %3119 = vmatprep.subr.mxu0 0.0
    %3120 = vmatpush1.msra.mxu0 0.0
    %3121 = vmatprep.subr.mxu0 0.0
    %3122 = vmatpush1.msra.mxu0 0.0
    %3123 = vmatprep.subr.mxu0 0.0
    %3124 = vmatpush1.msra.mxu0 0.0
    %3125 = vmatprep.mubr.f32.mxu0 0.0
    %3126 = vmatmul.mubr.f32.gmra.mrb[0].mxu0 %v3053
    %v3127 = vpop.f32.mrb[0].mxu0
    %v3128 = vadd.f32 %v3051, %v3127
    %v3129 = vpop.f32.mrb[0].mxu0
    %3130 = vmatprep.mubr.f32.mxu0 0.0
    %3131 = vmatmul.mubr.f32.gmra.mrb[0].mxu0 %v3056
    %v3132 = vpop.f32.mrb[0].mxu0
    %v3133 = vpop.f32.mrb[0].mxu0
    %3134 = vmatprep.mubr.f32.mxu0 0.0
    %3135 = vmatmul.mubr.f32.gmra.mrb[0].mxu0 %v3059
    %v3136 = vpop.f32.mrb[0].mxu0
    %v3137 = vpop.f32.mrb[0].mxu0
    %3138 = vdwg.mxu0
    %v3139 = vadd.f32 %v2937, %v3128
    %v3140 = vsel %vm180, %v3139, 0.0
    %3141 = vadd.xlane.f32.xlu0 %v3140
    %v3142 = vpop.xlane.xlu0 %3141
    %v3143 = vmul.f32 %v3142, %v1372
    %v3144 = vsub.f32 %v3139, %v3143
    %v3145 = vmul.f32 %v3144, %v3144
    %v3146 = vsel %vm180, %v3145, 0.0
    %3147 = vadd.xlane.f32.xlu0 %v3146
    %v3148 = vpop.xlane.xlu0 %3147
    %v3149 = vmul.f32 %v3148, %v1372
    %v3150 = vadd.f32 %v3149, 1e-05
    %v3151 = vrsqrt.pop %v3150
    %v3152 = vmul.f32 %v3144, %v3151
    %v3153 = vlaneseq
    %v3154 = vshrl.u32 %v3153, 7
    %v3155 = vsub.s32 0, %v3154
    %v3156 = vrot.slane %v1702, %v3155
    %v3157 = vmul.f32 %v3152, %v3156
    %v3158 = vlaneseq
    %v3159 = vshrl.u32 %v3158, 7
    %v3160 = vsub.s32 0, %v3159
    %v3161 = vrot.slane %v1703, %v3160
    %v3162 = vadd.f32 %v3157, %v3161
    %vm3163 = vcmask 254976
    %3164 = vst.msk [vmem:[#allocation2] sm:$0x3] %vm3163, %v3162
    // Predicated region
    $region10: #{constraint_embedding_forward.1} parent=1 // pred_check
      _
    $region11: #{constraint_embedding_forward.1} parent=1 // pred_check_branch
      %3166 = sbr.rel (0) target = $region13
    $region12: #{constraint_embedding_forward.1} parent=1 // pred_region
      %s3168 = ssub.s32 32, 32
      %3169 = vsyncadd [#allocation3], %s3168
      %s3171 = sshll.u32 [#allocation2], 4
      %s3172 = int_to_ptr.vmem [resolvable:$true] %s3171
      %3174 = dma.vmem_to_hbm [thread:$0]  %s3172, 32, %s2, [#allocation3]
    $region13: #{constraint_embedding_forward.1} parent=1 // pred_fallthru
      _
    // Predicated region
    $region14: #{constraint_embedding_forward.1} parent=1 // pred_check
      _
    $region15: #{constraint_embedding_forward.1} parent=1 // pred_check_branch
      %3176 = sbr.rel (0) target = $region17
    $region16: #{constraint_embedding_forward.1} parent=1 // pred_region
      %3177 = dma.done [#allocation3], 32
    $region17: #{constraint_embedding_forward.1} parent=1 // pred_fallthru
      _
    %3178 = vsyncpa [#allocation3], 1

</llo_original>
